<compile_context>
chip_gen: v6e
topology: v6e:2x2x1
jax: 0.10.0
libtpu: 0.0.40
codegen_flags: <defaults>
</compile_context>

<pallas_src>
import jax
import jax.numpy as jnp
import numpy as np
from jax.experimental import pallas as pl
from jax.experimental.pallas import tpu as pltpu


# ---------------------------------------------------------------------------
# Kernel
# ---------------------------------------------------------------------------
def bigru_sum_kernel(x_ref,        # (T, B, H)   inputs, time-major
                     wih_ref,      # (H, 6H)     [W_ihT_fwd | W_ihT_bwd]
                     bpre_ref,     # (1, 6H)     pre-folded biases (see fold_params)
                     whh_f_ref,    # (H, 3H)     forward  W_hh^T
                     bhn_f_ref,    # (1, H)      forward  b_hn
                     whh_b_ref,    # (H, 3H)     backward W_hh^T
                     bhn_b_ref,    # (1, H)      backward b_hn
                     out_ref,      # (T, B, H)   facts = fwd + bwd
                     gi_ref,       # VMEM scratch (T, B, 6H) input projections
                     fwd_ref):     # VMEM scratch (T, B, H)  forward outputs
    T, B, H = x_ref.shape
    H3 = 3 * H

    # ---- fused input projections for every timestep & both directions -------
    # (one MXU call instead of 2*T small ones; biases folded in)
    x2d = x_ref[...].reshape(T * B, H)
    gi_all = (jnp.dot(x2d, wih_ref[...], preferred_element_type=jnp.float32)
              + bpre_ref[...])
    gi_ref[...] = gi_all.reshape(T, B, 2 * H3)

    whh_f = whh_f_ref[...]
    bhn_f = bhn_f_ref[...]
    whh_b = whh_b_ref[...]
    bhn_b = bhn_b_ref[...]

    def gru_step(h, gi, whh, bhn):
        # gi already contains  W_i{r,z,n} x + b_i{r,z,n} + b_h{r,z}
        gh = jnp.dot(h, whh, preferred_element_type=jnp.float32)     # (B, 3H)
        rz = jax.nn.sigmoid(gi[:, :2 * H] + gh[:, :2 * H])           # packed r|z
        r = rz[:, :H]
        z = rz[:, H:]
        n = jnp.tanh(gi[:, 2 * H:] + r * (gh[:, 2 * H:] + bhn))
        return n + z * (h - n)        # == (1 - z) * n + z * h

    h0 = jnp.zeros((B, H), jnp.float32)

    # ---- forward direction ---------------------------------------------------
    def fwd_body(t, h):
        gi = gi_ref[t][:, :H3]
        h_new = gru_step(h, gi, whh_f, bhn_f)
        fwd_ref[t] = h_new
        return h_new

    jax.lax.fori_loop(0, T, fwd_body, h0, unroll=True)

    # ---- backward direction + sum into the output ----------------------------
    def bwd_body(i, h):
        t = T - 1 - i
        gi = gi_ref[t][:, H3:]
        h_new = gru_step(h, gi, whh_b, bhn_b)
        out_ref[t] = fwd_ref[t] + h_new
        return h_new

    jax.lax.fori_loop(0, T, bwd_body, h0, unroll=True)


# ---------------------------------------------------------------------------
# Wrapper
# ---------------------------------------------------------------------------
def input_module_forward(contexts, folded):
    """contexts:(B,T,H) f32 -> facts:(B,T,H) f32 (eval-mode InputModule.forward)."""
    B, T, H = contexts.shape
    x = jnp.transpose(contexts, (1, 0, 2))          # time-major (T, B, H)

    vmem = pl.BlockSpec(memory_space=pltpu.MemorySpace.VMEM)
    args = (x,
            folded["wih_cat"], folded["bpre_cat"],
            folded["whh_f"], folded["bhn_f"],
            folded["whh_b"], folded["bhn_b"])

    out = pl.pallas_call(
        bigru_sum_kernel,
        out_shape=jax.ShapeDtypeStruct((T, B, H), jnp.float32),
        in_specs=[vmem] * len(args),
        out_specs=vmem,
        scratch_shapes=[
            pltpu.VMEM((T, B, 6 * H), jnp.float32),   # gi_ref
            pltpu.VMEM((T, B, H), jnp.float32),       # fwd_ref
        ],
    )(*args)
    return jnp.transpose(out, (1, 0, 2))


# ---------------------------------------------------------------------------
# Parameters (deterministic synthetic, PyTorch GRU layout) + offline folding
# ---------------------------------------------------------------------------
def init_gru_params(key, hidden):
    """Raw PyTorch-style bidirectional GRU params.
    weight_* : (3H, H) xavier-normal (as the module does), bias_* : (3H,) uniform."""
    H = hidden
    ks = jax.random.split(key, 8)

    def xavier(k, shape):
        fan_out, fan_in = shape
        std = np.sqrt(2.0 / (fan_in + fan_out))
        return jax.random.normal(k, shape, jnp.float32) * std

    def ubias(k, shape):
        bound = 1.0 / np.sqrt(H)
        return jax.random.uniform(k, shape, jnp.float32, -bound, bound)

    return {
        "w_ih_f": xavier(ks[0], (3 * H, H)), "w_hh_f": xavier(ks[1], (3 * H, H)),
        "b_ih_f": ubias(ks[2], (3 * H,)),    "b_hh_f": ubias(ks[3], (3 * H,)),
        "w_ih_b": xavier(ks[4], (3 * H, H)), "w_hh_b": xavier(ks[5], (3 * H, H)),
        "b_ih_b": ubias(ks[6], (3 * H,)),    "b_hh_b": ubias(ks[7], (3 * H,)),
    }


def fold_params(raw, H):
    """Build the fused/pre-folded kernel parameters (done once, offline).
    Per direction:
      pre-bias = [b_ir + b_hr, b_iz + b_hz, b_in]   (folded into input projection)
      b_hn stays separate (inside r * (W_hn h + b_hn)).
    Weights are stored transposed (in_features, out_features) for x @ W on the MXU.
    NOTE: for large H on v6e/v7x, cast these to bfloat16 (keep f32 accumulation)."""
    def pre_bias(b_ih, b_hh):
        return jnp.concatenate([b_ih[:2 * H] + b_hh[:2 * H], b_ih[2 * H:]])

    wih_cat = jnp.concatenate([raw["w_ih_f"].T, raw["w_ih_b"].T], axis=1)       # (H, 6H)
    bpre_cat = jnp.concatenate([pre_bias(raw["b_ih_f"], raw["b_hh_f"]),
                                pre_bias(raw["b_ih_b"], raw["b_hh_b"])])[None]  # (1, 6H)
    return {
        "wih_cat": wih_cat,
        "bpre_cat": bpre_cat,
        "whh_f": raw["w_hh_f"].T,                    # (H, 3H)
        "whh_b": raw["w_hh_b"].T,
        "bhn_f": raw["b_hh_f"][2 * H:][None, :],     # (1, H)
        "bhn_b": raw["b_hh_b"][2 * H:][None, :],
    }


# ---------------------------------------------------------------------------
# Pure-JAX reference (PyTorch nn.GRU math, unfolded params)
# ---------------------------------------------------------------------------
def _gru_direction_ref(x_tbh, w_ih, w_hh, b_ih, b_hh):
    H = w_hh.shape[1]

    def step(h, x_t):
        gi = x_t @ w_ih.T + b_ih
        gh = h @ w_hh.T + b_hh
        r = jax.nn.sigmoid(gi[:, :H] + gh[:, :H])
        z = jax.nn.sigmoid(gi[:, H:2 * H] + gh[:, H:2 * H])
        n = jnp.tanh(gi[:, 2 * H:] + r * gh[:, 2 * H:])
        h_new = (1.0 - z) * n + z * h
        return h_new, h_new

    h0 = jnp.zeros((x_tbh.shape[1], H), jnp.float32)
    _, ys = jax.lax.scan(step, h0, x_tbh)
    return ys


def input_module_reference(contexts, raw):
    x = jnp.transpose(contexts, (1, 0, 2))   # (T, B, H)
    fwd = _gru_direction_ref(x, raw["w_ih_f"], raw["w_hh_f"],
                             raw["b_ih_f"], raw["b_hh_f"])
    bwd = _gru_direction_ref(x[::-1], raw["w_ih_b"], raw["w_hh_b"],
                             raw["b_ih_b"], raw["b_hh_b"])[::-1]
    facts = fwd + bwd
    return jnp.transpose(facts, (1, 0, 2))


# ---------------------------------------------------------------------------
if __name__ == "__main__":
    B, T, H = 2, 8, 32      # batch=2, #context sentences=8, hidden=32
    key = jax.random.PRNGKey(0)
    k_x, k_p = jax.random.split(key)

    contexts = jax.random.normal(k_x, (B, T, H), jnp.float32)
    raw = init_gru_params(k_p, H)
    folded = fold_params(raw, H)

    facts = input_module_forward(contexts, folded)
    facts = jax.block_until_ready(facts)

    facts_ref = input_module_reference(contexts, raw)
    np.testing.assert_allclose(np.asarray(facts), np.asarray(facts_ref),
                               rtol=1e-5, atol=1e-5)

    print("KERNEL_OK")
</pallas_src>

<mosaic_0001>
module attributes {stable_mosaic.version = 11 : i64} {
  func.func @bigru_sum_kernel(%arg0: memref<8x2x32xf32, #tpu.memory_space<vmem>>, %arg1: memref<32x192xf32, #tpu.memory_space<vmem>>, %arg2: memref<1x192xf32, #tpu.memory_space<vmem>>, %arg3: memref<32x96xf32, #tpu.memory_space<vmem>>, %arg4: memref<1x32xf32, #tpu.memory_space<vmem>>, %arg5: memref<32x96xf32, #tpu.memory_space<vmem>>, %arg6: memref<1x32xf32, #tpu.memory_space<vmem>>, %arg7: memref<8x2x32xf32, #tpu.memory_space<vmem>>, %arg8: memref<8x2x192xf32, #tpu.memory_space<vmem>>, %arg9: memref<8x2x32xf32, #tpu.memory_space<vmem>>) attributes {dimension_semantics = [], scalar_prefetch = 0 : i64, scratch_operands = 2 : i64, tpu.core_type = #tpu.core_type<tc>} {
    %c0 = arith.constant 0 : index
    %c0_0 = arith.constant 0 : index
    %c0_1 = arith.constant 0 : index
    %0 = vector.load %arg0[%c0, %c0_0, %c0_1] : memref<8x2x32xf32, #tpu.memory_space<vmem>>, vector<8x2x32xf32>
    %1 = vector.shape_cast %0 : vector<8x2x32xf32> to vector<16x32xf32>
    %c0_2 = arith.constant 0 : index
    %c0_3 = arith.constant 0 : index
    %2 = vector.load %arg1[%c0_2, %c0_3] : memref<32x192xf32, #tpu.memory_space<vmem>>, vector<32x192xf32>
    %cst = arith.constant dense<0.000000e+00> : vector<16x192xf32>
    %3 = tpu.matmul %1, %2, %cst {dimension_numbers = #tpu.dot_dimension_numbers<[1], [0], [0], [1], [0, 0, 1, 1], [], []>} : vector<16x32xf32>, vector<32x192xf32>, vector<16x192xf32> -> vector<16x192xf32>
    %c0_4 = arith.constant 0 : index
    %c0_5 = arith.constant 0 : index
    %4 = vector.load %arg2[%c0_4, %c0_5] : memref<1x192xf32, #tpu.memory_space<vmem>>, vector<1x192xf32>
    %5 = vector.broadcast %4 : vector<1x192xf32> to vector<16x192xf32>
    %6 = arith.addf %3, %5 : vector<16x192xf32>
    %7 = vector.shape_cast %6 : vector<16x192xf32> to vector<8x2x192xf32>
    %c0_6 = arith.constant 0 : index
    %c0_7 = arith.constant 0 : index
    %c0_8 = arith.constant 0 : index
    %8 = vector.load %arg8[%c0_6, %c0_7, %c0_8] : memref<8x2x192xf32, #tpu.memory_space<vmem>>, vector<8x2x192xf32>
    tpu.vector_store %arg8[%c0_6, %c0_7, %c0_8], %7 {strides = array<i32>} : memref<8x2x192xf32, #tpu.memory_space<vmem>>, vector<8x2x192xf32>,
    %c0_9 = arith.constant 0 : index
    %c0_10 = arith.constant 0 : index
    %9 = vector.load %arg3[%c0_9, %c0_10] : memref<32x96xf32, #tpu.memory_space<vmem>>, vector<32x96xf32>
    %c0_11 = arith.constant 0 : index
    %c0_12 = arith.constant 0 : index
    %10 = vector.load %arg4[%c0_11, %c0_12] : memref<1x32xf32, #tpu.memory_space<vmem>>, vector<1x32xf32>
    %c0_13 = arith.constant 0 : index
    %c0_14 = arith.constant 0 : index
    %11 = vector.load %arg5[%c0_13, %c0_14] : memref<32x96xf32, #tpu.memory_space<vmem>>, vector<32x96xf32>
    %c0_15 = arith.constant 0 : index
    %c0_16 = arith.constant 0 : index
    %12 = vector.load %arg6[%c0_15, %c0_16] : memref<1x32xf32, #tpu.memory_space<vmem>>, vector<1x32xf32>
    %cst_17 = arith.constant 0.000000e+00 : f32
    %13 = vector.broadcast %cst_17 : f32 to vector<2x32xf32>
    %c0_i32 = arith.constant 0 : i32
    %14 = arith.index_cast %c0_i32 : i32 to index
    %c0_18 = arith.constant 0 : index
    %c0_19 = arith.constant 0 : index
    %15 = vector.load %arg8[%14, %c0_18, %c0_19] : memref<8x2x192xf32, #tpu.memory_space<vmem>>, vector<1x2x192xf32>
    %16 = vector.shape_cast %15 : vector<1x2x192xf32> to vector<2x192xf32>
    %17 = vector.extract_strided_slice %16 {offsets = [0, 0], sizes = [2, 96], strides = [1, 1]} : vector<2x192xf32> to vector<2x96xf32>
    %cst_20 = arith.constant dense<0.000000e+00> : vector<2x96xf32>
    %18 = tpu.matmul %13, %9, %cst_20 {dimension_numbers = #tpu.dot_dimension_numbers<[1], [0], [0], [1], [0, 0, 1, 1], [], []>} : vector<2x32xf32>, vector<32x96xf32>, vector<2x96xf32> -> vector<2x96xf32>
    %19 = vector.extract_strided_slice %17 {offsets = [0, 0], sizes = [2, 64], strides = [1, 1]} : vector<2x96xf32> to vector<2x64xf32>
    %20 = vector.extract_strided_slice %18 {offsets = [0, 0], sizes = [2, 64], strides = [1, 1]} : vector<2x96xf32> to vector<2x64xf32>
    %21 = arith.addf %19, %20 : vector<2x64xf32>
    %22 = arith.negf %21 : vector<2x64xf32>
    %23 = math.exp %22 : vector<2x64xf32>
    %cst_21 = arith.constant 1.000000e+00 : f32
    %24 = vector.broadcast %cst_21 : f32 to vector<2x64xf32>
    %25 = arith.addf %24, %23 : vector<2x64xf32>
    %26 = arith.divf %24, %25 : vector<2x64xf32>
    %27 = vector.extract_strided_slice %26 {offsets = [0, 0], sizes = [2, 32], strides = [1, 1]} : vector<2x64xf32> to vector<2x32xf32>
    %28 = vector.extract_strided_slice %26 {offsets = [0, 32], sizes = [2, 32], strides = [1, 1]} : vector<2x64xf32> to vector<2x32xf32>
    %29 = vector.extract_strided_slice %17 {offsets = [0, 64], sizes = [2, 32], strides = [1, 1]} : vector<2x96xf32> to vector<2x32xf32>
    %30 = vector.extract_strided_slice %18 {offsets = [0, 64], sizes = [2, 32], strides = [1, 1]} : vector<2x96xf32> to vector<2x32xf32>
    %31 = vector.broadcast %10 : vector<1x32xf32> to vector<2x32xf32>
    %32 = arith.addf %30, %31 : vector<2x32xf32>
    %33 = arith.mulf %27, %32 : vector<2x32xf32>
    %34 = arith.addf %29, %33 : vector<2x32xf32>
    %35 = math.tanh %34 : vector<2x32xf32>
    %36 = arith.subf %13, %35 : vector<2x32xf32>
    %37 = arith.mulf %28, %36 : vector<2x32xf32>
    %38 = arith.addf %35, %37 : vector<2x32xf32>
    %39 = arith.index_cast %c0_i32 : i32 to index
    %c0_22 = arith.constant 0 : index
    %c0_23 = arith.constant 0 : index
    %40 = vector.load %arg9[%39, %c0_22, %c0_23] : memref<8x2x32xf32, #tpu.memory_space<vmem>>, vector<1x2x32xf32>
    %41 = vector.shape_cast %40 : vector<1x2x32xf32> to vector<2x32xf32>
    %42 = vector.shape_cast %38 : vector<2x32xf32> to vector<1x2x32xf32>
    tpu.vector_store %arg9[%39, %c0_22, %c0_23], %42 {strides = array<i32>} : memref<8x2x32xf32, #tpu.memory_space<vmem>>, vector<1x2x32xf32>,
    %c1_i32 = arith.constant 1 : i32
    %43 = arith.index_cast %c1_i32 : i32 to index
    %c0_24 = arith.constant 0 : index
    %c0_25 = arith.constant 0 : index
    %44 = vector.load %arg8[%43, %c0_24, %c0_25] : memref<8x2x192xf32, #tpu.memory_space<vmem>>, vector<1x2x192xf32>
    %45 = vector.shape_cast %44 : vector<1x2x192xf32> to vector<2x192xf32>
    %46 = vector.extract_strided_slice %45 {offsets = [0, 0], sizes = [2, 96], strides = [1, 1]} : vector<2x192xf32> to vector<2x96xf32>
    %cst_26 = arith.constant dense<0.000000e+00> : vector<2x96xf32>
    %47 = tpu.matmul %38, %9, %cst_26 {dimension_numbers = #tpu.dot_dimension_numbers<[1], [0], [0], [1], [0, 0, 1, 1], [], []>} : vector<2x32xf32>, vector<32x96xf32>, vector<2x96xf32> -> vector<2x96xf32>
    %48 = vector.extract_strided_slice %46 {offsets = [0, 0], sizes = [2, 64], strides = [1, 1]} : vector<2x96xf32> to vector<2x64xf32>
    %49 = vector.extract_strided_slice %47 {offsets = [0, 0], sizes = [2, 64], strides = [1, 1]} : vector<2x96xf32> to vector<2x64xf32>
    %50 = arith.addf %48, %49 : vector<2x64xf32>
    %51 = arith.negf %50 : vector<2x64xf32>
    %52 = math.exp %51 : vector<2x64xf32>
    %cst_27 = arith.constant 1.000000e+00 : f32
    %53 = vector.broadcast %cst_27 : f32 to vector<2x64xf32>
    %54 = arith.addf %53, %52 : vector<2x64xf32>
    %55 = arith.divf %53, %54 : vector<2x64xf32>
    %56 = vector.extract_strided_slice %55 {offsets = [0, 0], sizes = [2, 32], strides = [1, 1]} : vector<2x64xf32> to vector<2x32xf32>
    %57 = vector.extract_strided_slice %55 {offsets = [0, 32], sizes = [2, 32], strides = [1, 1]} : vector<2x64xf32> to vector<2x32xf32>
    %58 = vector.extract_strided_slice %46 {offsets = [0, 64], sizes = [2, 32], strides = [1, 1]} : vector<2x96xf32> to vector<2x32xf32>
    %59 = vector.extract_strided_slice %47 {offsets = [0, 64], sizes = [2, 32], strides = [1, 1]} : vector<2x96xf32> to vector<2x32xf32>
    %60 = vector.broadcast %10 : vector<1x32xf32> to vector<2x32xf32>
    %61 = arith.addf %59, %60 : vector<2x32xf32>
    %62 = arith.mulf %56, %61 : vector<2x32xf32>
    %63 = arith.addf %58, %62 : vector<2x32xf32>
    %64 = math.tanh %63 : vector<2x32xf32>
    %65 = arith.subf %38, %64 : vector<2x32xf32>
    %66 = arith.mulf %57, %65 : vector<2x32xf32>
    %67 = arith.addf %64, %66 : vector<2x32xf32>
    %68 = arith.index_cast %c1_i32 : i32 to index
    %c0_28 = arith.constant 0 : index
    %c0_29 = arith.constant 0 : index
    %69 = vector.load %arg9[%68, %c0_28, %c0_29] : memref<8x2x32xf32, #tpu.memory_space<vmem>>, vector<1x2x32xf32>
    %70 = vector.shape_cast %69 : vector<1x2x32xf32> to vector<2x32xf32>
    %71 = vector.shape_cast %67 : vector<2x32xf32> to vector<1x2x32xf32>
    tpu.vector_store %arg9[%68, %c0_28, %c0_29], %71 {strides = array<i32>} : memref<8x2x32xf32, #tpu.memory_space<vmem>>, vector<1x2x32xf32>,
    %c2_i32 = arith.constant 2 : i32
    %72 = arith.index_cast %c2_i32 : i32 to index
    %c0_30 = arith.constant 0 : index
    %c0_31 = arith.constant 0 : index
    %73 = vector.load %arg8[%72, %c0_30, %c0_31] : memref<8x2x192xf32, #tpu.memory_space<vmem>>, vector<1x2x192xf32>
    %74 = vector.shape_cast %73 : vector<1x2x192xf32> to vector<2x192xf32>
    %75 = vector.extract_strided_slice %74 {offsets = [0, 0], sizes = [2, 96], strides = [1, 1]} : vector<2x192xf32> to vector<2x96xf32>
    %cst_32 = arith.constant dense<0.000000e+00> : vector<2x96xf32>
    %76 = tpu.matmul %67, %9, %cst_32 {dimension_numbers = #tpu.dot_dimension_numbers<[1], [0], [0], [1], [0, 0, 1, 1], [], []>} : vector<2x32xf32>, vector<32x96xf32>, vector<2x96xf32> -> vector<2x96xf32>
    %77 = vector.extract_strided_slice %75 {offsets = [0, 0], sizes = [2, 64], strides = [1, 1]} : vector<2x96xf32> to vector<2x64xf32>
    %78 = vector.extract_strided_slice %76 {offsets = [0, 0], sizes = [2, 64], strides = [1, 1]} : vector<2x96xf32> to vector<2x64xf32>
    %79 = arith.addf %77, %78 : vector<2x64xf32>
    %80 = arith.negf %79 : vector<2x64xf32>
    %81 = math.exp %80 : vector<2x64xf32>
    %cst_33 = arith.constant 1.000000e+00 : f32
    %82 = vector.broadcast %cst_33 : f32 to vector<2x64xf32>
    %83 = arith.addf %82, %81 : vector<2x64xf32>
    %84 = arith.divf %82, %83 : vector<2x64xf32>
    %85 = vector.extract_strided_slice %84 {offsets = [0, 0], sizes = [2, 32], strides = [1, 1]} : vector<2x64xf32> to vector<2x32xf32>
    %86 = vector.extract_strided_slice %84 {offsets = [0, 32], sizes = [2, 32], strides = [1, 1]} : vector<2x64xf32> to vector<2x32xf32>
    %87 = vector.extract_strided_slice %75 {offsets = [0, 64], sizes = [2, 32], strides = [1, 1]} : vector<2x96xf32> to vector<2x32xf32>
    %88 = vector.extract_strided_slice %76 {offsets = [0, 64], sizes = [2, 32], strides = [1, 1]} : vector<2x96xf32> to vector<2x32xf32>
    %89 = vector.broadcast %10 : vector<1x32xf32> to vector<2x32xf32>
    %90 = arith.addf %88, %89 : vector<2x32xf32>
    %91 = arith.mulf %85, %90 : vector<2x32xf32>
    %92 = arith.addf %87, %91 : vector<2x32xf32>
    %93 = math.tanh %92 : vector<2x32xf32>
    %94 = arith.subf %67, %93 : vector<2x32xf32>
    %95 = arith.mulf %86, %94 : vector<2x32xf32>
    %96 = arith.addf %93, %95 : vector<2x32xf32>
    %97 = arith.index_cast %c2_i32 : i32 to index
    %c0_34 = arith.constant 0 : index
    %c0_35 = arith.constant 0 : index
    %98 = vector.load %arg9[%97, %c0_34, %c0_35] : memref<8x2x32xf32, #tpu.memory_space<vmem>>, vector<1x2x32xf32>
    %99 = vector.shape_cast %98 : vector<1x2x32xf32> to vector<2x32xf32>
    %100 = vector.shape_cast %96 : vector<2x32xf32> to vector<1x2x32xf32>
    tpu.vector_store %arg9[%97, %c0_34, %c0_35], %100 {strides = array<i32>} : memref<8x2x32xf32, #tpu.memory_space<vmem>>, vector<1x2x32xf32>,
    %c3_i32 = arith.constant 3 : i32
    %101 = arith.index_cast %c3_i32 : i32 to index
    %c0_36 = arith.constant 0 : index
    %c0_37 = arith.constant 0 : index
    %102 = vector.load %arg8[%101, %c0_36, %c0_37] : memref<8x2x192xf32, #tpu.memory_space<vmem>>, vector<1x2x192xf32>
    %103 = vector.shape_cast %102 : vector<1x2x192xf32> to vector<2x192xf32>
    %104 = vector.extract_strided_slice %103 {offsets = [0, 0], sizes = [2, 96], strides = [1, 1]} : vector<2x192xf32> to vector<2x96xf32>
    %cst_38 = arith.constant dense<0.000000e+00> : vector<2x96xf32>
    %105 = tpu.matmul %96, %9, %cst_38 {dimension_numbers = #tpu.dot_dimension_numbers<[1], [0], [0], [1], [0, 0, 1, 1], [], []>} : vector<2x32xf32>, vector<32x96xf32>, vector<2x96xf32> -> vector<2x96xf32>
    %106 = vector.extract_strided_slice %104 {offsets = [0, 0], sizes = [2, 64], strides = [1, 1]} : vector<2x96xf32> to vector<2x64xf32>
    %107 = vector.extract_strided_slice %105 {offsets = [0, 0], sizes = [2, 64], strides = [1, 1]} : vector<2x96xf32> to vector<2x64xf32>
    %108 = arith.addf %106, %107 : vector<2x64xf32>
    %109 = arith.negf %108 : vector<2x64xf32>
    %110 = math.exp %109 : vector<2x64xf32>
    %cst_39 = arith.constant 1.000000e+00 : f32
    %111 = vector.broadcast %cst_39 : f32 to vector<2x64xf32>
    %112 = arith.addf %111, %110 : vector<2x64xf32>
    %113 = arith.divf %111, %112 : vector<2x64xf32>
    %114 = vector.extract_strided_slice %113 {offsets = [0, 0], sizes = [2, 32], strides = [1, 1]} : vector<2x64xf32> to vector<2x32xf32>
    %115 = vector.extract_strided_slice %113 {offsets = [0, 32], sizes = [2, 32], strides = [1, 1]} : vector<2x64xf32> to vector<2x32xf32>
    %116 = vector.extract_strided_slice %104 {offsets = [0, 64], sizes = [2, 32], strides = [1, 1]} : vector<2x96xf32> to vector<2x32xf32>
    %117 = vector.extract_strided_slice %105 {offsets = [0, 64], sizes = [2, 32], strides = [1, 1]} : vector<2x96xf32> to vector<2x32xf32>
    %118 = vector.broadcast %10 : vector<1x32xf32> to vector<2x32xf32>
    %119 = arith.addf %117, %118 : vector<2x32xf32>
    %120 = arith.mulf %114, %119 : vector<2x32xf32>
    %121 = arith.addf %116, %120 : vector<2x32xf32>
    %122 = math.tanh %121 : vector<2x32xf32>
    %123 = arith.subf %96, %122 : vector<2x32xf32>
    %124 = arith.mulf %115, %123 : vector<2x32xf32>
    %125 = arith.addf %122, %124 : vector<2x32xf32>
    %126 = arith.index_cast %c3_i32 : i32 to index
    %c0_40 = arith.constant 0 : index
    %c0_41 = arith.constant 0 : index
    %127 = vector.load %arg9[%126, %c0_40, %c0_41] : memref<8x2x32xf32, #tpu.memory_space<vmem>>, vector<1x2x32xf32>
    %128 = vector.shape_cast %127 : vector<1x2x32xf32> to vector<2x32xf32>
    %129 = vector.shape_cast %125 : vector<2x32xf32> to vector<1x2x32xf32>
    tpu.vector_store %arg9[%126, %c0_40, %c0_41], %129 {strides = array<i32>} : memref<8x2x32xf32, #tpu.memory_space<vmem>>, vector<1x2x32xf32>,
    %c4_i32 = arith.constant 4 : i32
    %130 = arith.index_cast %c4_i32 : i32 to index
    %c0_42 = arith.constant 0 : index
    %c0_43 = arith.constant 0 : index
    %131 = vector.load %arg8[%130, %c0_42, %c0_43] : memref<8x2x192xf32, #tpu.memory_space<vmem>>, vector<1x2x192xf32>
    %132 = vector.shape_cast %131 : vector<1x2x192xf32> to vector<2x192xf32>
    %133 = vector.extract_strided_slice %132 {offsets = [0, 0], sizes = [2, 96], strides = [1, 1]} : vector<2x192xf32> to vector<2x96xf32>
    %cst_44 = arith.constant dense<0.000000e+00> : vector<2x96xf32>
    %134 = tpu.matmul %125, %9, %cst_44 {dimension_numbers = #tpu.dot_dimension_numbers<[1], [0], [0], [1], [0, 0, 1, 1], [], []>} : vector<2x32xf32>, vector<32x96xf32>, vector<2x96xf32> -> vector<2x96xf32>
    %135 = vector.extract_strided_slice %133 {offsets = [0, 0], sizes = [2, 64], strides = [1, 1]} : vector<2x96xf32> to vector<2x64xf32>
    %136 = vector.extract_strided_slice %134 {offsets = [0, 0], sizes = [2, 64], strides = [1, 1]} : vector<2x96xf32> to vector<2x64xf32>
    %137 = arith.addf %135, %136 : vector<2x64xf32>
    %138 = arith.negf %137 : vector<2x64xf32>
    %139 = math.exp %138 : vector<2x64xf32>
    %cst_45 = arith.constant 1.000000e+00 : f32
    %140 = vector.broadcast %cst_45 : f32 to vector<2x64xf32>
    %141 = arith.addf %140, %139 : vector<2x64xf32>
    %142 = arith.divf %140, %141 : vector<2x64xf32>
    %143 = vector.extract_strided_slice %142 {offsets = [0, 0], sizes = [2, 32], strides = [1, 1]} : vector<2x64xf32> to vector<2x32xf32>
    %144 = vector.extract_strided_slice %142 {offsets = [0, 32], sizes = [2, 32], strides = [1, 1]} : vector<2x64xf32> to vector<2x32xf32>
    %145 = vector.extract_strided_slice %133 {offsets = [0, 64], sizes = [2, 32], strides = [1, 1]} : vector<2x96xf32> to vector<2x32xf32>
    %146 = vector.extract_strided_slice %134 {offsets = [0, 64], sizes = [2, 32], strides = [1, 1]} : vector<2x96xf32> to vector<2x32xf32>
    %147 = vector.broadcast %10 : vector<1x32xf32> to vector<2x32xf32>
    %148 = arith.addf %146, %147 : vector<2x32xf32>
    %149 = arith.mulf %143, %148 : vector<2x32xf32>
    %150 = arith.addf %145, %149 : vector<2x32xf32>
    %151 = math.tanh %150 : vector<2x32xf32>
    %152 = arith.subf %125, %151 : vector<2x32xf32>
    %153 = arith.mulf %144, %152 : vector<2x32xf32>
    %154 = arith.addf %151, %153 : vector<2x32xf32>
    %155 = arith.index_cast %c4_i32 : i32 to index
    %c0_46 = arith.constant 0 : index
    %c0_47 = arith.constant 0 : index
    %156 = vector.load %arg9[%155, %c0_46, %c0_47] : memref<8x2x32xf32, #tpu.memory_space<vmem>>, vector<1x2x32xf32>
    %157 = vector.shape_cast %156 : vector<1x2x32xf32> to vector<2x32xf32>
    %158 = vector.shape_cast %154 : vector<2x32xf32> to vector<1x2x32xf32>
    tpu.vector_store %arg9[%155, %c0_46, %c0_47], %158 {strides = array<i32>} : memref<8x2x32xf32, #tpu.memory_space<vmem>>, vector<1x2x32xf32>,
    %c5_i32 = arith.constant 5 : i32
    %159 = arith.index_cast %c5_i32 : i32 to index
    %c0_48 = arith.constant 0 : index
    %c0_49 = arith.constant 0 : index
    %160 = vector.load %arg8[%159, %c0_48, %c0_49] : memref<8x2x192xf32, #tpu.memory_space<vmem>>, vector<1x2x192xf32>
    %161 = vector.shape_cast %160 : vector<1x2x192xf32> to vector<2x192xf32>
    %162 = vector.extract_strided_slice %161 {offsets = [0, 0], sizes = [2, 96], strides = [1, 1]} : vector<2x192xf32> to vector<2x96xf32>
    %cst_50 = arith.constant dense<0.000000e+00> : vector<2x96xf32>
    %163 = tpu.matmul %154, %9, %cst_50 {dimension_numbers = #tpu.dot_dimension_numbers<[1], [0], [0], [1], [0, 0, 1, 1], [], []>} : vector<2x32xf32>, vector<32x96xf32>, vector<2x96xf32> -> vector<2x96xf32>
    %164 = vector.extract_strided_slice %162 {offsets = [0, 0], sizes = [2, 64], strides = [1, 1]} : vector<2x96xf32> to vector<2x64xf32>
    %165 = vector.extract_strided_slice %163 {offsets = [0, 0], sizes = [2, 64], strides = [1, 1]} : vector<2x96xf32> to vector<2x64xf32>
    %166 = arith.addf %164, %165 : vector<2x64xf32>
    %167 = arith.negf %166 : vector<2x64xf32>
    %168 = math.exp %167 : vector<2x64xf32>
    %cst_51 = arith.constant 1.000000e+00 : f32
    %169 = vector.broadcast %cst_51 : f32 to vector<2x64xf32>
    %170 = arith.addf %169, %168 : vector<2x64xf32>
    %171 = arith.divf %169, %170 : vector<2x64xf32>
    %172 = vector.extract_strided_slice %171 {offsets = [0, 0], sizes = [2, 32], strides = [1, 1]} : vector<2x64xf32> to vector<2x32xf32>
    %173 = vector.extract_strided_slice %171 {offsets = [0, 32], sizes = [2, 32], strides = [1, 1]} : vector<2x64xf32> to vector<2x32xf32>
    %174 = vector.extract_strided_slice %162 {offsets = [0, 64], sizes = [2, 32], strides = [1, 1]} : vector<2x96xf32> to vector<2x32xf32>
    %175 = vector.extract_strided_slice %163 {offsets = [0, 64], sizes = [2, 32], strides = [1, 1]} : vector<2x96xf32> to vector<2x32xf32>
    %176 = vector.broadcast %10 : vector<1x32xf32> to vector<2x32xf32>
    %177 = arith.addf %175, %176 : vector<2x32xf32>
    %178 = arith.mulf %172, %177 : vector<2x32xf32>
    %179 = arith.addf %174, %178 : vector<2x32xf32>
    %180 = math.tanh %179 : vector<2x32xf32>
    %181 = arith.subf %154, %180 : vector<2x32xf32>
    %182 = arith.mulf %173, %181 : vector<2x32xf32>
    %183 = arith.addf %180, %182 : vector<2x32xf32>
    %184 = arith.index_cast %c5_i32 : i32 to index
    %c0_52 = arith.constant 0 : index
    %c0_53 = arith.constant 0 : index
    %185 = vector.load %arg9[%184, %c0_52, %c0_53] : memref<8x2x32xf32, #tpu.memory_space<vmem>>, vector<1x2x32xf32>
    %186 = vector.shape_cast %185 : vector<1x2x32xf32> to vector<2x32xf32>
    %187 = vector.shape_cast %183 : vector<2x32xf32> to vector<1x2x32xf32>
    tpu.vector_store %arg9[%184, %c0_52, %c0_53], %187 {strides = array<i32>} : memref<8x2x32xf32, #tpu.memory_space<vmem>>, vector<1x2x32xf32>,
    %c6_i32 = arith.constant 6 : i32
    %188 = arith.index_cast %c6_i32 : i32 to index
    %c0_54 = arith.constant 0 : index
    %c0_55 = arith.constant 0 : index
    %189 = vector.load %arg8[%188, %c0_54, %c0_55] : memref<8x2x192xf32, #tpu.memory_space<vmem>>, vector<1x2x192xf32>
    %190 = vector.shape_cast %189 : vector<1x2x192xf32> to vector<2x192xf32>
    %191 = vector.extract_strided_slice %190 {offsets = [0, 0], sizes = [2, 96], strides = [1, 1]} : vector<2x192xf32> to vector<2x96xf32>
    %cst_56 = arith.constant dense<0.000000e+00> : vector<2x96xf32>
    %192 = tpu.matmul %183, %9, %cst_56 {dimension_numbers = #tpu.dot_dimension_numbers<[1], [0], [0], [1], [0, 0, 1, 1], [], []>} : vector<2x32xf32>, vector<32x96xf32>, vector<2x96xf32> -> vector<2x96xf32>
    %193 = vector.extract_strided_slice %191 {offsets = [0, 0], sizes = [2, 64], strides = [1, 1]} : vector<2x96xf32> to vector<2x64xf32>
    %194 = vector.extract_strided_slice %192 {offsets = [0, 0], sizes = [2, 64], strides = [1, 1]} : vector<2x96xf32> to vector<2x64xf32>
    %195 = arith.addf %193, %194 : vector<2x64xf32>
    %196 = arith.negf %195 : vector<2x64xf32>
    %197 = math.exp %196 : vector<2x64xf32>
    %cst_57 = arith.constant 1.000000e+00 : f32
    %198 = vector.broadcast %cst_57 : f32 to vector<2x64xf32>
    %199 = arith.addf %198, %197 : vector<2x64xf32>
    %200 = arith.divf %198, %199 : vector<2x64xf32>
    %201 = vector.extract_strided_slice %200 {offsets = [0, 0], sizes = [2, 32], strides = [1, 1]} : vector<2x64xf32> to vector<2x32xf32>
    %202 = vector.extract_strided_slice %200 {offsets = [0, 32], sizes = [2, 32], strides = [1, 1]} : vector<2x64xf32> to vector<2x32xf32>
    %203 = vector.extract_strided_slice %191 {offsets = [0, 64], sizes = [2, 32], strides = [1, 1]} : vector<2x96xf32> to vector<2x32xf32>
    %204 = vector.extract_strided_slice %192 {offsets = [0, 64], sizes = [2, 32], strides = [1, 1]} : vector<2x96xf32> to vector<2x32xf32>
    %205 = vector.broadcast %10 : vector<1x32xf32> to vector<2x32xf32>
    %206 = arith.addf %204, %205 : vector<2x32xf32>
    %207 = arith.mulf %201, %206 : vector<2x32xf32>
    %208 = arith.addf %203, %207 : vector<2x32xf32>
    %209 = math.tanh %208 : vector<2x32xf32>
    %210 = arith.subf %183, %209 : vector<2x32xf32>
    %211 = arith.mulf %202, %210 : vector<2x32xf32>
    %212 = arith.addf %209, %211 : vector<2x32xf32>
    %213 = arith.index_cast %c6_i32 : i32 to index
    %c0_58 = arith.constant 0 : index
    %c0_59 = arith.constant 0 : index
    %214 = vector.load %arg9[%213, %c0_58, %c0_59] : memref<8x2x32xf32, #tpu.memory_space<vmem>>, vector<1x2x32xf32>
    %215 = vector.shape_cast %214 : vector<1x2x32xf32> to vector<2x32xf32>
    %216 = vector.shape_cast %212 : vector<2x32xf32> to vector<1x2x32xf32>
    tpu.vector_store %arg9[%213, %c0_58, %c0_59], %216 {strides = array<i32>} : memref<8x2x32xf32, #tpu.memory_space<vmem>>, vector<1x2x32xf32>,
    %c7_i32 = arith.constant 7 : i32
    %217 = arith.index_cast %c7_i32 : i32 to index
    %c0_60 = arith.constant 0 : index
    %c0_61 = arith.constant 0 : index
    %218 = vector.load %arg8[%217, %c0_60, %c0_61] : memref<8x2x192xf32, #tpu.memory_space<vmem>>, vector<1x2x192xf32>
    %219 = vector.shape_cast %218 : vector<1x2x192xf32> to vector<2x192xf32>
    %220 = vector.extract_strided_slice %219 {offsets = [0, 0], sizes = [2, 96], strides = [1, 1]} : vector<2x192xf32> to vector<2x96xf32>
    %cst_62 = arith.constant dense<0.000000e+00> : vector<2x96xf32>
    %221 = tpu.matmul %212, %9, %cst_62 {dimension_numbers = #tpu.dot_dimension_numbers<[1], [0], [0], [1], [0, 0, 1, 1], [], []>} : vector<2x32xf32>, vector<32x96xf32>, vector<2x96xf32> -> vector<2x96xf32>
    %222 = vector.extract_strided_slice %220 {offsets = [0, 0], sizes = [2, 64], strides = [1, 1]} : vector<2x96xf32> to vector<2x64xf32>
    %223 = vector.extract_strided_slice %221 {offsets = [0, 0], sizes = [2, 64], strides = [1, 1]} : vector<2x96xf32> to vector<2x64xf32>
    %224 = arith.addf %222, %223 : vector<2x64xf32>
    %225 = arith.negf %224 : vector<2x64xf32>
    %226 = math.exp %225 : vector<2x64xf32>
    %cst_63 = arith.constant 1.000000e+00 : f32
    %227 = vector.broadcast %cst_63 : f32 to vector<2x64xf32>
    %228 = arith.addf %227, %226 : vector<2x64xf32>
    %229 = arith.divf %227, %228 : vector<2x64xf32>
    %230 = vector.extract_strided_slice %229 {offsets = [0, 0], sizes = [2, 32], strides = [1, 1]} : vector<2x64xf32> to vector<2x32xf32>
    %231 = vector.extract_strided_slice %229 {offsets = [0, 32], sizes = [2, 32], strides = [1, 1]} : vector<2x64xf32> to vector<2x32xf32>
    %232 = vector.extract_strided_slice %220 {offsets = [0, 64], sizes = [2, 32], strides = [1, 1]} : vector<2x96xf32> to vector<2x32xf32>
    %233 = vector.extract_strided_slice %221 {offsets = [0, 64], sizes = [2, 32], strides = [1, 1]} : vector<2x96xf32> to vector<2x32xf32>
    %234 = vector.broadcast %10 : vector<1x32xf32> to vector<2x32xf32>
    %235 = arith.addf %233, %234 : vector<2x32xf32>
    %236 = arith.mulf %230, %235 : vector<2x32xf32>
    %237 = arith.addf %232, %236 : vector<2x32xf32>
    %238 = math.tanh %237 : vector<2x32xf32>
    %239 = arith.subf %212, %238 : vector<2x32xf32>
    %240 = arith.mulf %231, %239 : vector<2x32xf32>
    %241 = arith.addf %238, %240 : vector<2x32xf32>
    %242 = arith.index_cast %c7_i32 : i32 to index
    %c0_64 = arith.constant 0 : index
    %c0_65 = arith.constant 0 : index
    %243 = vector.load %arg9[%242, %c0_64, %c0_65] : memref<8x2x32xf32, #tpu.memory_space<vmem>>, vector<1x2x32xf32>
    %244 = vector.shape_cast %243 : vector<1x2x32xf32> to vector<2x32xf32>
    %245 = vector.shape_cast %241 : vector<2x32xf32> to vector<1x2x32xf32>
    tpu.vector_store %arg9[%242, %c0_64, %c0_65], %245 {strides = array<i32>} : memref<8x2x32xf32, #tpu.memory_space<vmem>>, vector<1x2x32xf32>,
    %c8_i32 = arith.constant 8 : i32
    %c0_i32_66 = arith.constant 0 : i32
    %c7_i32_67 = arith.constant 7 : i32
    %246 = arith.subi %c7_i32_67, %c0_i32_66 : i32
    %247 = arith.index_cast %246 : i32 to index
    %c0_68 = arith.constant 0 : index
    %c0_69 = arith.constant 0 : index
    %248 = vector.load %arg8[%247, %c0_68, %c0_69] : memref<8x2x192xf32, #tpu.memory_space<vmem>>, vector<1x2x192xf32>
    %249 = vector.shape_cast %248 : vector<1x2x192xf32> to vector<2x192xf32>
    %250 = vector.extract_strided_slice %249 {offsets = [0, 96], sizes = [2, 96], strides = [1, 1]} : vector<2x192xf32> to vector<2x96xf32>
    %cst_70 = arith.constant dense<0.000000e+00> : vector<2x96xf32>
    %251 = tpu.matmul %13, %11, %cst_70 {dimension_numbers = #tpu.dot_dimension_numbers<[1], [0], [0], [1], [0, 0, 1, 1], [], []>} : vector<2x32xf32>, vector<32x96xf32>, vector<2x96xf32> -> vector<2x96xf32>
    %252 = vector.extract_strided_slice %250 {offsets = [0, 0], sizes = [2, 64], strides = [1, 1]} : vector<2x96xf32> to vector<2x64xf32>
    %253 = vector.extract_strided_slice %251 {offsets = [0, 0], sizes = [2, 64], strides = [1, 1]} : vector<2x96xf32> to vector<2x64xf32>
    %254 = arith.addf %252, %253 : vector<2x64xf32>
    %255 = arith.negf %254 : vector<2x64xf32>
    %256 = math.exp %255 : vector<2x64xf32>
    %cst_71 = arith.constant 1.000000e+00 : f32
    %257 = vector.broadcast %cst_71 : f32 to vector<2x64xf32>
    %258 = arith.addf %257, %256 : vector<2x64xf32>
    %259 = arith.divf %257, %258 : vector<2x64xf32>
    %260 = vector.extract_strided_slice %259 {offsets = [0, 0], sizes = [2, 32], strides = [1, 1]} : vector<2x64xf32> to vector<2x32xf32>
    %261 = vector.extract_strided_slice %259 {offsets = [0, 32], sizes = [2, 32], strides = [1, 1]} : vector<2x64xf32> to vector<2x32xf32>
    %262 = vector.extract_strided_slice %250 {offsets = [0, 64], sizes = [2, 32], strides = [1, 1]} : vector<2x96xf32> to vector<2x32xf32>
    %263 = vector.extract_strided_slice %251 {offsets = [0, 64], sizes = [2, 32], strides = [1, 1]} : vector<2x96xf32> to vector<2x32xf32>
    %264 = vector.broadcast %12 : vector<1x32xf32> to vector<2x32xf32>
    %265 = arith.addf %263, %264 : vector<2x32xf32>
    %266 = arith.mulf %260, %265 : vector<2x32xf32>
    %267 = arith.addf %262, %266 : vector<2x32xf32>
    %268 = math.tanh %267 : vector<2x32xf32>
    %269 = arith.subf %13, %268 : vector<2x32xf32>
    %270 = arith.mulf %261, %269 : vector<2x32xf32>
    %271 = arith.addf %268, %270 : vector<2x32xf32>
    %272 = arith.index_cast %246 : i32 to index
    %c0_72 = arith.constant 0 : index
    %c0_73 = arith.constant 0 : index
    %273 = vector.load %arg9[%272, %c0_72, %c0_73] : memref<8x2x32xf32, #tpu.memory_space<vmem>>, vector<1x2x32xf32>
    %274 = vector.shape_cast %273 : vector<1x2x32xf32> to vector<2x32xf32>
    %275 = arith.addf %274, %271 : vector<2x32xf32>
    %276 = arith.index_cast %246 : i32 to index
    %c0_74 = arith.constant 0 : index
    %c0_75 = arith.constant 0 : index
    %277 = vector.load %arg7[%276, %c0_74, %c0_75] : memref<8x2x32xf32, #tpu.memory_space<vmem>>, vector<1x2x32xf32>
    %278 = vector.shape_cast %277 : vector<1x2x32xf32> to vector<2x32xf32>
    %279 = vector.shape_cast %275 : vector<2x32xf32> to vector<1x2x32xf32>
    tpu.vector_store %arg7[%276, %c0_74, %c0_75], %279 {strides = array<i32>} : memref<8x2x32xf32, #tpu.memory_space<vmem>>, vector<1x2x32xf32>,
    %c1_i32_76 = arith.constant 1 : i32
    %c7_i32_77 = arith.constant 7 : i32
    %280 = arith.subi %c7_i32_77, %c1_i32_76 : i32
    %281 = arith.index_cast %280 : i32 to index
    %c0_78 = arith.constant 0 : index
    %c0_79 = arith.constant 0 : index
    %282 = vector.load %arg8[%281, %c0_78, %c0_79] : memref<8x2x192xf32, #tpu.memory_space<vmem>>, vector<1x2x192xf32>
    %283 = vector.shape_cast %282 : vector<1x2x192xf32> to vector<2x192xf32>
    %284 = vector.extract_strided_slice %283 {offsets = [0, 96], sizes = [2, 96], strides = [1, 1]} : vector<2x192xf32> to vector<2x96xf32>
    %cst_80 = arith.constant dense<0.000000e+00> : vector<2x96xf32>
    %285 = tpu.matmul %271, %11, %cst_80 {dimension_numbers = #tpu.dot_dimension_numbers<[1], [0], [0], [1], [0, 0, 1, 1], [], []>} : vector<2x32xf32>, vector<32x96xf32>, vector<2x96xf32> -> vector<2x96xf32>
    %286 = vector.extract_strided_slice %284 {offsets = [0, 0], sizes = [2, 64], strides = [1, 1]} : vector<2x96xf32> to vector<2x64xf32>
    %287 = vector.extract_strided_slice %285 {offsets = [0, 0], sizes = [2, 64], strides = [1, 1]} : vector<2x96xf32> to vector<2x64xf32>
    %288 = arith.addf %286, %287 : vector<2x64xf32>
    %289 = arith.negf %288 : vector<2x64xf32>
    %290 = math.exp %289 : vector<2x64xf32>
    %cst_81 = arith.constant 1.000000e+00 : f32
    %291 = vector.broadcast %cst_81 : f32 to vector<2x64xf32>
    %292 = arith.addf %291, %290 : vector<2x64xf32>
    %293 = arith.divf %291, %292 : vector<2x64xf32>
    %294 = vector.extract_strided_slice %293 {offsets = [0, 0], sizes = [2, 32], strides = [1, 1]} : vector<2x64xf32> to vector<2x32xf32>
    %295 = vector.extract_strided_slice %293 {offsets = [0, 32], sizes = [2, 32], strides = [1, 1]} : vector<2x64xf32> to vector<2x32xf32>
    %296 = vector.extract_strided_slice %284 {offsets = [0, 64], sizes = [2, 32], strides = [1, 1]} : vector<2x96xf32> to vector<2x32xf32>
    %297 = vector.extract_strided_slice %285 {offsets = [0, 64], sizes = [2, 32], strides = [1, 1]} : vector<2x96xf32> to vector<2x32xf32>
    %298 = vector.broadcast %12 : vector<1x32xf32> to vector<2x32xf32>
    %299 = arith.addf %297, %298 : vector<2x32xf32>
    %300 = arith.mulf %294, %299 : vector<2x32xf32>
    %301 = arith.addf %296, %300 : vector<2x32xf32>
    %302 = math.tanh %301 : vector<2x32xf32>
    %303 = arith.subf %271, %302 : vector<2x32xf32>
    %304 = arith.mulf %295, %303 : vector<2x32xf32>
    %305 = arith.addf %302, %304 : vector<2x32xf32>
    %306 = arith.index_cast %280 : i32 to index
    %c0_82 = arith.constant 0 : index
    %c0_83 = arith.constant 0 : index
    %307 = vector.load %arg9[%306, %c0_82, %c0_83] : memref<8x2x32xf32, #tpu.memory_space<vmem>>, vector<1x2x32xf32>
    %308 = vector.shape_cast %307 : vector<1x2x32xf32> to vector<2x32xf32>
    %309 = arith.addf %308, %305 : vector<2x32xf32>
    %310 = arith.index_cast %280 : i32 to index
    %c0_84 = arith.constant 0 : index
    %c0_85 = arith.constant 0 : index
    %311 = vector.load %arg7[%310, %c0_84, %c0_85] : memref<8x2x32xf32, #tpu.memory_space<vmem>>, vector<1x2x32xf32>
    %312 = vector.shape_cast %311 : vector<1x2x32xf32> to vector<2x32xf32>
    %313 = vector.shape_cast %309 : vector<2x32xf32> to vector<1x2x32xf32>
    tpu.vector_store %arg7[%310, %c0_84, %c0_85], %313 {strides = array<i32>} : memref<8x2x32xf32, #tpu.memory_space<vmem>>, vector<1x2x32xf32>,
    %c2_i32_86 = arith.constant 2 : i32
    %c7_i32_87 = arith.constant 7 : i32
    %314 = arith.subi %c7_i32_87, %c2_i32_86 : i32
    %315 = arith.index_cast %314 : i32 to index
    %c0_88 = arith.constant 0 : index
    %c0_89 = arith.constant 0 : index
    %316 = vector.load %arg8[%315, %c0_88, %c0_89] : memref<8x2x192xf32, #tpu.memory_space<vmem>>, vector<1x2x192xf32>
    %317 = vector.shape_cast %316 : vector<1x2x192xf32> to vector<2x192xf32>
    %318 = vector.extract_strided_slice %317 {offsets = [0, 96], sizes = [2, 96], strides = [1, 1]} : vector<2x192xf32> to vector<2x96xf32>
    %cst_90 = arith.constant dense<0.000000e+00> : vector<2x96xf32>
    %319 = tpu.matmul %305, %11, %cst_90 {dimension_numbers = #tpu.dot_dimension_numbers<[1], [0], [0], [1], [0, 0, 1, 1], [], []>} : vector<2x32xf32>, vector<32x96xf32>, vector<2x96xf32> -> vector<2x96xf32>
    %320 = vector.extract_strided_slice %318 {offsets = [0, 0], sizes = [2, 64], strides = [1, 1]} : vector<2x96xf32> to vector<2x64xf32>
    %321 = vector.extract_strided_slice %319 {offsets = [0, 0], sizes = [2, 64], strides = [1, 1]} : vector<2x96xf32> to vector<2x64xf32>
    %322 = arith.addf %320, %321 : vector<2x64xf32>
    %323 = arith.negf %322 : vector<2x64xf32>
    %324 = math.exp %323 : vector<2x64xf32>
    %cst_91 = arith.constant 1.000000e+00 : f32
    %325 = vector.broadcast %cst_91 : f32 to vector<2x64xf32>
    %326 = arith.addf %325, %324 : vector<2x64xf32>
    %327 = arith.divf %325, %326 : vector<2x64xf32>
    %328 = vector.extract_strided_slice %327 {offsets = [0, 0], sizes = [2, 32], strides = [1, 1]} : vector<2x64xf32> to vector<2x32xf32>
    %329 = vector.extract_strided_slice %327 {offsets = [0, 32], sizes = [2, 32], strides = [1, 1]} : vector<2x64xf32> to vector<2x32xf32>
    %330 = vector.extract_strided_slice %318 {offsets = [0, 64], sizes = [2, 32], strides = [1, 1]} : vector<2x96xf32> to vector<2x32xf32>
    %331 = vector.extract_strided_slice %319 {offsets = [0, 64], sizes = [2, 32], strides = [1, 1]} : vector<2x96xf32> to vector<2x32xf32>
    %332 = vector.broadcast %12 : vector<1x32xf32> to vector<2x32xf32>
    %333 = arith.addf %331, %332 : vector<2x32xf32>
    %334 = arith.mulf %328, %333 : vector<2x32xf32>
    %335 = arith.addf %330, %334 : vector<2x32xf32>
    %336 = math.tanh %335 : vector<2x32xf32>
    %337 = arith.subf %305, %336 : vector<2x32xf32>
    %338 = arith.mulf %329, %337 : vector<2x32xf32>
    %339 = arith.addf %336, %338 : vector<2x32xf32>
    %340 = arith.index_cast %314 : i32 to index
    %c0_92 = arith.constant 0 : index
    %c0_93 = arith.constant 0 : index
    %341 = vector.load %arg9[%340, %c0_92, %c0_93] : memref<8x2x32xf32, #tpu.memory_space<vmem>>, vector<1x2x32xf32>
    %342 = vector.shape_cast %341 : vector<1x2x32xf32> to vector<2x32xf32>
    %343 = arith.addf %342, %339 : vector<2x32xf32>
    %344 = arith.index_cast %314 : i32 to index
    %c0_94 = arith.constant 0 : index
    %c0_95 = arith.constant 0 : index
    %345 = vector.load %arg7[%344, %c0_94, %c0_95] : memref<8x2x32xf32, #tpu.memory_space<vmem>>, vector<1x2x32xf32>
    %346 = vector.shape_cast %345 : vector<1x2x32xf32> to vector<2x32xf32>
    %347 = vector.shape_cast %343 : vector<2x32xf32> to vector<1x2x32xf32>
    tpu.vector_store %arg7[%344, %c0_94, %c0_95], %347 {strides = array<i32>} : memref<8x2x32xf32, #tpu.memory_space<vmem>>, vector<1x2x32xf32>,
    %c3_i32_96 = arith.constant 3 : i32
    %c7_i32_97 = arith.constant 7 : i32
    %348 = arith.subi %c7_i32_97, %c3_i32_96 : i32
    %349 = arith.index_cast %348 : i32 to index
    %c0_98 = arith.constant 0 : index
    %c0_99 = arith.constant 0 : index
    %350 = vector.load %arg8[%349, %c0_98, %c0_99] : memref<8x2x192xf32, #tpu.memory_space<vmem>>, vector<1x2x192xf32>
    %351 = vector.shape_cast %350 : vector<1x2x192xf32> to vector<2x192xf32>
    %352 = vector.extract_strided_slice %351 {offsets = [0, 96], sizes = [2, 96], strides = [1, 1]} : vector<2x192xf32> to vector<2x96xf32>
    %cst_100 = arith.constant dense<0.000000e+00> : vector<2x96xf32>
    %353 = tpu.matmul %339, %11, %cst_100 {dimension_numbers = #tpu.dot_dimension_numbers<[1], [0], [0], [1], [0, 0, 1, 1], [], []>} : vector<2x32xf32>, vector<32x96xf32>, vector<2x96xf32> -> vector<2x96xf32>
    %354 = vector.extract_strided_slice %352 {offsets = [0, 0], sizes = [2, 64], strides = [1, 1]} : vector<2x96xf32> to vector<2x64xf32>
    %355 = vector.extract_strided_slice %353 {offsets = [0, 0], sizes = [2, 64], strides = [1, 1]} : vector<2x96xf32> to vector<2x64xf32>
    %356 = arith.addf %354, %355 : vector<2x64xf32>
    %357 = arith.negf %356 : vector<2x64xf32>
    %358 = math.exp %357 : vector<2x64xf32>
    %cst_101 = arith.constant 1.000000e+00 : f32
    %359 = vector.broadcast %cst_101 : f32 to vector<2x64xf32>
    %360 = arith.addf %359, %358 : vector<2x64xf32>
    %361 = arith.divf %359, %360 : vector<2x64xf32>
    %362 = vector.extract_strided_slice %361 {offsets = [0, 0], sizes = [2, 32], strides = [1, 1]} : vector<2x64xf32> to vector<2x32xf32>
    %363 = vector.extract_strided_slice %361 {offsets = [0, 32], sizes = [2, 32], strides = [1, 1]} : vector<2x64xf32> to vector<2x32xf32>
    %364 = vector.extract_strided_slice %352 {offsets = [0, 64], sizes = [2, 32], strides = [1, 1]} : vector<2x96xf32> to vector<2x32xf32>
    %365 = vector.extract_strided_slice %353 {offsets = [0, 64], sizes = [2, 32], strides = [1, 1]} : vector<2x96xf32> to vector<2x32xf32>
    %366 = vector.broadcast %12 : vector<1x32xf32> to vector<2x32xf32>
    %367 = arith.addf %365, %366 : vector<2x32xf32>
    %368 = arith.mulf %362, %367 : vector<2x32xf32>
    %369 = arith.addf %364, %368 : vector<2x32xf32>
    %370 = math.tanh %369 : vector<2x32xf32>
    %371 = arith.subf %339, %370 : vector<2x32xf32>
    %372 = arith.mulf %363, %371 : vector<2x32xf32>
    %373 = arith.addf %370, %372 : vector<2x32xf32>
    %374 = arith.index_cast %348 : i32 to index
    %c0_102 = arith.constant 0 : index
    %c0_103 = arith.constant 0 : index
    %375 = vector.load %arg9[%374, %c0_102, %c0_103] : memref<8x2x32xf32, #tpu.memory_space<vmem>>, vector<1x2x32xf32>
    %376 = vector.shape_cast %375 : vector<1x2x32xf32> to vector<2x32xf32>
    %377 = arith.addf %376, %373 : vector<2x32xf32>
    %378 = arith.index_cast %348 : i32 to index
    %c0_104 = arith.constant 0 : index
    %c0_105 = arith.constant 0 : index
    %379 = vector.load %arg7[%378, %c0_104, %c0_105] : memref<8x2x32xf32, #tpu.memory_space<vmem>>, vector<1x2x32xf32>
    %380 = vector.shape_cast %379 : vector<1x2x32xf32> to vector<2x32xf32>
    %381 = vector.shape_cast %377 : vector<2x32xf32> to vector<1x2x32xf32>
    tpu.vector_store %arg7[%378, %c0_104, %c0_105], %381 {strides = array<i32>} : memref<8x2x32xf32, #tpu.memory_space<vmem>>, vector<1x2x32xf32>,
    %c4_i32_106 = arith.constant 4 : i32
    %c7_i32_107 = arith.constant 7 : i32
    %382 = arith.subi %c7_i32_107, %c4_i32_106 : i32
    %383 = arith.index_cast %382 : i32 to index
    %c0_108 = arith.constant 0 : index
    %c0_109 = arith.constant 0 : index
    %384 = vector.load %arg8[%383, %c0_108, %c0_109] : memref<8x2x192xf32, #tpu.memory_space<vmem>>, vector<1x2x192xf32>
    %385 = vector.shape_cast %384 : vector<1x2x192xf32> to vector<2x192xf32>
    %386 = vector.extract_strided_slice %385 {offsets = [0, 96], sizes = [2, 96], strides = [1, 1]} : vector<2x192xf32> to vector<2x96xf32>
    %cst_110 = arith.constant dense<0.000000e+00> : vector<2x96xf32>
    %387 = tpu.matmul %373, %11, %cst_110 {dimension_numbers = #tpu.dot_dimension_numbers<[1], [0], [0], [1], [0, 0, 1, 1], [], []>} : vector<2x32xf32>, vector<32x96xf32>, vector<2x96xf32> -> vector<2x96xf32>
    %388 = vector.extract_strided_slice %386 {offsets = [0, 0], sizes = [2, 64], strides = [1, 1]} : vector<2x96xf32> to vector<2x64xf32>
    %389 = vector.extract_strided_slice %387 {offsets = [0, 0], sizes = [2, 64], strides = [1, 1]} : vector<2x96xf32> to vector<2x64xf32>
    %390 = arith.addf %388, %389 : vector<2x64xf32>
    %391 = arith.negf %390 : vector<2x64xf32>
    %392 = math.exp %391 : vector<2x64xf32>
    %cst_111 = arith.constant 1.000000e+00 : f32
    %393 = vector.broadcast %cst_111 : f32 to vector<2x64xf32>
    %394 = arith.addf %393, %392 : vector<2x64xf32>
    %395 = arith.divf %393, %394 : vector<2x64xf32>
    %396 = vector.extract_strided_slice %395 {offsets = [0, 0], sizes = [2, 32], strides = [1, 1]} : vector<2x64xf32> to vector<2x32xf32>
    %397 = vector.extract_strided_slice %395 {offsets = [0, 32], sizes = [2, 32], strides = [1, 1]} : vector<2x64xf32> to vector<2x32xf32>
    %398 = vector.extract_strided_slice %386 {offsets = [0, 64], sizes = [2, 32], strides = [1, 1]} : vector<2x96xf32> to vector<2x32xf32>
    %399 = vector.extract_strided_slice %387 {offsets = [0, 64], sizes = [2, 32], strides = [1, 1]} : vector<2x96xf32> to vector<2x32xf32>
    %400 = vector.broadcast %12 : vector<1x32xf32> to vector<2x32xf32>
    %401 = arith.addf %399, %400 : vector<2x32xf32>
    %402 = arith.mulf %396, %401 : vector<2x32xf32>
    %403 = arith.addf %398, %402 : vector<2x32xf32>
    %404 = math.tanh %403 : vector<2x32xf32>
    %405 = arith.subf %373, %404 : vector<2x32xf32>
    %406 = arith.mulf %397, %405 : vector<2x32xf32>
    %407 = arith.addf %404, %406 : vector<2x32xf32>
    %408 = arith.index_cast %382 : i32 to index
    %c0_112 = arith.constant 0 : index
    %c0_113 = arith.constant 0 : index
    %409 = vector.load %arg9[%408, %c0_112, %c0_113] : memref<8x2x32xf32, #tpu.memory_space<vmem>>, vector<1x2x32xf32>
    %410 = vector.shape_cast %409 : vector<1x2x32xf32> to vector<2x32xf32>
    %411 = arith.addf %410, %407 : vector<2x32xf32>
    %412 = arith.index_cast %382 : i32 to index
    %c0_114 = arith.constant 0 : index
    %c0_115 = arith.constant 0 : index
    %413 = vector.load %arg7[%412, %c0_114, %c0_115] : memref<8x2x32xf32, #tpu.memory_space<vmem>>, vector<1x2x32xf32>
    %414 = vector.shape_cast %413 : vector<1x2x32xf32> to vector<2x32xf32>
    %415 = vector.shape_cast %411 : vector<2x32xf32> to vector<1x2x32xf32>
    tpu.vector_store %arg7[%412, %c0_114, %c0_115], %415 {strides = array<i32>} : memref<8x2x32xf32, #tpu.memory_space<vmem>>, vector<1x2x32xf32>,
    %c5_i32_116 = arith.constant 5 : i32
    %c7_i32_117 = arith.constant 7 : i32
    %416 = arith.subi %c7_i32_117, %c5_i32_116 : i32
    %417 = arith.index_cast %416 : i32 to index
    %c0_118 = arith.constant 0 : index
    %c0_119 = arith.constant 0 : index
    %418 = vector.load %arg8[%417, %c0_118, %c0_119] : memref<8x2x192xf32, #tpu.memory_space<vmem>>, vector<1x2x192xf32>
    %419 = vector.shape_cast %418 : vector<1x2x192xf32> to vector<2x192xf32>
    %420 = vector.extract_strided_slice %419 {offsets = [0, 96], sizes = [2, 96], strides = [1, 1]} : vector<2x192xf32> to vector<2x96xf32>
    %cst_120 = arith.constant dense<0.000000e+00> : vector<2x96xf32>
    %421 = tpu.matmul %407, %11, %cst_120 {dimension_numbers = #tpu.dot_dimension_numbers<[1], [0], [0], [1], [0, 0, 1, 1], [], []>} : vector<2x32xf32>, vector<32x96xf32>, vector<2x96xf32> -> vector<2x96xf32>
    %422 = vector.extract_strided_slice %420 {offsets = [0, 0], sizes = [2, 64], strides = [1, 1]} : vector<2x96xf32> to vector<2x64xf32>
    %423 = vector.extract_strided_slice %421 {offsets = [0, 0], sizes = [2, 64], strides = [1, 1]} : vector<2x96xf32> to vector<2x64xf32>
    %424 = arith.addf %422, %423 : vector<2x64xf32>
    %425 = arith.negf %424 : vector<2x64xf32>
    %426 = math.exp %425 : vector<2x64xf32>
    %cst_121 = arith.constant 1.000000e+00 : f32
    %427 = vector.broadcast %cst_121 : f32 to vector<2x64xf32>
    %428 = arith.addf %427, %426 : vector<2x64xf32>
    %429 = arith.divf %427, %428 : vector<2x64xf32>
    %430 = vector.extract_strided_slice %429 {offsets = [0, 0], sizes = [2, 32], strides = [1, 1]} : vector<2x64xf32> to vector<2x32xf32>
    %431 = vector.extract_strided_slice %429 {offsets = [0, 32], sizes = [2, 32], strides = [1, 1]} : vector<2x64xf32> to vector<2x32xf32>
    %432 = vector.extract_strided_slice %420 {offsets = [0, 64], sizes = [2, 32], strides = [1, 1]} : vector<2x96xf32> to vector<2x32xf32>
    %433 = vector.extract_strided_slice %421 {offsets = [0, 64], sizes = [2, 32], strides = [1, 1]} : vector<2x96xf32> to vector<2x32xf32>
    %434 = vector.broadcast %12 : vector<1x32xf32> to vector<2x32xf32>
    %435 = arith.addf %433, %434 : vector<2x32xf32>
    %436 = arith.mulf %430, %435 : vector<2x32xf32>
    %437 = arith.addf %432, %436 : vector<2x32xf32>
    %438 = math.tanh %437 : vector<2x32xf32>
    %439 = arith.subf %407, %438 : vector<2x32xf32>
    %440 = arith.mulf %431, %439 : vector<2x32xf32>
    %441 = arith.addf %438, %440 : vector<2x32xf32>
    %442 = arith.index_cast %416 : i32 to index
    %c0_122 = arith.constant 0 : index
    %c0_123 = arith.constant 0 : index
    %443 = vector.load %arg9[%442, %c0_122, %c0_123] : memref<8x2x32xf32, #tpu.memory_space<vmem>>, vector<1x2x32xf32>
    %444 = vector.shape_cast %443 : vector<1x2x32xf32> to vector<2x32xf32>
    %445 = arith.addf %444, %441 : vector<2x32xf32>
    %446 = arith.index_cast %416 : i32 to index
    %c0_124 = arith.constant 0 : index
    %c0_125 = arith.constant 0 : index
    %447 = vector.load %arg7[%446, %c0_124, %c0_125] : memref<8x2x32xf32, #tpu.memory_space<vmem>>, vector<1x2x32xf32>
    %448 = vector.shape_cast %447 : vector<1x2x32xf32> to vector<2x32xf32>
    %449 = vector.shape_cast %445 : vector<2x32xf32> to vector<1x2x32xf32>
    tpu.vector_store %arg7[%446, %c0_124, %c0_125], %449 {strides = array<i32>} : memref<8x2x32xf32, #tpu.memory_space<vmem>>, vector<1x2x32xf32>,
    %c6_i32_126 = arith.constant 6 : i32
    %c7_i32_127 = arith.constant 7 : i32
    %450 = arith.subi %c7_i32_127, %c6_i32_126 : i32
    %451 = arith.index_cast %450 : i32 to index
    %c0_128 = arith.constant 0 : index
    %c0_129 = arith.constant 0 : index
    %452 = vector.load %arg8[%451, %c0_128, %c0_129] : memref<8x2x192xf32, #tpu.memory_space<vmem>>, vector<1x2x192xf32>
    %453 = vector.shape_cast %452 : vector<1x2x192xf32> to vector<2x192xf32>
    %454 = vector.extract_strided_slice %453 {offsets = [0, 96], sizes = [2, 96], strides = [1, 1]} : vector<2x192xf32> to vector<2x96xf32>
    %cst_130 = arith.constant dense<0.000000e+00> : vector<2x96xf32>
    %455 = tpu.matmul %441, %11, %cst_130 {dimension_numbers = #tpu.dot_dimension_numbers<[1], [0], [0], [1], [0, 0, 1, 1], [], []>} : vector<2x32xf32>, vector<32x96xf32>, vector<2x96xf32> -> vector<2x96xf32>
    %456 = vector.extract_strided_slice %454 {offsets = [0, 0], sizes = [2, 64], strides = [1, 1]} : vector<2x96xf32> to vector<2x64xf32>
    %457 = vector.extract_strided_slice %455 {offsets = [0, 0], sizes = [2, 64], strides = [1, 1]} : vector<2x96xf32> to vector<2x64xf32>
    %458 = arith.addf %456, %457 : vector<2x64xf32>
    %459 = arith.negf %458 : vector<2x64xf32>
    %460 = math.exp %459 : vector<2x64xf32>
    %cst_131 = arith.constant 1.000000e+00 : f32
    %461 = vector.broadcast %cst_131 : f32 to vector<2x64xf32>
    %462 = arith.addf %461, %460 : vector<2x64xf32>
    %463 = arith.divf %461, %462 : vector<2x64xf32>
    %464 = vector.extract_strided_slice %463 {offsets = [0, 0], sizes = [2, 32], strides = [1, 1]} : vector<2x64xf32> to vector<2x32xf32>
    %465 = vector.extract_strided_slice %463 {offsets = [0, 32], sizes = [2, 32], strides = [1, 1]} : vector<2x64xf32> to vector<2x32xf32>
    %466 = vector.extract_strided_slice %454 {offsets = [0, 64], sizes = [2, 32], strides = [1, 1]} : vector<2x96xf32> to vector<2x32xf32>
    %467 = vector.extract_strided_slice %455 {offsets = [0, 64], sizes = [2, 32], strides = [1, 1]} : vector<2x96xf32> to vector<2x32xf32>
    %468 = vector.broadcast %12 : vector<1x32xf32> to vector<2x32xf32>
    %469 = arith.addf %467, %468 : vector<2x32xf32>
    %470 = arith.mulf %464, %469 : vector<2x32xf32>
    %471 = arith.addf %466, %470 : vector<2x32xf32>
    %472 = math.tanh %471 : vector<2x32xf32>
    %473 = arith.subf %441, %472 : vector<2x32xf32>
    %474 = arith.mulf %465, %473 : vector<2x32xf32>
    %475 = arith.addf %472, %474 : vector<2x32xf32>
    %476 = arith.index_cast %450 : i32 to index
    %c0_132 = arith.constant 0 : index
    %c0_133 = arith.constant 0 : index
    %477 = vector.load %arg9[%476, %c0_132, %c0_133] : memref<8x2x32xf32, #tpu.memory_space<vmem>>, vector<1x2x32xf32>
    %478 = vector.shape_cast %477 : vector<1x2x32xf32> to vector<2x32xf32>
    %479 = arith.addf %478, %475 : vector<2x32xf32>
    %480 = arith.index_cast %450 : i32 to index
    %c0_134 = arith.constant 0 : index
    %c0_135 = arith.constant 0 : index
    %481 = vector.load %arg7[%480, %c0_134, %c0_135] : memref<8x2x32xf32, #tpu.memory_space<vmem>>, vector<1x2x32xf32>
    %482 = vector.shape_cast %481 : vector<1x2x32xf32> to vector<2x32xf32>
    %483 = vector.shape_cast %479 : vector<2x32xf32> to vector<1x2x32xf32>
    tpu.vector_store %arg7[%480, %c0_134, %c0_135], %483 {strides = array<i32>} : memref<8x2x32xf32, #tpu.memory_space<vmem>>, vector<1x2x32xf32>,
    %c7_i32_136 = arith.constant 7 : i32
    %c7_i32_137 = arith.constant 7 : i32
    %484 = arith.subi %c7_i32_137, %c7_i32_136 : i32
    %485 = arith.index_cast %484 : i32 to index
    %c0_138 = arith.constant 0 : index
    %c0_139 = arith.constant 0 : index
    %486 = vector.load %arg8[%485, %c0_138, %c0_139] : memref<8x2x192xf32, #tpu.memory_space<vmem>>, vector<1x2x192xf32>
    %487 = vector.shape_cast %486 : vector<1x2x192xf32> to vector<2x192xf32>
    %488 = vector.extract_strided_slice %487 {offsets = [0, 96], sizes = [2, 96], strides = [1, 1]} : vector<2x192xf32> to vector<2x96xf32>
    %cst_140 = arith.constant dense<0.000000e+00> : vector<2x96xf32>
    %489 = tpu.matmul %475, %11, %cst_140 {dimension_numbers = #tpu.dot_dimension_numbers<[1], [0], [0], [1], [0, 0, 1, 1], [], []>} : vector<2x32xf32>, vector<32x96xf32>, vector<2x96xf32> -> vector<2x96xf32>
    %490 = vector.extract_strided_slice %488 {offsets = [0, 0], sizes = [2, 64], strides = [1, 1]} : vector<2x96xf32> to vector<2x64xf32>
    %491 = vector.extract_strided_slice %489 {offsets = [0, 0], sizes = [2, 64], strides = [1, 1]} : vector<2x96xf32> to vector<2x64xf32>
    %492 = arith.addf %490, %491 : vector<2x64xf32>
    %493 = arith.negf %492 : vector<2x64xf32>
    %494 = math.exp %493 : vector<2x64xf32>
    %cst_141 = arith.constant 1.000000e+00 : f32
    %495 = vector.broadcast %cst_141 : f32 to vector<2x64xf32>
    %496 = arith.addf %495, %494 : vector<2x64xf32>
    %497 = arith.divf %495, %496 : vector<2x64xf32>
    %498 = vector.extract_strided_slice %497 {offsets = [0, 0], sizes = [2, 32], strides = [1, 1]} : vector<2x64xf32> to vector<2x32xf32>
    %499 = vector.extract_strided_slice %497 {offsets = [0, 32], sizes = [2, 32], strides = [1, 1]} : vector<2x64xf32> to vector<2x32xf32>
    %500 = vector.extract_strided_slice %488 {offsets = [0, 64], sizes = [2, 32], strides = [1, 1]} : vector<2x96xf32> to vector<2x32xf32>
    %501 = vector.extract_strided_slice %489 {offsets = [0, 64], sizes = [2, 32], strides = [1, 1]} : vector<2x96xf32> to vector<2x32xf32>
    %502 = vector.broadcast %12 : vector<1x32xf32> to vector<2x32xf32>
    %503 = arith.addf %501, %502 : vector<2x32xf32>
    %504 = arith.mulf %498, %503 : vector<2x32xf32>
    %505 = arith.addf %500, %504 : vector<2x32xf32>
    %506 = math.tanh %505 : vector<2x32xf32>
    %507 = arith.subf %475, %506 : vector<2x32xf32>
    %508 = arith.mulf %499, %507 : vector<2x32xf32>
    %509 = arith.addf %506, %508 : vector<2x32xf32>
    %510 = arith.index_cast %484 : i32 to index
    %c0_142 = arith.constant 0 : index
    %c0_143 = arith.constant 0 : index
    %511 = vector.load %arg9[%510, %c0_142, %c0_143] : memref<8x2x32xf32, #tpu.memory_space<vmem>>, vector<1x2x32xf32>
    %512 = vector.shape_cast %511 : vector<1x2x32xf32> to vector<2x32xf32>
    %513 = arith.addf %512, %509 : vector<2x32xf32>
    %514 = arith.index_cast %484 : i32 to index
    %c0_144 = arith.constant 0 : index
    %c0_145 = arith.constant 0 : index
    %515 = vector.load %arg7[%514, %c0_144, %c0_145] : memref<8x2x32xf32, #tpu.memory_space<vmem>>, vector<1x2x32xf32>
    %516 = vector.shape_cast %515 : vector<1x2x32xf32> to vector<2x32xf32>
    %517 = vector.shape_cast %513 : vector<2x32xf32> to vector<1x2x32xf32>
    tpu.vector_store %arg7[%514, %c0_144, %c0_145], %517 {strides = array<i32>} : memref<8x2x32xf32, #tpu.memory_space<vmem>>, vector<1x2x32xf32>,
    %c8_i32_146 = arith.constant 8 : i32
    return
  }
}

</mosaic_0001>

<llo_original>
// kernel: tpu_custom_call.1
$region0: #{tpu_custom_call.1}
  #allocation0 [shape = 'u32[]', space=smem, size = 0x4, offset = 0x4, fixed_abs, tag = 'smem constant byte address 0x4 - core index']
  #allocation1 [shape = 'u32[144,128]{1,0:T(1,128)}', space=vmem, size = 0x12000, scoped, tag = 'internal scratch']
  #allocation2 [shape = 'f32[8,2,192]{2,1,0:T(2,128)}', space=vmem, size = 0x4000, scoped, tag = 'scratch operand']
  #allocation3 [shape = 'f32[8,2,32]{2,1,0:T(2,128)}', space=vmem, size = 0x2000, scoped, tag = 'scratch operand']
  %s0 = inlined_call_operand.hbm [shape: f32[8,2,32], index: 0, kind: input, shape index: {}]
  %s1 = inlined_call_operand.hbm [shape: f32[32,192], index: 1, kind: input, shape index: {}]
  %s2 = inlined_call_operand.vmem [shape: f32[1,192], index: 2, kind: input, shape index: {}]
  %s3 = inlined_call_operand.hbm [shape: f32[32,96], index: 3, kind: input, shape index: {}]
  %s4 = inlined_call_operand.vmem [shape: f32[1,32], index: 4, kind: input, shape index: {}]
  %s5 = inlined_call_operand.hbm [shape: f32[32,96], index: 5, kind: input, shape index: {}]
  %s6 = inlined_call_operand.vmem [shape: f32[1,32], index: 6, kind: input, shape index: {}]
  %s7 = inlined_call_operand.hbm [shape: f32[8,2,32], index: 7, kind: output, shape index: {}]
  %s8 = sld [smem:[#allocation0]]
  $region54: #{tpu_custom_call.1} parent=0
    _
  %s10 = ssub.s32 1, %s8
  %s11 = scalar_select 0, %s10, %s8
  $region1: #{tpu_custom_call.1} parent=0
    #allocation4 [shape = 'u8[8192]{0}', space=vmem, size = 0x2000, scoped, tag = 'input window, operand 0, single buffered']
    #allocation5 [shape = 's32[1]{0}', space=sflag, size = 0x4, scoped, tag = 'scoped memory for tpu_custom_call.1']
    #allocation6 [shape = 's32[1]{0}', space=sflag, size = 0x4, scoped, tag = 'scoped memory for tpu_custom_call.1']
    #allocation7 [shape = 'u8[32768]{0}', space=vmem, size = 0x8000, scoped, tag = 'input window, operand 1, single buffered']
    #allocation8 [shape = 's32[1]{0}', space=sflag, size = 0x4, scoped, tag = 'scoped memory for tpu_custom_call.1']
    #allocation9 [shape = 'u8[16384]{0}', space=vmem, size = 0x4000, scoped, tag = 'input window, operand 3, single buffered']
    #allocation10 [shape = 'u8[16384]{0}', space=vmem, size = 0x4000, scoped, tag = 'input window, operand 5, single buffered']
    #allocation11 [shape = 's32[1]{0}', space=sflag, size = 0x4, scoped, tag = 'scoped memory for tpu_custom_call.1']
    #allocation12 [shape = 'u8[8192]{0}', space=vmem, size = 0x2000, scoped, tag = 'output window, operand 0, single buffered']
    %12 = vsyncpa [#allocation5], 0
    %13 = vsyncpa [#allocation8], 0
    %14 = vsyncpa [#allocation11], 0
    %15 = vsyncpa [#allocation6], 0
    // Predicated region
    $region2: #{tpu_custom_call.1} parent=1 // pred_check
      _
    $region3: #{tpu_custom_call.1} parent=1 // pred_check_branch
      %17 = sbr.rel (0) target = $region5
    $region4: #{tpu_custom_call.1} parent=1 // pred_region
      %s19 = ssub.s32 256, 256
      %20 = vsyncadd [#allocation5], %s19
      %s21 = sshll.u32 [#allocation4], 4
      %s22 = int_to_ptr.vmem [resolvable:$true] %s21
      %27 = dma.hbm_to_vmem [thread:$0]  %s0, 256, %s22, [#allocation5], 32, 32, 2
    $region5: #{tpu_custom_call.1} parent=1 // pred_fallthru
      _
    // Predicated region
    $region6: #{tpu_custom_call.1} parent=1 // pred_check
      _
    $region7: #{tpu_custom_call.1} parent=1 // pred_check_branch
      %29 = sbr.rel (0) target = $region9
    $region8: #{tpu_custom_call.1} parent=1 // pred_region
      %s31 = ssub.s32 1024, 1024
      %32 = vsyncadd [#allocation8], %s31
      %s33 = sshll.u32 [#allocation7], 4
      %s34 = int_to_ptr.vmem [resolvable:$true] %s33
      %39 = dma.hbm_to_vmem [thread:$0]  %s1, 1024, %s34, [#allocation8], 256, 256, 16
    $region9: #{tpu_custom_call.1} parent=1 // pred_fallthru
      _
    // Predicated region
    $region10: #{tpu_custom_call.1} parent=1 // pred_check
      _
    $region11: #{tpu_custom_call.1} parent=1 // pred_check_branch
      %41 = sbr.rel (0) target = $region13
    $region12: #{tpu_custom_call.1} parent=1 // pred_region
      _
    $region13: #{tpu_custom_call.1} parent=1 // pred_fallthru
      _
    // Predicated region
    $region14: #{tpu_custom_call.1} parent=1 // pred_check
      _
    $region15: #{tpu_custom_call.1} parent=1 // pred_check_branch
      %43 = sbr.rel (0) target = $region17
    $region16: #{tpu_custom_call.1} parent=1 // pred_region
      %s45 = ssub.s32 512, 512
      %46 = vsyncadd [#allocation8], %s45
      %s47 = sshll.u32 [#allocation9], 4
      %s48 = int_to_ptr.vmem [resolvable:$true] %s47
      %53 = dma.hbm_to_vmem [thread:$0]  %s3, 512, %s48, [#allocation8], 128, 128, 8
    $region17: #{tpu_custom_call.1} parent=1 // pred_fallthru
      _
    // Predicated region
    $region18: #{tpu_custom_call.1} parent=1 // pred_check
      _
    $region19: #{tpu_custom_call.1} parent=1 // pred_check_branch
      %55 = sbr.rel (0) target = $region21
    $region20: #{tpu_custom_call.1} parent=1 // pred_region
      _
    $region21: #{tpu_custom_call.1} parent=1 // pred_fallthru
      _
    // Predicated region
    $region22: #{tpu_custom_call.1} parent=1 // pred_check
      _
    $region23: #{tpu_custom_call.1} parent=1 // pred_check_branch
      %57 = sbr.rel (0) target = $region25
    $region24: #{tpu_custom_call.1} parent=1 // pred_region
      %s59 = ssub.s32 512, 512
      %60 = vsyncadd [#allocation11], %s59
      %s61 = sshll.u32 [#allocation10], 4
      %s62 = int_to_ptr.vmem [resolvable:$true] %s61
      %67 = dma.hbm_to_vmem [thread:$0]  %s5, 512, %s62, [#allocation11], 128, 128, 8
    $region25: #{tpu_custom_call.1} parent=1 // pred_fallthru
      _
    // Predicated region
    $region26: #{tpu_custom_call.1} parent=1 // pred_check
      _
    $region27: #{tpu_custom_call.1} parent=1 // pred_check_branch
      %69 = sbr.rel (0) target = $region29
    $region28: #{tpu_custom_call.1} parent=1 // pred_region
      _
    $region29: #{tpu_custom_call.1} parent=1 // pred_fallthru
      _
    // Predicated region
    $region30: #{tpu_custom_call.1} parent=1 // pred_check
      _
    $region31: #{tpu_custom_call.1} parent=1 // pred_check_branch
      %71 = sbr.rel (0) target = $region33
    $region32: #{tpu_custom_call.1} parent=1 // pred_region
      %72 = dma.done [#allocation5], 256
    $region33: #{tpu_custom_call.1} parent=1 // pred_fallthru
      _
    // Predicated region
    $region34: #{tpu_custom_call.1} parent=1 // pred_check
      _
    $region35: #{tpu_custom_call.1} parent=1 // pred_check_branch
      %74 = sbr.rel (0) target = $region37
    $region36: #{tpu_custom_call.1} parent=1 // pred_region
      %75 = dma.done [#allocation8], 1024
    $region37: #{tpu_custom_call.1} parent=1 // pred_fallthru
      _
    // Predicated region
    $region38: #{tpu_custom_call.1} parent=1 // pred_check
      _
    $region39: #{tpu_custom_call.1} parent=1 // pred_check_branch
      %77 = sbr.rel (0) target = $region41
    $region40: #{tpu_custom_call.1} parent=1 // pred_region
      %78 = dma.done [#allocation8], 512
    $region41: #{tpu_custom_call.1} parent=1 // pred_fallthru
      _
    // Predicated region
    $region42: #{tpu_custom_call.1} parent=1 // pred_check
      _
    $region43: #{tpu_custom_call.1} parent=1 // pred_check_branch
      %80 = sbr.rel (0) target = $region45
    $region44: #{tpu_custom_call.1} parent=1 // pred_region
      %81 = dma.done [#allocation11], 512
    $region45: #{tpu_custom_call.1} parent=1 // pred_fallthru
      _
    %v82 = vld [vmem:[#allocation4] sm:$0x3]
    %v83 = vld [vmem:[#allocation4 + $0x2] sm:$0x3]
    %v84 = vld [vmem:[#allocation4 + $0x4] sm:$0x3]
    %v85 = vld [vmem:[#allocation4 + $0x6] sm:$0x3]
    %v86 = vld [vmem:[#allocation4 + $0x8] sm:$0x3]
    %v87 = vld [vmem:[#allocation4 + $0xa] sm:$0x3]
    %v88 = vld [vmem:[#allocation4 + $0xc] sm:$0x3]
    %v89 = vld [vmem:[#allocation4 + $0xe] sm:$0x3]
    %v90 = vld [vmem:[#allocation7] sm:$0xff]
    %v91 = vld [vmem:[#allocation7 + $0x8] sm:$0xff]
    %v92 = vld [vmem:[#allocation7 + $0x10] sm:$0xff]
    %v93 = vld [vmem:[#allocation7 + $0x18] sm:$0xff]
    %v94 = vld [vmem:[#allocation7 + $0x20] sm:$0xff]
    %v95 = vld [vmem:[#allocation7 + $0x28] sm:$0xff]
    %v96 = vld [vmem:[#allocation7 + $0x30] sm:$0xff]
    %v97 = vld [vmem:[#allocation7 + $0x38] sm:$0xff]
    %v98 = vld [vmem:[%s2] sm:$0x3]
    %v100 = vlaneseq
    %v101 = vshrl.u32 %v100, 7
    %v102 = vsub.s32 0, %v101
    %v103 = vrot.slane %v98, %v102
    %v104 = vlaneseq
    %v105 = vshrl.u32 %v104, 7
    %v106 = vsub.s32 1, %v105
    %v107 = vrot.slane %v98, %v106
    %v118 = vcombine.low %v82, %v83
    %v119 = vcombine.low %v84, %v85
    %v121 = vunpack.c.l.s4 1983009808
    %v122 = vunpack.c.0.s8 %v121
    %v123 = vlaneseq
    %v124 = vshrl.u32 %v123, 7
    %v125 = vsub.s32 %v122, %v124
    %v126 = vrot.slane %v118, %v125
    %v128 = vunpack.c.l.s4 1983009808
    %v129 = vunpack.c.0.s8 %v128
    %v130 = vlaneseq
    %v131 = vshrl.u32 %v130, 7
    %v132 = vsub.s32 %v129, %v131
    %v133 = vrot.slane %v119, %v132
    %v134 = vcombine.low %v126, %v133
    %v135 = vcombine.low %v86, %v87
    %v136 = vcombine.low %v88, %v89
    %v138 = vunpack.c.l.s4 1983009808
    %v139 = vunpack.c.0.s8 %v138
    %v140 = vlaneseq
    %v141 = vshrl.u32 %v140, 7
    %v142 = vsub.s32 %v139, %v141
    %v143 = vrot.slane %v135, %v142
    %v145 = vunpack.c.l.s4 1983009808
    %v146 = vunpack.c.0.s8 %v145
    %v147 = vlaneseq
    %v148 = vshrl.u32 %v147, 7
    %v149 = vsub.s32 %v146, %v148
    %v150 = vrot.slane %v136, %v149
    %v151 = vcombine.low %v143, %v150
    %vm152 = vcmask 261120
    %v153 = vsel %vm152, %v134, 0
    %v155 = vsel %vm152, %v151, 0
    %157 = vmatprep.subr.mxu0 0.0
    %158 = vmatpush1.msra.mxu0 0.0
    %159 = vmatprep.subr.mxu0 0.0
    %160 = vmatpush1.msra.mxu0 0.0
    %161 = vmatprep.subr.mxu0 0.0
    %162 = vmatpush1.msra.mxu0 0.0
    %163 = vmatprep.subr.mxu0 0.0
    %164 = vmatpush1.msra.mxu0 0.0
    %165 = vmatprep.subr.mxu0 0.0
    %166 = vmatpush1.msra.mxu0 0.0
    %167 = vmatprep.subr.mxu0 0.0
    %168 = vmatpush1.msra.mxu0 0.0
    %169 = vmatprep.subr.mxu0 0.0
    %170 = vmatpush1.msra.mxu0 0.0
    %171 = vmatprep.subr.mxu0 0.0
    %172 = vmatpush1.msra.mxu0 0.0
    %173 = vmatprep.subr.mxu0 0.0
    %174 = vmatpush1.msra.mxu0 0.0
    %175 = vmatprep.subr.mxu0 0.0
    %176 = vmatpush1.msra.mxu0 0.0
    %177 = vmatprep.subr.mxu0 0.0
    %178 = vmatpush1.msra.mxu0 0.0
    %179 = vmatprep.subr.mxu0 0.0
    %180 = vmatpush1.msra.mxu0 0.0
    %181 = vmatprep.subr.mxu0 %v97
    %182 = vmatpush1.msra.mxu0 %v96
    %183 = vmatprep.subr.mxu0 %v95
    %184 = vmatpush1.msra.mxu0 %v94
    %185 = vmatprep.subr.mxu0 %v93
    %186 = vmatpush1.msra.mxu0 %v92
    %187 = vmatprep.subr.mxu0 %v91
    %188 = vmatpush1.msra.mxu0 %v90
    %189 = vmatprep.subr.mxu0 0.0
    %190 = vmatpush2.msra.mxu0 0.0
    %191 = vmatprep.subr.mxu0 0.0
    %192 = vmatpush2.msra.mxu0 0.0
    %193 = vmatprep.subr.mxu0 0.0
    %194 = vmatpush2.msra.mxu0 0.0
    %195 = vmatprep.subr.mxu0 0.0
    %196 = vmatpush2.msra.mxu0 0.0
    %197 = vmatprep.subr.mxu0 0.0
    %198 = vmatpush2.msra.mxu0 0.0
    %199 = vmatprep.subr.mxu0 0.0
    %200 = vmatpush2.msra.mxu0 0.0
    %201 = vmatprep.subr.mxu0 0.0
    %202 = vmatpush2.msra.mxu0 0.0
    %203 = vmatprep.subr.mxu0 0.0
    %204 = vmatpush2.msra.mxu0 0.0
    %205 = vmatprep.subr.mxu0 0.0
    %206 = vmatpush2.msra.mxu0 0.0
    %207 = vmatprep.subr.mxu0 0.0
    %208 = vmatpush2.msra.mxu0 0.0
    %209 = vmatprep.subr.mxu0 0.0
    %210 = vmatpush2.msra.mxu0 0.0
    %211 = vmatprep.subr.mxu0 0.0
    %212 = vmatpush2.msra.mxu0 0.0
    %213 = vmatprep.subr.mxu0 0.0
    %214 = vmatpush2.msra.mxu0 0.0
    %215 = vmatprep.subr.mxu0 0.0
    %216 = vmatpush2.msra.mxu0 0.0
    %217 = vmatprep.subr.mxu0 0.0
    %218 = vmatpush2.msra.mxu0 0.0
    %219 = vmatprep.subr.mxu0 0.0
    %220 = vmatpush2.msra.mxu0 0.0
    %221 = vmatprep.mubr.f32.mxu0 0.0
    %222 = vmatmul.mubr.f32.gmra.mxu0 %v153
    %v223 = vpop.f32.mrf.mxu0
    %v224 = vadd.f32 %v103, %v223
    %v225 = vpop.f32.mrf.mxu0
    %v226 = vadd.f32 %v107, %v225
    %227 = vmatprep.mubr.f32.mxu0 0.0
    %228 = vmatmul.mubr.f32.gmra.mxu0 %v155
    %v229 = vpop.f32.mrf.mxu0
    %v230 = vadd.f32 %v103, %v229
    %v231 = vpop.f32.mrf.mxu0
    %v232 = vadd.f32 %v107, %v231
    %233 = vdwg.mxu0
    %v238 = vcombine.low %v224, %v226
    %v239 = vcombine.high %v224, %v226
    %v241 = vunpack.c.l.s4 1983009808
    %v242 = vunpack.c.0.s8 %v241
    %v243 = vlaneseq
    %v244 = vshrl.u32 %v243, 7
    %v245 = vsub.s32 %v242, %v244
    %v246 = vrot.slane %v238, %v245
    %v248 = vunpack.c.l.s4 1983009808
    %v249 = vunpack.c.0.s8 %v248
    %v250 = vlaneseq
    %v251 = vshrl.u32 %v250, 7
    %v252 = vsub.s32 %v249, %v251
    %v253 = vrot.slane %v239, %v252
    %v254 = vcombine.high %v246, %v246
    %v255 = vcombine.high %v253, %v253
    %v256 = vcombine.low %v230, %v232
    %v257 = vcombine.high %v230, %v232
    %v259 = vunpack.c.l.s4 1983009808
    %v260 = vunpack.c.0.s8 %v259
    %v261 = vlaneseq
    %v262 = vshrl.u32 %v261, 7
    %v263 = vsub.s32 %v260, %v262
    %v264 = vrot.slane %v256, %v263
    %v266 = vunpack.c.l.s4 1983009808
    %v267 = vunpack.c.0.s8 %v266
    %v268 = vlaneseq
    %v269 = vshrl.u32 %v268, 7
    %v270 = vsub.s32 %v267, %v269
    %v271 = vrot.slane %v257, %v270
    %v272 = vcombine.high %v264, %v264
    %v273 = vcombine.high %v271, %v271
    %vm282 = vcmask 1041408
    %vm283 = vcmask 519170
    %vm284 = vmor %vm283, %vm282
    %285 = vst.msk [vmem:[#allocation2] sm:$0xf] %vm284, %v246
    %286 = vst.msk [vmem:[#allocation2 + $0x4] sm:$0xf] %vm284, %v254
    %287 = vst.msk [vmem:[#allocation2 + $0x8] sm:$0xf] %vm284, %v253
    %288 = vst.msk [vmem:[#allocation2 + $0xc] sm:$0xf] %vm284, %v255
    %289 = vst.msk [vmem:[#allocation2 + $0x10] sm:$0xf] %vm284, %v264
    %290 = vst.msk [vmem:[#allocation2 + $0x14] sm:$0xf] %vm284, %v272
    %291 = vst.msk [vmem:[#allocation2 + $0x18] sm:$0xf] %vm284, %v271
    %292 = vst.msk [vmem:[#allocation2 + $0x1c] sm:$0xf] %vm284, %v273
    %v293 = vld [vmem:[#allocation9] sm:$0xff]
    %v294 = vld [vmem:[#allocation9 + $0x8] sm:$0xff]
    %v295 = vld [vmem:[#allocation9 + $0x10] sm:$0xff]
    %v296 = vld [vmem:[#allocation9 + $0x18] sm:$0xff]
    %v297 = vld [vmem:[%s4] sm:$0x1]
    %v298 = vld [vmem:[#allocation10] sm:$0xff]
    %v299 = vld [vmem:[#allocation10 + $0x8] sm:$0xff]
    %v300 = vld [vmem:[#allocation10 + $0x10] sm:$0xff]
    %v301 = vld [vmem:[#allocation10 + $0x18] sm:$0xff]
    %v302 = vld [vmem:[%s6] sm:$0x1]
    %v303 = vld [vmem:[#allocation2] sm:$0xf]
    %v305 = vsel %vm152, 0.0, 0
    %307 = vmatprep.subr.mxu0 0.0
    %308 = vmatpush1.msra.mxu0 0.0
    %309 = vmatprep.subr.mxu0 0.0
    %310 = vmatpush1.msra.mxu0 0.0
    %311 = vmatprep.subr.mxu0 0.0
    %312 = vmatpush1.msra.mxu0 0.0
    %313 = vmatprep.subr.mxu0 0.0
    %314 = vmatpush1.msra.mxu0 0.0
    %315 = vmatprep.subr.mxu0 0.0
    %316 = vmatpush1.msra.mxu0 0.0
    %317 = vmatprep.subr.mxu0 0.0
    %318 = vmatpush1.msra.mxu0 0.0
    %319 = vmatprep.subr.mxu0 0.0
    %320 = vmatpush1.msra.mxu0 0.0
    %321 = vmatprep.subr.mxu0 0.0
    %322 = vmatpush1.msra.mxu0 0.0
    %323 = vmatprep.subr.mxu0 0.0
    %324 = vmatpush1.msra.mxu0 0.0
    %325 = vmatprep.subr.mxu0 0.0
    %326 = vmatpush1.msra.mxu0 0.0
    %327 = vmatprep.subr.mxu0 0.0
    %328 = vmatpush1.msra.mxu0 0.0
    %329 = vmatprep.subr.mxu0 0.0
    %330 = vmatpush1.msra.mxu0 0.0
    %331 = vmatprep.subr.mxu0 0.0
    %332 = vmatpush1.msra.mxu0 %v296
    %333 = vmatprep.subr.mxu0 0.0
    %334 = vmatpush1.msra.mxu0 %v295
    %335 = vmatprep.subr.mxu0 0.0
    %336 = vmatpush1.msra.mxu0 %v294
    %337 = vmatprep.subr.mxu0 0.0
    %338 = vmatpush1.msra.mxu0 %v293
    %339 = vmatprep.subr.mxu0 0.0
    %340 = vmatpush2.msra.mxu0 0.0
    %341 = vmatprep.subr.mxu0 0.0
    %342 = vmatpush2.msra.mxu0 0.0
    %343 = vmatprep.subr.mxu0 0.0
    %344 = vmatpush2.msra.mxu0 0.0
    %345 = vmatprep.subr.mxu0 0.0
    %346 = vmatpush2.msra.mxu0 0.0
    %347 = vmatprep.subr.mxu0 0.0
    %348 = vmatpush2.msra.mxu0 0.0
    %349 = vmatprep.subr.mxu0 0.0
    %350 = vmatpush2.msra.mxu0 0.0
    %351 = vmatprep.subr.mxu0 0.0
    %352 = vmatpush2.msra.mxu0 0.0
    %353 = vmatprep.subr.mxu0 0.0
    %354 = vmatpush2.msra.mxu0 0.0
    %355 = vmatprep.subr.mxu0 0.0
    %356 = vmatpush2.msra.mxu0 0.0
    %357 = vmatprep.subr.mxu0 0.0
    %358 = vmatpush2.msra.mxu0 0.0
    %359 = vmatprep.subr.mxu0 0.0
    %360 = vmatpush2.msra.mxu0 0.0
    %361 = vmatprep.subr.mxu0 0.0
    %362 = vmatpush2.msra.mxu0 0.0
    %363 = vmatprep.subr.mxu0 0.0
    %364 = vmatpush2.msra.mxu0 0.0
    %365 = vmatprep.subr.mxu0 0.0
    %366 = vmatpush2.msra.mxu0 0.0
    %367 = vmatprep.subr.mxu0 0.0
    %368 = vmatpush2.msra.mxu0 0.0
    %369 = vmatprep.subr.mxu0 0.0
    %370 = vmatpush2.msra.mxu0 0.0
    %371 = vmatprep.mubr.f32.mxu0 0.0
    %372 = vmatmul.mubr.f32.gmra.mxu0 %v305
    %v373 = vpop.f32.mrf.mxu0
    %v374 = vadd.f32 0.0, %v373
    %v375 = vpop.f32.mrf.mxu0
    %376 = vdwg.mxu0
    %v377 = vadd.f32 %v303, %v374
    %v378 = vxor.u32 %v377, 2147483648
    %v379 = vmul.f32 %v378, 1.442695
    %v380 = vpow.pop %v379
    %v381 = vadd.f32 %v380, 1.0
    %v382 = vrcp.pop %v381
    %v383 = vmul.f32 1.0, %v382
    %v385 = vlaneseq
    %v386 = vshrl.u32 %v385, 7
    %v387 = vsub.s32 0, %v386
    %v388 = vrot.slane %v297, %v387
    %389 = vrot.lane.b32.xlu0 %v388, 64
    %v390 = vpop.permute.xlu0 %389
    %v392 = vadd.f32 %v374, %v390
    %v395 = vunpack.c.l.s4 1983009808
    %v396 = vunpack.c.0.s8 %v395
    %v397 = vlaneseq
    %v398 = vshrl.u32 %v397, 7
    %v399 = vsub.s32 %v396, %v398
    %v400 = vrot.slane %v392, %v399
    %401 = vrot.lane.b32.xlu0 %v400, 64
    %v402 = vpop.permute.xlu0 %401
    %v404 = vmul.f32 %v383, %v402
    %406 = vrot.lane.b32.xlu0 %v404, 64
    %v407 = vpop.permute.xlu0 %406
    %v409 = vadd.f32 %v303, %v407
    %v410 = vtanh.pop %v409
    %v411 = vsub.f32 0.0, %v410
    %413 = vrot.lane.b32.xlu0 %v411, 96
    %v414 = vpop.permute.xlu0 %413
    %v416 = vmul.f32 %v383, %v414
    %418 = vrot.lane.b32.xlu0 %v416, 32
    %v419 = vpop.permute.xlu0 %418
    %v421 = vadd.f32 %v410, %v419
    %v424 = vunpack.c.l.s4 1983009808
    %v425 = vunpack.c.0.s8 %v424
    %v426 = vlaneseq
    %v427 = vshrl.u32 %v426, 7
    %v428 = vsub.s32 %v425, %v427
    %v429 = vrot.slane %v421, %v428
    %430 = vrot.lane.b32.xlu0 %v429, 64
    %v431 = vpop.permute.xlu0 %430
    %vm433 = vcmask 254976
    %434 = vst.msk [vmem:[#allocation3] sm:$0x3] %vm433, %v431
    %s435 = scalar_lea.vmem [#allocation2], 4
    %v436 = vld [vmem:[%s435] sm:$0xf]
    %v437 = vsel %vm152, %v431, 0
    %439 = vmatprep.subr.mxu0 0.0
    %440 = vmatpush1.msra.mxu0 0.0
    %441 = vmatprep.subr.mxu0 0.0
    %442 = vmatpush1.msra.mxu0 0.0
    %443 = vmatprep.subr.mxu0 0.0
    %444 = vmatpush1.msra.mxu0 0.0
    %445 = vmatprep.subr.mxu0 0.0
    %446 = vmatpush1.msra.mxu0 0.0
    %447 = vmatprep.subr.mxu0 0.0
    %448 = vmatpush1.msra.mxu0 0.0
    %449 = vmatprep.subr.mxu0 0.0
    %450 = vmatpush1.msra.mxu0 0.0
    %451 = vmatprep.subr.mxu0 0.0
    %452 = vmatpush1.msra.mxu0 0.0
    %453 = vmatprep.subr.mxu0 0.0
    %454 = vmatpush1.msra.mxu0 0.0
    %455 = vmatprep.subr.mxu0 0.0
    %456 = vmatpush1.msra.mxu0 0.0
    %457 = vmatprep.subr.mxu0 0.0
    %458 = vmatpush1.msra.mxu0 0.0
    %459 = vmatprep.subr.mxu0 0.0
    %460 = vmatpush1.msra.mxu0 0.0
    %461 = vmatprep.subr.mxu0 0.0
    %462 = vmatpush1.msra.mxu0 0.0
    %463 = vmatprep.subr.mxu0 0.0
    %464 = vmatpush1.msra.mxu0 %v296
    %465 = vmatprep.subr.mxu0 0.0
    %466 = vmatpush1.msra.mxu0 %v295
    %467 = vmatprep.subr.mxu0 0.0
    %468 = vmatpush1.msra.mxu0 %v294
    %469 = vmatprep.subr.mxu0 0.0
    %470 = vmatpush1.msra.mxu0 %v293
    %471 = vmatprep.subr.mxu0 0.0
    %472 = vmatpush2.msra.mxu0 0.0
    %473 = vmatprep.subr.mxu0 0.0
    %474 = vmatpush2.msra.mxu0 0.0
    %475 = vmatprep.subr.mxu0 0.0
    %476 = vmatpush2.msra.mxu0 0.0
    %477 = vmatprep.subr.mxu0 0.0
    %478 = vmatpush2.msra.mxu0 0.0
    %479 = vmatprep.subr.mxu0 0.0
    %480 = vmatpush2.msra.mxu0 0.0
    %481 = vmatprep.subr.mxu0 0.0
    %482 = vmatpush2.msra.mxu0 0.0
    %483 = vmatprep.subr.mxu0 0.0
    %484 = vmatpush2.msra.mxu0 0.0
    %485 = vmatprep.subr.mxu0 0.0
    %486 = vmatpush2.msra.mxu0 0.0
    %487 = vmatprep.subr.mxu0 0.0
    %488 = vmatpush2.msra.mxu0 0.0
    %489 = vmatprep.subr.mxu0 0.0
    %490 = vmatpush2.msra.mxu0 0.0
    %491 = vmatprep.subr.mxu0 0.0
    %492 = vmatpush2.msra.mxu0 0.0
    %493 = vmatprep.subr.mxu0 0.0
    %494 = vmatpush2.msra.mxu0 0.0
    %495 = vmatprep.subr.mxu0 0.0
    %496 = vmatpush2.msra.mxu0 0.0
    %497 = vmatprep.subr.mxu0 0.0
    %498 = vmatpush2.msra.mxu0 0.0
    %499 = vmatprep.subr.mxu0 0.0
    %500 = vmatpush2.msra.mxu0 0.0
    %501 = vmatprep.subr.mxu0 0.0
    %502 = vmatpush2.msra.mxu0 0.0
    %503 = vmatprep.mubr.f32.mxu0 0.0
    %504 = vmatmul.mubr.f32.gmra.mxu0 %v437
    %v505 = vpop.f32.mrf.mxu0
    %v506 = vadd.f32 0.0, %v505
    %v507 = vpop.f32.mrf.mxu0
    %508 = vdwg.mxu0
    %v509 = vadd.f32 %v436, %v506
    %v510 = vxor.u32 %v509, 2147483648
    %v511 = vmul.f32 %v510, 1.442695
    %v512 = vpow.pop %v511
    %v513 = vadd.f32 %v512, 1.0
    %v514 = vrcp.pop %v513
    %v515 = vmul.f32 1.0, %v514
    %v516 = vadd.f32 %v506, %v390
    %v519 = vunpack.c.l.s4 1983009808
    %v520 = vunpack.c.0.s8 %v519
    %v521 = vlaneseq
    %v522 = vshrl.u32 %v521, 7
    %v523 = vsub.s32 %v520, %v522
    %v524 = vrot.slane %v516, %v523
    %525 = vrot.lane.b32.xlu0 %v524, 64
    %v526 = vpop.permute.xlu0 %525
    %v528 = vmul.f32 %v515, %v526
    %530 = vrot.lane.b32.xlu0 %v528, 64
    %v531 = vpop.permute.xlu0 %530
    %v533 = vadd.f32 %v436, %v531
    %v534 = vtanh.pop %v533
    %v535 = vsub.f32 %v421, %v534
    %537 = vrot.lane.b32.xlu0 %v535, 96
    %v538 = vpop.permute.xlu0 %537
    %v540 = vmul.f32 %v515, %v538
    %542 = vrot.lane.b32.xlu0 %v540, 32
    %v543 = vpop.permute.xlu0 %542
    %v545 = vadd.f32 %v534, %v543
    %v548 = vunpack.c.l.s4 1983009808
    %v549 = vunpack.c.0.s8 %v548
    %v550 = vlaneseq
    %v551 = vshrl.u32 %v550, 7
    %v552 = vsub.s32 %v549, %v551
    %v553 = vrot.slane %v545, %v552
    %554 = vrot.lane.b32.xlu0 %v553, 64
    %v555 = vpop.permute.xlu0 %554
    %s557 = scalar_lea.vmem [#allocation3], 2
    %558 = vst.msk [vmem:[%s557] sm:$0x3] %vm433, %v555
    %s559 = scalar_lea.vmem [#allocation2], 8
    %v560 = vld [vmem:[%s559] sm:$0xf]
    %v561 = vsel %vm152, %v555, 0
    %563 = vmatprep.subr.mxu0 0.0
    %564 = vmatpush1.msra.mxu0 0.0
    %565 = vmatprep.subr.mxu0 0.0
    %566 = vmatpush1.msra.mxu0 0.0
    %567 = vmatprep.subr.mxu0 0.0
    %568 = vmatpush1.msra.mxu0 0.0
    %569 = vmatprep.subr.mxu0 0.0
    %570 = vmatpush1.msra.mxu0 0.0
    %571 = vmatprep.subr.mxu0 0.0
    %572 = vmatpush1.msra.mxu0 0.0
    %573 = vmatprep.subr.mxu0 0.0
    %574 = vmatpush1.msra.mxu0 0.0
    %575 = vmatprep.subr.mxu0 0.0
    %576 = vmatpush1.msra.mxu0 0.0
    %577 = vmatprep.subr.mxu0 0.0
    %578 = vmatpush1.msra.mxu0 0.0
    %579 = vmatprep.subr.mxu0 0.0
    %580 = vmatpush1.msra.mxu0 0.0
    %581 = vmatprep.subr.mxu0 0.0
    %582 = vmatpush1.msra.mxu0 0.0
    %583 = vmatprep.subr.mxu0 0.0
    %584 = vmatpush1.msra.mxu0 0.0
    %585 = vmatprep.subr.mxu0 0.0
    %586 = vmatpush1.msra.mxu0 0.0
    %587 = vmatprep.subr.mxu0 0.0
    %588 = vmatpush1.msra.mxu0 %v296
    %589 = vmatprep.subr.mxu0 0.0
    %590 = vmatpush1.msra.mxu0 %v295
    %591 = vmatprep.subr.mxu0 0.0
    %592 = vmatpush1.msra.mxu0 %v294
    %593 = vmatprep.subr.mxu0 0.0
    %594 = vmatpush1.msra.mxu0 %v293
    %595 = vmatprep.subr.mxu0 0.0
    %596 = vmatpush2.msra.mxu0 0.0
    %597 = vmatprep.subr.mxu0 0.0
    %598 = vmatpush2.msra.mxu0 0.0
    %599 = vmatprep.subr.mxu0 0.0
    %600 = vmatpush2.msra.mxu0 0.0
    %601 = vmatprep.subr.mxu0 0.0
    %602 = vmatpush2.msra.mxu0 0.0
    %603 = vmatprep.subr.mxu0 0.0
    %604 = vmatpush2.msra.mxu0 0.0
    %605 = vmatprep.subr.mxu0 0.0
    %606 = vmatpush2.msra.mxu0 0.0
    %607 = vmatprep.subr.mxu0 0.0
    %608 = vmatpush2.msra.mxu0 0.0
    %609 = vmatprep.subr.mxu0 0.0
    %610 = vmatpush2.msra.mxu0 0.0
    %611 = vmatprep.subr.mxu0 0.0
    %612 = vmatpush2.msra.mxu0 0.0
    %613 = vmatprep.subr.mxu0 0.0
    %614 = vmatpush2.msra.mxu0 0.0
    %615 = vmatprep.subr.mxu0 0.0
    %616 = vmatpush2.msra.mxu0 0.0
    %617 = vmatprep.subr.mxu0 0.0
    %618 = vmatpush2.msra.mxu0 0.0
    %619 = vmatprep.subr.mxu0 0.0
    %620 = vmatpush2.msra.mxu0 0.0
    %621 = vmatprep.subr.mxu0 0.0
    %622 = vmatpush2.msra.mxu0 0.0
    %623 = vmatprep.subr.mxu0 0.0
    %624 = vmatpush2.msra.mxu0 0.0
    %625 = vmatprep.subr.mxu0 0.0
    %626 = vmatpush2.msra.mxu0 0.0
    %627 = vmatprep.mubr.f32.mxu0 0.0
    %628 = vmatmul.mubr.f32.gmra.mxu0 %v561
    %v629 = vpop.f32.mrf.mxu0
    %v630 = vadd.f32 0.0, %v629
    %v631 = vpop.f32.mrf.mxu0
    %632 = vdwg.mxu0
    %v633 = vadd.f32 %v560, %v630
    %v634 = vxor.u32 %v633, 2147483648
    %v635 = vmul.f32 %v634, 1.442695
    %v636 = vpow.pop %v635
    %v637 = vadd.f32 %v636, 1.0
    %v638 = vrcp.pop %v637
    %v639 = vmul.f32 1.0, %v638
    %v640 = vadd.f32 %v630, %v390
    %v643 = vunpack.c.l.s4 1983009808
    %v644 = vunpack.c.0.s8 %v643
    %v645 = vlaneseq
    %v646 = vshrl.u32 %v645, 7
    %v647 = vsub.s32 %v644, %v646
    %v648 = vrot.slane %v640, %v647
    %649 = vrot.lane.b32.xlu0 %v648, 64
    %v650 = vpop.permute.xlu0 %649
    %v652 = vmul.f32 %v639, %v650
    %654 = vrot.lane.b32.xlu0 %v652, 64
    %v655 = vpop.permute.xlu0 %654
    %v657 = vadd.f32 %v560, %v655
    %v658 = vtanh.pop %v657
    %v659 = vsub.f32 %v545, %v658
    %661 = vrot.lane.b32.xlu0 %v659, 96
    %v662 = vpop.permute.xlu0 %661
    %v664 = vmul.f32 %v639, %v662
    %666 = vrot.lane.b32.xlu0 %v664, 32
    %v667 = vpop.permute.xlu0 %666
    %v669 = vadd.f32 %v658, %v667
    %v672 = vunpack.c.l.s4 1983009808
    %v673 = vunpack.c.0.s8 %v672
    %v674 = vlaneseq
    %v675 = vshrl.u32 %v674, 7
    %v676 = vsub.s32 %v673, %v675
    %v677 = vrot.slane %v669, %v676
    %678 = vrot.lane.b32.xlu0 %v677, 64
    %v679 = vpop.permute.xlu0 %678
    %s681 = scalar_lea.vmem [#allocation3], 4
    %682 = vst.msk [vmem:[%s681] sm:$0x3] %vm433, %v679
    %s683 = scalar_lea.vmem [#allocation2], 12
    %v684 = vld [vmem:[%s683] sm:$0xf]
    %v685 = vsel %vm152, %v679, 0
    %687 = vmatprep.subr.mxu0 0.0
    %688 = vmatpush1.msra.mxu0 0.0
    %689 = vmatprep.subr.mxu0 0.0
    %690 = vmatpush1.msra.mxu0 0.0
    %691 = vmatprep.subr.mxu0 0.0
    %692 = vmatpush1.msra.mxu0 0.0
    %693 = vmatprep.subr.mxu0 0.0
    %694 = vmatpush1.msra.mxu0 0.0
    %695 = vmatprep.subr.mxu0 0.0
    %696 = vmatpush1.msra.mxu0 0.0
    %697 = vmatprep.subr.mxu0 0.0
    %698 = vmatpush1.msra.mxu0 0.0
    %699 = vmatprep.subr.mxu0 0.0
    %700 = vmatpush1.msra.mxu0 0.0
    %701 = vmatprep.subr.mxu0 0.0
    %702 = vmatpush1.msra.mxu0 0.0
    %703 = vmatprep.subr.mxu0 0.0
    %704 = vmatpush1.msra.mxu0 0.0
    %705 = vmatprep.subr.mxu0 0.0
    %706 = vmatpush1.msra.mxu0 0.0
    %707 = vmatprep.subr.mxu0 0.0
    %708 = vmatpush1.msra.mxu0 0.0
    %709 = vmatprep.subr.mxu0 0.0
    %710 = vmatpush1.msra.mxu0 0.0
    %711 = vmatprep.subr.mxu0 0.0
    %712 = vmatpush1.msra.mxu0 %v296
    %713 = vmatprep.subr.mxu0 0.0
    %714 = vmatpush1.msra.mxu0 %v295
    %715 = vmatprep.subr.mxu0 0.0
    %716 = vmatpush1.msra.mxu0 %v294
    %717 = vmatprep.subr.mxu0 0.0
    %718 = vmatpush1.msra.mxu0 %v293
    %719 = vmatprep.subr.mxu0 0.0
    %720 = vmatpush2.msra.mxu0 0.0
    %721 = vmatprep.subr.mxu0 0.0
    %722 = vmatpush2.msra.mxu0 0.0
    %723 = vmatprep.subr.mxu0 0.0
    %724 = vmatpush2.msra.mxu0 0.0
    %725 = vmatprep.subr.mxu0 0.0
    %726 = vmatpush2.msra.mxu0 0.0
    %727 = vmatprep.subr.mxu0 0.0
    %728 = vmatpush2.msra.mxu0 0.0
    %729 = vmatprep.subr.mxu0 0.0
    %730 = vmatpush2.msra.mxu0 0.0
    %731 = vmatprep.subr.mxu0 0.0
    %732 = vmatpush2.msra.mxu0 0.0
    %733 = vmatprep.subr.mxu0 0.0
    %734 = vmatpush2.msra.mxu0 0.0
    %735 = vmatprep.subr.mxu0 0.0
    %736 = vmatpush2.msra.mxu0 0.0
    %737 = vmatprep.subr.mxu0 0.0
    %738 = vmatpush2.msra.mxu0 0.0
    %739 = vmatprep.subr.mxu0 0.0
    %740 = vmatpush2.msra.mxu0 0.0
    %741 = vmatprep.subr.mxu0 0.0
    %742 = vmatpush2.msra.mxu0 0.0
    %743 = vmatprep.subr.mxu0 0.0
    %744 = vmatpush2.msra.mxu0 0.0
    %745 = vmatprep.subr.mxu0 0.0
    %746 = vmatpush2.msra.mxu0 0.0
    %747 = vmatprep.subr.mxu0 0.0
    %748 = vmatpush2.msra.mxu0 0.0
    %749 = vmatprep.subr.mxu0 0.0
    %750 = vmatpush2.msra.mxu0 0.0
    %751 = vmatprep.mubr.f32.mxu0 0.0
    %752 = vmatmul.mubr.f32.gmra.mxu0 %v685
    %v753 = vpop.f32.mrf.mxu0
    %v754 = vadd.f32 0.0, %v753
    %v755 = vpop.f32.mrf.mxu0
    %756 = vdwg.mxu0
    %v757 = vadd.f32 %v684, %v754
    %v758 = vxor.u32 %v757, 2147483648
    %v759 = vmul.f32 %v758, 1.442695
    %v760 = vpow.pop %v759
    %v761 = vadd.f32 %v760, 1.0
    %v762 = vrcp.pop %v761
    %v763 = vmul.f32 1.0, %v762
    %v764 = vadd.f32 %v754, %v390
    %v767 = vunpack.c.l.s4 1983009808
    %v768 = vunpack.c.0.s8 %v767
    %v769 = vlaneseq
    %v770 = vshrl.u32 %v769, 7
    %v771 = vsub.s32 %v768, %v770
    %v772 = vrot.slane %v764, %v771
    %773 = vrot.lane.b32.xlu0 %v772, 64
    %v774 = vpop.permute.xlu0 %773
    %v776 = vmul.f32 %v763, %v774
    %778 = vrot.lane.b32.xlu0 %v776, 64
    %v779 = vpop.permute.xlu0 %778
    %v781 = vadd.f32 %v684, %v779
    %v782 = vtanh.pop %v781
    %v783 = vsub.f32 %v669, %v782
    %785 = vrot.lane.b32.xlu0 %v783, 96
    %v786 = vpop.permute.xlu0 %785
    %v788 = vmul.f32 %v763, %v786
    %790 = vrot.lane.b32.xlu0 %v788, 32
    %v791 = vpop.permute.xlu0 %790
    %v793 = vadd.f32 %v782, %v791
    %v796 = vunpack.c.l.s4 1983009808
    %v797 = vunpack.c.0.s8 %v796
    %v798 = vlaneseq
    %v799 = vshrl.u32 %v798, 7
    %v800 = vsub.s32 %v797, %v799
    %v801 = vrot.slane %v793, %v800
    %802 = vrot.lane.b32.xlu0 %v801, 64
    %v803 = vpop.permute.xlu0 %802
    %s805 = scalar_lea.vmem [#allocation3], 6
    %806 = vst.msk [vmem:[%s805] sm:$0x3] %vm433, %v803
    %s807 = scalar_lea.vmem [#allocation2], 16
    %v808 = vld [vmem:[%s807] sm:$0xf]
    %v809 = vsel %vm152, %v803, 0
    %811 = vmatprep.subr.mxu0 0.0
    %812 = vmatpush1.msra.mxu0 0.0
    %813 = vmatprep.subr.mxu0 0.0
    %814 = vmatpush1.msra.mxu0 0.0
    %815 = vmatprep.subr.mxu0 0.0
    %816 = vmatpush1.msra.mxu0 0.0
    %817 = vmatprep.subr.mxu0 0.0
    %818 = vmatpush1.msra.mxu0 0.0
    %819 = vmatprep.subr.mxu0 0.0
    %820 = vmatpush1.msra.mxu0 0.0
    %821 = vmatprep.subr.mxu0 0.0
    %822 = vmatpush1.msra.mxu0 0.0
    %823 = vmatprep.subr.mxu0 0.0
    %824 = vmatpush1.msra.mxu0 0.0
    %825 = vmatprep.subr.mxu0 0.0
    %826 = vmatpush1.msra.mxu0 0.0
    %827 = vmatprep.subr.mxu0 0.0
    %828 = vmatpush1.msra.mxu0 0.0
    %829 = vmatprep.subr.mxu0 0.0
    %830 = vmatpush1.msra.mxu0 0.0
    %831 = vmatprep.subr.mxu0 0.0
    %832 = vmatpush1.msra.mxu0 0.0
    %833 = vmatprep.subr.mxu0 0.0
    %834 = vmatpush1.msra.mxu0 0.0
    %835 = vmatprep.subr.mxu0 0.0
    %836 = vmatpush1.msra.mxu0 %v296
    %837 = vmatprep.subr.mxu0 0.0
    %838 = vmatpush1.msra.mxu0 %v295
    %839 = vmatprep.subr.mxu0 0.0
    %840 = vmatpush1.msra.mxu0 %v294
    %841 = vmatprep.subr.mxu0 0.0
    %842 = vmatpush1.msra.mxu0 %v293
    %843 = vmatprep.subr.mxu0 0.0
    %844 = vmatpush2.msra.mxu0 0.0
    %845 = vmatprep.subr.mxu0 0.0
    %846 = vmatpush2.msra.mxu0 0.0
    %847 = vmatprep.subr.mxu0 0.0
    %848 = vmatpush2.msra.mxu0 0.0
    %849 = vmatprep.subr.mxu0 0.0
    %850 = vmatpush2.msra.mxu0 0.0
    %851 = vmatprep.subr.mxu0 0.0
    %852 = vmatpush2.msra.mxu0 0.0
    %853 = vmatprep.subr.mxu0 0.0
    %854 = vmatpush2.msra.mxu0 0.0
    %855 = vmatprep.subr.mxu0 0.0
    %856 = vmatpush2.msra.mxu0 0.0
    %857 = vmatprep.subr.mxu0 0.0
    %858 = vmatpush2.msra.mxu0 0.0
    %859 = vmatprep.subr.mxu0 0.0
    %860 = vmatpush2.msra.mxu0 0.0
    %861 = vmatprep.subr.mxu0 0.0
    %862 = vmatpush2.msra.mxu0 0.0
    %863 = vmatprep.subr.mxu0 0.0
    %864 = vmatpush2.msra.mxu0 0.0
    %865 = vmatprep.subr.mxu0 0.0
    %866 = vmatpush2.msra.mxu0 0.0
    %867 = vmatprep.subr.mxu0 0.0
    %868 = vmatpush2.msra.mxu0 0.0
    %869 = vmatprep.subr.mxu0 0.0
    %870 = vmatpush2.msra.mxu0 0.0
    %871 = vmatprep.subr.mxu0 0.0
    %872 = vmatpush2.msra.mxu0 0.0
    %873 = vmatprep.subr.mxu0 0.0
    %874 = vmatpush2.msra.mxu0 0.0
    %875 = vmatprep.mubr.f32.mxu0 0.0
    %876 = vmatmul.mubr.f32.gmra.mxu0 %v809
    %v877 = vpop.f32.mrf.mxu0
    %v878 = vadd.f32 0.0, %v877
    %v879 = vpop.f32.mrf.mxu0
    %880 = vdwg.mxu0
    %v881 = vadd.f32 %v808, %v878
    %v882 = vxor.u32 %v881, 2147483648
    %v883 = vmul.f32 %v882, 1.442695
    %v884 = vpow.pop %v883
    %v885 = vadd.f32 %v884, 1.0
    %v886 = vrcp.pop %v885
    %v887 = vmul.f32 1.0, %v886
    %v888 = vadd.f32 %v878, %v390
    %v891 = vunpack.c.l.s4 1983009808
    %v892 = vunpack.c.0.s8 %v891
    %v893 = vlaneseq
    %v894 = vshrl.u32 %v893, 7
    %v895 = vsub.s32 %v892, %v894
    %v896 = vrot.slane %v888, %v895
    %897 = vrot.lane.b32.xlu0 %v896, 64
    %v898 = vpop.permute.xlu0 %897
    %v900 = vmul.f32 %v887, %v898
    %902 = vrot.lane.b32.xlu0 %v900, 64
    %v903 = vpop.permute.xlu0 %902
    %v905 = vadd.f32 %v808, %v903
    %v906 = vtanh.pop %v905
    %v907 = vsub.f32 %v793, %v906
    %909 = vrot.lane.b32.xlu0 %v907, 96
    %v910 = vpop.permute.xlu0 %909
    %v912 = vmul.f32 %v887, %v910
    %914 = vrot.lane.b32.xlu0 %v912, 32
    %v915 = vpop.permute.xlu0 %914
    %v917 = vadd.f32 %v906, %v915
    %v920 = vunpack.c.l.s4 1983009808
    %v921 = vunpack.c.0.s8 %v920
    %v922 = vlaneseq
    %v923 = vshrl.u32 %v922, 7
    %v924 = vsub.s32 %v921, %v923
    %v925 = vrot.slane %v917, %v924
    %926 = vrot.lane.b32.xlu0 %v925, 64
    %v927 = vpop.permute.xlu0 %926
    %s929 = scalar_lea.vmem [#allocation3], 8
    %930 = vst.msk [vmem:[%s929] sm:$0x3] %vm433, %v927
    %s931 = scalar_lea.vmem [#allocation2], 20
    %v932 = vld [vmem:[%s931] sm:$0xf]
    %v933 = vsel %vm152, %v927, 0
    %935 = vmatprep.subr.mxu0 0.0
    %936 = vmatpush1.msra.mxu0 0.0
    %937 = vmatprep.subr.mxu0 0.0
    %938 = vmatpush1.msra.mxu0 0.0
    %939 = vmatprep.subr.mxu0 0.0
    %940 = vmatpush1.msra.mxu0 0.0
    %941 = vmatprep.subr.mxu0 0.0
    %942 = vmatpush1.msra.mxu0 0.0
    %943 = vmatprep.subr.mxu0 0.0
    %944 = vmatpush1.msra.mxu0 0.0
    %945 = vmatprep.subr.mxu0 0.0
    %946 = vmatpush1.msra.mxu0 0.0
    %947 = vmatprep.subr.mxu0 0.0
    %948 = vmatpush1.msra.mxu0 0.0
    %949 = vmatprep.subr.mxu0 0.0
    %950 = vmatpush1.msra.mxu0 0.0
    %951 = vmatprep.subr.mxu0 0.0
    %952 = vmatpush1.msra.mxu0 0.0
    %953 = vmatprep.subr.mxu0 0.0
    %954 = vmatpush1.msra.mxu0 0.0
    %955 = vmatprep.subr.mxu0 0.0
    %956 = vmatpush1.msra.mxu0 0.0
    %957 = vmatprep.subr.mxu0 0.0
    %958 = vmatpush1.msra.mxu0 0.0
    %959 = vmatprep.subr.mxu0 0.0
    %960 = vmatpush1.msra.mxu0 %v296
    %961 = vmatprep.subr.mxu0 0.0
    %962 = vmatpush1.msra.mxu0 %v295
    %963 = vmatprep.subr.mxu0 0.0
    %964 = vmatpush1.msra.mxu0 %v294
    %965 = vmatprep.subr.mxu0 0.0
    %966 = vmatpush1.msra.mxu0 %v293
    %967 = vmatprep.subr.mxu0 0.0
    %968 = vmatpush2.msra.mxu0 0.0
    %969 = vmatprep.subr.mxu0 0.0
    %970 = vmatpush2.msra.mxu0 0.0
    %971 = vmatprep.subr.mxu0 0.0
    %972 = vmatpush2.msra.mxu0 0.0
    %973 = vmatprep.subr.mxu0 0.0
    %974 = vmatpush2.msra.mxu0 0.0
    %975 = vmatprep.subr.mxu0 0.0
    %976 = vmatpush2.msra.mxu0 0.0
    %977 = vmatprep.subr.mxu0 0.0
    %978 = vmatpush2.msra.mxu0 0.0
    %979 = vmatprep.subr.mxu0 0.0
    %980 = vmatpush2.msra.mxu0 0.0
    %981 = vmatprep.subr.mxu0 0.0
    %982 = vmatpush2.msra.mxu0 0.0
    %983 = vmatprep.subr.mxu0 0.0
    %984 = vmatpush2.msra.mxu0 0.0
    %985 = vmatprep.subr.mxu0 0.0
    %986 = vmatpush2.msra.mxu0 0.0
    %987 = vmatprep.subr.mxu0 0.0
    %988 = vmatpush2.msra.mxu0 0.0
    %989 = vmatprep.subr.mxu0 0.0
    %990 = vmatpush2.msra.mxu0 0.0
    %991 = vmatprep.subr.mxu0 0.0
    %992 = vmatpush2.msra.mxu0 0.0
    %993 = vmatprep.subr.mxu0 0.0
    %994 = vmatpush2.msra.mxu0 0.0
    %995 = vmatprep.subr.mxu0 0.0
    %996 = vmatpush2.msra.mxu0 0.0
    %997 = vmatprep.subr.mxu0 0.0
    %998 = vmatpush2.msra.mxu0 0.0
    %999 = vmatprep.mubr.f32.mxu0 0.0
    %1000 = vmatmul.mubr.f32.gmra.mxu0 %v933
    %v1001 = vpop.f32.mrf.mxu0
    %v1002 = vadd.f32 0.0, %v1001
    %v1003 = vpop.f32.mrf.mxu0
    %1004 = vdwg.mxu0
    %v1005 = vadd.f32 %v932, %v1002
    %v1006 = vxor.u32 %v1005, 2147483648
    %v1007 = vmul.f32 %v1006, 1.442695
    %v1008 = vpow.pop %v1007
    %v1009 = vadd.f32 %v1008, 1.0
    %v1010 = vrcp.pop %v1009
    %v1011 = vmul.f32 1.0, %v1010
    %v1012 = vadd.f32 %v1002, %v390
    %v1015 = vunpack.c.l.s4 1983009808
    %v1016 = vunpack.c.0.s8 %v1015
    %v1017 = vlaneseq
    %v1018 = vshrl.u32 %v1017, 7
    %v1019 = vsub.s32 %v1016, %v1018
    %v1020 = vrot.slane %v1012, %v1019
    %1021 = vrot.lane.b32.xlu0 %v1020, 64
    %v1022 = vpop.permute.xlu0 %1021
    %v1024 = vmul.f32 %v1011, %v1022
    %1026 = vrot.lane.b32.xlu0 %v1024, 64
    %v1027 = vpop.permute.xlu0 %1026
    %v1029 = vadd.f32 %v932, %v1027
    %v1030 = vtanh.pop %v1029
    %v1031 = vsub.f32 %v917, %v1030
    %1033 = vrot.lane.b32.xlu0 %v1031, 96
    %v1034 = vpop.permute.xlu0 %1033
    %v1036 = vmul.f32 %v1011, %v1034
    %1038 = vrot.lane.b32.xlu0 %v1036, 32
    %v1039 = vpop.permute.xlu0 %1038
    %v1041 = vadd.f32 %v1030, %v1039
    %v1044 = vunpack.c.l.s4 1983009808
    %v1045 = vunpack.c.0.s8 %v1044
    %v1046 = vlaneseq
    %v1047 = vshrl.u32 %v1046, 7
    %v1048 = vsub.s32 %v1045, %v1047
    %v1049 = vrot.slane %v1041, %v1048
    %1050 = vrot.lane.b32.xlu0 %v1049, 64
    %v1051 = vpop.permute.xlu0 %1050
    %s1053 = scalar_lea.vmem [#allocation3], 10
    %1054 = vst.msk [vmem:[%s1053] sm:$0x3] %vm433, %v1051
    %s1055 = scalar_lea.vmem [#allocation2], 24
    %v1056 = vld [vmem:[%s1055] sm:$0xf]
    %v1057 = vsel %vm152, %v1051, 0
    %1059 = vmatprep.subr.mxu0 0.0
    %1060 = vmatpush1.msra.mxu0 0.0
    %1061 = vmatprep.subr.mxu0 0.0
    %1062 = vmatpush1.msra.mxu0 0.0
    %1063 = vmatprep.subr.mxu0 0.0
    %1064 = vmatpush1.msra.mxu0 0.0
    %1065 = vmatprep.subr.mxu0 0.0
    %1066 = vmatpush1.msra.mxu0 0.0
    %1067 = vmatprep.subr.mxu0 0.0
    %1068 = vmatpush1.msra.mxu0 0.0
    %1069 = vmatprep.subr.mxu0 0.0
    %1070 = vmatpush1.msra.mxu0 0.0
    %1071 = vmatprep.subr.mxu0 0.0
    %1072 = vmatpush1.msra.mxu0 0.0
    %1073 = vmatprep.subr.mxu0 0.0
    %1074 = vmatpush1.msra.mxu0 0.0
    %1075 = vmatprep.subr.mxu0 0.0
    %1076 = vmatpush1.msra.mxu0 0.0
    %1077 = vmatprep.subr.mxu0 0.0
    %1078 = vmatpush1.msra.mxu0 0.0
    %1079 = vmatprep.subr.mxu0 0.0
    %1080 = vmatpush1.msra.mxu0 0.0
    %1081 = vmatprep.subr.mxu0 0.0
    %1082 = vmatpush1.msra.mxu0 0.0
    %1083 = vmatprep.subr.mxu0 0.0
    %1084 = vmatpush1.msra.mxu0 %v296
    %1085 = vmatprep.subr.mxu0 0.0
    %1086 = vmatpush1.msra.mxu0 %v295
    %1087 = vmatprep.subr.mxu0 0.0
    %1088 = vmatpush1.msra.mxu0 %v294
    %1089 = vmatprep.subr.mxu0 0.0
    %1090 = vmatpush1.msra.mxu0 %v293
    %1091 = vmatprep.subr.mxu0 0.0
    %1092 = vmatpush2.msra.mxu0 0.0
    %1093 = vmatprep.subr.mxu0 0.0
    %1094 = vmatpush2.msra.mxu0 0.0
    %1095 = vmatprep.subr.mxu0 0.0
    %1096 = vmatpush2.msra.mxu0 0.0
    %1097 = vmatprep.subr.mxu0 0.0
    %1098 = vmatpush2.msra.mxu0 0.0
    %1099 = vmatprep.subr.mxu0 0.0
    %1100 = vmatpush2.msra.mxu0 0.0
    %1101 = vmatprep.subr.mxu0 0.0
    %1102 = vmatpush2.msra.mxu0 0.0
    %1103 = vmatprep.subr.mxu0 0.0
    %1104 = vmatpush2.msra.mxu0 0.0
    %1105 = vmatprep.subr.mxu0 0.0
    %1106 = vmatpush2.msra.mxu0 0.0
    %1107 = vmatprep.subr.mxu0 0.0
    %1108 = vmatpush2.msra.mxu0 0.0
    %1109 = vmatprep.subr.mxu0 0.0
    %1110 = vmatpush2.msra.mxu0 0.0
    %1111 = vmatprep.subr.mxu0 0.0
    %1112 = vmatpush2.msra.mxu0 0.0
    %1113 = vmatprep.subr.mxu0 0.0
    %1114 = vmatpush2.msra.mxu0 0.0
    %1115 = vmatprep.subr.mxu0 0.0
    %1116 = vmatpush2.msra.mxu0 0.0
    %1117 = vmatprep.subr.mxu0 0.0
    %1118 = vmatpush2.msra.mxu0 0.0
    %1119 = vmatprep.subr.mxu0 0.0
    %1120 = vmatpush2.msra.mxu0 0.0
    %1121 = vmatprep.subr.mxu0 0.0
    %1122 = vmatpush2.msra.mxu0 0.0
    %1123 = vmatprep.mubr.f32.mxu0 0.0
    %1124 = vmatmul.mubr.f32.gmra.mxu0 %v1057
    %v1125 = vpop.f32.mrf.mxu0
    %v1126 = vadd.f32 0.0, %v1125
    %v1127 = vpop.f32.mrf.mxu0
    %1128 = vdwg.mxu0
    %v1129 = vadd.f32 %v1056, %v1126
    %v1130 = vxor.u32 %v1129, 2147483648
    %v1131 = vmul.f32 %v1130, 1.442695
    %v1132 = vpow.pop %v1131
    %v1133 = vadd.f32 %v1132, 1.0
    %v1134 = vrcp.pop %v1133
    %v1135 = vmul.f32 1.0, %v1134
    %v1136 = vadd.f32 %v1126, %v390
    %v1139 = vunpack.c.l.s4 1983009808
    %v1140 = vunpack.c.0.s8 %v1139
    %v1141 = vlaneseq
    %v1142 = vshrl.u32 %v1141, 7
    %v1143 = vsub.s32 %v1140, %v1142
    %v1144 = vrot.slane %v1136, %v1143
    %1145 = vrot.lane.b32.xlu0 %v1144, 64
    %v1146 = vpop.permute.xlu0 %1145
    %v1148 = vmul.f32 %v1135, %v1146
    %1150 = vrot.lane.b32.xlu0 %v1148, 64
    %v1151 = vpop.permute.xlu0 %1150
    %v1153 = vadd.f32 %v1056, %v1151
    %v1154 = vtanh.pop %v1153
    %v1155 = vsub.f32 %v1041, %v1154
    %1157 = vrot.lane.b32.xlu0 %v1155, 96
    %v1158 = vpop.permute.xlu0 %1157
    %v1160 = vmul.f32 %v1135, %v1158
    %1162 = vrot.lane.b32.xlu0 %v1160, 32
    %v1163 = vpop.permute.xlu0 %1162
    %v1165 = vadd.f32 %v1154, %v1163
    %v1168 = vunpack.c.l.s4 1983009808
    %v1169 = vunpack.c.0.s8 %v1168
    %v1170 = vlaneseq
    %v1171 = vshrl.u32 %v1170, 7
    %v1172 = vsub.s32 %v1169, %v1171
    %v1173 = vrot.slane %v1165, %v1172
    %1174 = vrot.lane.b32.xlu0 %v1173, 64
    %v1175 = vpop.permute.xlu0 %1174
    %s1177 = scalar_lea.vmem [#allocation3], 12
    %1178 = vst.msk [vmem:[%s1177] sm:$0x3] %vm433, %v1175
    %s1179 = scalar_lea.vmem [#allocation2], 28
    %v1180 = vld [vmem:[%s1179] sm:$0xf]
    %v1181 = vsel %vm152, %v1175, 0
    %1183 = vmatprep.subr.mxu0 0.0
    %1184 = vmatpush1.msra.mxu0 0.0
    %1185 = vmatprep.subr.mxu0 0.0
    %1186 = vmatpush1.msra.mxu0 0.0
    %1187 = vmatprep.subr.mxu0 0.0
    %1188 = vmatpush1.msra.mxu0 0.0
    %1189 = vmatprep.subr.mxu0 0.0
    %1190 = vmatpush1.msra.mxu0 0.0
    %1191 = vmatprep.subr.mxu0 0.0
    %1192 = vmatpush1.msra.mxu0 0.0
    %1193 = vmatprep.subr.mxu0 0.0
    %1194 = vmatpush1.msra.mxu0 0.0
    %1195 = vmatprep.subr.mxu0 0.0
    %1196 = vmatpush1.msra.mxu0 0.0
    %1197 = vmatprep.subr.mxu0 0.0
    %1198 = vmatpush1.msra.mxu0 0.0
    %1199 = vmatprep.subr.mxu0 0.0
    %1200 = vmatpush1.msra.mxu0 0.0
    %1201 = vmatprep.subr.mxu0 0.0
    %1202 = vmatpush1.msra.mxu0 0.0
    %1203 = vmatprep.subr.mxu0 0.0
    %1204 = vmatpush1.msra.mxu0 0.0
    %1205 = vmatprep.subr.mxu0 0.0
    %1206 = vmatpush1.msra.mxu0 0.0
    %1207 = vmatprep.subr.mxu0 0.0
    %1208 = vmatpush1.msra.mxu0 %v296
    %1209 = vmatprep.subr.mxu0 0.0
    %1210 = vmatpush1.msra.mxu0 %v295
    %1211 = vmatprep.subr.mxu0 0.0
    %1212 = vmatpush1.msra.mxu0 %v294
    %1213 = vmatprep.subr.mxu0 0.0
    %1214 = vmatpush1.msra.mxu0 %v293
    %1215 = vmatprep.subr.mxu0 0.0
    %1216 = vmatpush2.msra.mxu0 0.0
    %1217 = vmatprep.subr.mxu0 0.0
    %1218 = vmatpush2.msra.mxu0 0.0
    %1219 = vmatprep.subr.mxu0 0.0
    %1220 = vmatpush2.msra.mxu0 0.0
    %1221 = vmatprep.subr.mxu0 0.0
    %1222 = vmatpush2.msra.mxu0 0.0
    %1223 = vmatprep.subr.mxu0 0.0
    %1224 = vmatpush2.msra.mxu0 0.0
    %1225 = vmatprep.subr.mxu0 0.0
    %1226 = vmatpush2.msra.mxu0 0.0
    %1227 = vmatprep.subr.mxu0 0.0
    %1228 = vmatpush2.msra.mxu0 0.0
    %1229 = vmatprep.subr.mxu0 0.0
    %1230 = vmatpush2.msra.mxu0 0.0
    %1231 = vmatprep.subr.mxu0 0.0
    %1232 = vmatpush2.msra.mxu0 0.0
    %1233 = vmatprep.subr.mxu0 0.0
    %1234 = vmatpush2.msra.mxu0 0.0
    %1235 = vmatprep.subr.mxu0 0.0
    %1236 = vmatpush2.msra.mxu0 0.0
    %1237 = vmatprep.subr.mxu0 0.0
    %1238 = vmatpush2.msra.mxu0 0.0
    %1239 = vmatprep.subr.mxu0 0.0
    %1240 = vmatpush2.msra.mxu0 0.0
    %1241 = vmatprep.subr.mxu0 0.0
    %1242 = vmatpush2.msra.mxu0 0.0
    %1243 = vmatprep.subr.mxu0 0.0
    %1244 = vmatpush2.msra.mxu0 0.0
    %1245 = vmatprep.subr.mxu0 0.0
    %1246 = vmatpush2.msra.mxu0 0.0
    %1247 = vmatprep.mubr.f32.mxu0 0.0
    %1248 = vmatmul.mubr.f32.gmra.mxu0 %v1181
    %v1249 = vpop.f32.mrf.mxu0
    %v1250 = vadd.f32 0.0, %v1249
    %v1251 = vpop.f32.mrf.mxu0
    %1252 = vdwg.mxu0
    %v1253 = vadd.f32 %v1180, %v1250
    %v1254 = vxor.u32 %v1253, 2147483648
    %v1255 = vmul.f32 %v1254, 1.442695
    %v1256 = vpow.pop %v1255
    %v1257 = vadd.f32 %v1256, 1.0
    %v1258 = vrcp.pop %v1257
    %v1259 = vmul.f32 1.0, %v1258
    %v1260 = vadd.f32 %v1250, %v390
    %v1263 = vunpack.c.l.s4 1983009808
    %v1264 = vunpack.c.0.s8 %v1263
    %v1265 = vlaneseq
    %v1266 = vshrl.u32 %v1265, 7
    %v1267 = vsub.s32 %v1264, %v1266
    %v1268 = vrot.slane %v1260, %v1267
    %1269 = vrot.lane.b32.xlu0 %v1268, 64
    %v1270 = vpop.permute.xlu0 %1269
    %v1272 = vmul.f32 %v1259, %v1270
    %1274 = vrot.lane.b32.xlu0 %v1272, 64
    %v1275 = vpop.permute.xlu0 %1274
    %v1277 = vadd.f32 %v1180, %v1275
    %v1278 = vtanh.pop %v1277
    %v1279 = vsub.f32 %v1165, %v1278
    %1281 = vrot.lane.b32.xlu0 %v1279, 96
    %v1282 = vpop.permute.xlu0 %1281
    %v1284 = vmul.f32 %v1259, %v1282
    %1286 = vrot.lane.b32.xlu0 %v1284, 32
    %v1287 = vpop.permute.xlu0 %1286
    %v1289 = vadd.f32 %v1278, %v1287
    %v1292 = vunpack.c.l.s4 1983009808
    %v1293 = vunpack.c.0.s8 %v1292
    %v1294 = vlaneseq
    %v1295 = vshrl.u32 %v1294, 7
    %v1296 = vsub.s32 %v1293, %v1295
    %v1297 = vrot.slane %v1289, %v1296
    %1298 = vrot.lane.b32.xlu0 %v1297, 64
    %v1299 = vpop.permute.xlu0 %1298
    %s1301 = scalar_lea.vmem [#allocation3], 14
    %1302 = vst.msk [vmem:[%s1301] sm:$0x3] %vm433, %v1299
    %v1303 = vld [vmem:[%s1179] sm:$0xf]
    %1304 = vmatprep.subr.mxu0 0.0
    %1305 = vmatpush1.msra.mxu0 0.0
    %1306 = vmatprep.subr.mxu0 0.0
    %1307 = vmatpush1.msra.mxu0 0.0
    %1308 = vmatprep.subr.mxu0 0.0
    %1309 = vmatpush1.msra.mxu0 0.0
    %1310 = vmatprep.subr.mxu0 0.0
    %1311 = vmatpush1.msra.mxu0 0.0
    %1312 = vmatprep.subr.mxu0 0.0
    %1313 = vmatpush1.msra.mxu0 0.0
    %1314 = vmatprep.subr.mxu0 0.0
    %1315 = vmatpush1.msra.mxu0 0.0
    %1316 = vmatprep.subr.mxu0 0.0
    %1317 = vmatpush1.msra.mxu0 0.0
    %1318 = vmatprep.subr.mxu0 0.0
    %1319 = vmatpush1.msra.mxu0 0.0
    %1320 = vmatprep.subr.mxu0 0.0
    %1321 = vmatpush1.msra.mxu0 0.0
    %1322 = vmatprep.subr.mxu0 0.0
    %1323 = vmatpush1.msra.mxu0 0.0
    %1324 = vmatprep.subr.mxu0 0.0
    %1325 = vmatpush1.msra.mxu0 0.0
    %1326 = vmatprep.subr.mxu0 0.0
    %1327 = vmatpush1.msra.mxu0 0.0
    %1328 = vmatprep.subr.mxu0 0.0
    %1329 = vmatpush1.msra.mxu0 %v301
    %1330 = vmatprep.subr.mxu0 0.0
    %1331 = vmatpush1.msra.mxu0 %v300
    %1332 = vmatprep.subr.mxu0 0.0
    %1333 = vmatpush1.msra.mxu0 %v299
    %1334 = vmatprep.subr.mxu0 0.0
    %1335 = vmatpush1.msra.mxu0 %v298
    %1336 = vmatprep.subr.mxu0 0.0
    %1337 = vmatpush2.msra.mxu0 0.0
    %1338 = vmatprep.subr.mxu0 0.0
    %1339 = vmatpush2.msra.mxu0 0.0
    %1340 = vmatprep.subr.mxu0 0.0
    %1341 = vmatpush2.msra.mxu0 0.0
    %1342 = vmatprep.subr.mxu0 0.0
    %1343 = vmatpush2.msra.mxu0 0.0
    %1344 = vmatprep.subr.mxu0 0.0
    %1345 = vmatpush2.msra.mxu0 0.0
    %1346 = vmatprep.subr.mxu0 0.0
    %1347 = vmatpush2.msra.mxu0 0.0
    %1348 = vmatprep.subr.mxu0 0.0
    %1349 = vmatpush2.msra.mxu0 0.0
    %1350 = vmatprep.subr.mxu0 0.0
    %1351 = vmatpush2.msra.mxu0 0.0
    %1352 = vmatprep.subr.mxu0 0.0
    %1353 = vmatpush2.msra.mxu0 0.0
    %1354 = vmatprep.subr.mxu0 0.0
    %1355 = vmatpush2.msra.mxu0 0.0
    %1356 = vmatprep.subr.mxu0 0.0
    %1357 = vmatpush2.msra.mxu0 0.0
    %1358 = vmatprep.subr.mxu0 0.0
    %1359 = vmatpush2.msra.mxu0 0.0
    %1360 = vmatprep.subr.mxu0 0.0
    %1361 = vmatpush2.msra.mxu0 0.0
    %1362 = vmatprep.subr.mxu0 0.0
    %1363 = vmatpush2.msra.mxu0 0.0
    %1364 = vmatprep.subr.mxu0 0.0
    %1365 = vmatpush2.msra.mxu0 0.0
    %1366 = vmatprep.subr.mxu0 0.0
    %1367 = vmatpush2.msra.mxu0 0.0
    %1368 = vmatprep.mubr.f32.mxu0 0.0
    %1369 = vmatmul.mubr.f32.gmra.mxu0 %v305
    %v1370 = vpop.f32.mrf.mxu0
    %v1371 = vadd.f32 0.0, %v1370
    %v1372 = vpop.f32.mrf.mxu0
    %1373 = vdwg.mxu0
    %v1376 = vunpack.c.l.s4 1983009808
    %v1377 = vunpack.c.0.s8 %v1376
    %v1378 = vlaneseq
    %v1379 = vshrl.u32 %v1378, 7
    %v1380 = vsub.s32 %v1377, %v1379
    %v1381 = vrot.slane %v1371, %v1380
    %1382 = vrot.lane.b32.xlu0 %v1381, 96
    %v1383 = vpop.permute.xlu0 %1382
    %v1384 = vrot.slane %v1383, 6
    %vm1385 = vcmask 785408
    %v1386 = vsel %vm1385, %v1384, %v1383
    %v1388 = vadd.f32 %v1303, %v1386
    %v1389 = vxor.u32 %v1388, 2147483648
    %v1390 = vmul.f32 %v1389, 1.442695
    %v1391 = vpow.pop %v1390
    %v1392 = vadd.f32 %v1391, 1.0
    %v1393 = vrcp.pop %v1392
    %v1394 = vmul.f32 1.0, %v1393
    %v1396 = vlaneseq
    %v1397 = vshrl.u32 %v1396, 7
    %v1398 = vsub.s32 0, %v1397
    %v1399 = vrot.slane %v302, %v1398
    %1400 = vrot.lane.b32.xlu0 %v1399, 64
    %v1401 = vpop.permute.xlu0 %1400
    %v1403 = vadd.f32 %v1371, %v1401
    %v1406 = vunpack.c.l.s4 1983009808
    %v1407 = vunpack.c.0.s8 %v1406
    %v1408 = vlaneseq
    %v1409 = vshrl.u32 %v1408, 7
    %v1410 = vsub.s32 %v1407, %v1409
    %v1411 = vrot.slane %v1403, %v1410
    %1412 = vrot.lane.b32.xlu0 %v1411, 32
    %v1413 = vpop.permute.xlu0 %1412
    %v1415 = vmul.f32 %v1394, %v1413
    %1417 = vrot.lane.b32.xlu0 %v1303, 96
    %v1418 = vpop.permute.xlu0 %1417
    %v1419 = vrot.slane %v1418, 2
    %1422 = vrot.lane.b32.xlu0 %v1415, 32
    %v1423 = vpop.permute.xlu0 %1422
    %v1425 = vadd.f32 %v1419, %v1423
    %v1426 = vtanh.pop %v1425
    %v1427 = vsub.f32 0.0, %v1426
    %v1429 = vrot.slane %v1394, 2
    %v1431 = vmul.f32 %v1429, %v1427
    %v1432 = vadd.f32 %v1426, %v1431
    %v1433 = vld [vmem:[%s1301] sm:$0x3]
    %v1434 = vadd.f32 %v1433, %v1432
    %s1435 = scalar_lea.vmem [#allocation12], 14
    %1436 = vst.msk [vmem:[%s1435] sm:$0x3] %vm433, %v1434
    %v1437 = vld [vmem:[%s1055] sm:$0xf]
    %v1439 = vsel %vm152, %v1432, 0
    %1441 = vmatprep.subr.mxu0 0.0
    %1442 = vmatpush1.msra.mxu0 0.0
    %1443 = vmatprep.subr.mxu0 0.0
    %1444 = vmatpush1.msra.mxu0 0.0
    %1445 = vmatprep.subr.mxu0 0.0
    %1446 = vmatpush1.msra.mxu0 0.0
    %1447 = vmatprep.subr.mxu0 0.0
    %1448 = vmatpush1.msra.mxu0 0.0
    %1449 = vmatprep.subr.mxu0 0.0
    %1450 = vmatpush1.msra.mxu0 0.0
    %1451 = vmatprep.subr.mxu0 0.0
    %1452 = vmatpush1.msra.mxu0 0.0
    %1453 = vmatprep.subr.mxu0 0.0
    %1454 = vmatpush1.msra.mxu0 0.0
    %1455 = vmatprep.subr.mxu0 0.0
    %1456 = vmatpush1.msra.mxu0 0.0
    %1457 = vmatprep.subr.mxu0 0.0
    %1458 = vmatpush1.msra.mxu0 0.0
    %1459 = vmatprep.subr.mxu0 0.0
    %1460 = vmatpush1.msra.mxu0 0.0
    %1461 = vmatprep.subr.mxu0 0.0
    %1462 = vmatpush1.msra.mxu0 0.0
    %1463 = vmatprep.subr.mxu0 0.0
    %1464 = vmatpush1.msra.mxu0 0.0
    %1465 = vmatprep.subr.mxu0 0.0
    %1466 = vmatpush1.msra.mxu0 %v301
    %1467 = vmatprep.subr.mxu0 0.0
    %1468 = vmatpush1.msra.mxu0 %v300
    %1469 = vmatprep.subr.mxu0 0.0
    %1470 = vmatpush1.msra.mxu0 %v299
    %1471 = vmatprep.subr.mxu0 0.0
    %1472 = vmatpush1.msra.mxu0 %v298
    %1473 = vmatprep.subr.mxu0 0.0
    %1474 = vmatpush2.msra.mxu0 0.0
    %1475 = vmatprep.subr.mxu0 0.0
    %1476 = vmatpush2.msra.mxu0 0.0
    %1477 = vmatprep.subr.mxu0 0.0
    %1478 = vmatpush2.msra.mxu0 0.0
    %1479 = vmatprep.subr.mxu0 0.0
    %1480 = vmatpush2.msra.mxu0 0.0
    %1481 = vmatprep.subr.mxu0 0.0
    %1482 = vmatpush2.msra.mxu0 0.0
    %1483 = vmatprep.subr.mxu0 0.0
    %1484 = vmatpush2.msra.mxu0 0.0
    %1485 = vmatprep.subr.mxu0 0.0
    %1486 = vmatpush2.msra.mxu0 0.0
    %1487 = vmatprep.subr.mxu0 0.0
    %1488 = vmatpush2.msra.mxu0 0.0
    %1489 = vmatprep.subr.mxu0 0.0
    %1490 = vmatpush2.msra.mxu0 0.0
    %1491 = vmatprep.subr.mxu0 0.0
    %1492 = vmatpush2.msra.mxu0 0.0
    %1493 = vmatprep.subr.mxu0 0.0
    %1494 = vmatpush2.msra.mxu0 0.0
    %1495 = vmatprep.subr.mxu0 0.0
    %1496 = vmatpush2.msra.mxu0 0.0
    %1497 = vmatprep.subr.mxu0 0.0
    %1498 = vmatpush2.msra.mxu0 0.0
    %1499 = vmatprep.subr.mxu0 0.0
    %1500 = vmatpush2.msra.mxu0 0.0
    %1501 = vmatprep.subr.mxu0 0.0
    %1502 = vmatpush2.msra.mxu0 0.0
    %1503 = vmatprep.subr.mxu0 0.0
    %1504 = vmatpush2.msra.mxu0 0.0
    %1505 = vmatprep.mubr.f32.mxu0 0.0
    %1506 = vmatmul.mubr.f32.gmra.mxu0 %v1439
    %v1507 = vpop.f32.mrf.mxu0
    %v1508 = vadd.f32 0.0, %v1507
    %v1509 = vpop.f32.mrf.mxu0
    %1510 = vdwg.mxu0
    %v1513 = vunpack.c.l.s4 1983009808
    %v1514 = vunpack.c.0.s8 %v1513
    %v1515 = vlaneseq
    %v1516 = vshrl.u32 %v1515, 7
    %v1517 = vsub.s32 %v1514, %v1516
    %v1518 = vrot.slane %v1508, %v1517
    %1519 = vrot.lane.b32.xlu0 %v1518, 96
    %v1520 = vpop.permute.xlu0 %1519
    %v1521 = vrot.slane %v1520, 6
    %v1522 = vsel %vm1385, %v1521, %v1520
    %v1524 = vadd.f32 %v1437, %v1522
    %v1525 = vxor.u32 %v1524, 2147483648
    %v1526 = vmul.f32 %v1525, 1.442695
    %v1527 = vpow.pop %v1526
    %v1528 = vadd.f32 %v1527, 1.0
    %v1529 = vrcp.pop %v1528
    %v1530 = vmul.f32 1.0, %v1529
    %v1531 = vadd.f32 %v1508, %v1401
    %v1534 = vunpack.c.l.s4 1983009808
    %v1535 = vunpack.c.0.s8 %v1534
    %v1536 = vlaneseq
    %v1537 = vshrl.u32 %v1536, 7
    %v1538 = vsub.s32 %v1535, %v1537
    %v1539 = vrot.slane %v1531, %v1538
    %1540 = vrot.lane.b32.xlu0 %v1539, 32
    %v1541 = vpop.permute.xlu0 %1540
    %v1543 = vmul.f32 %v1530, %v1541
    %1545 = vrot.lane.b32.xlu0 %v1437, 96
    %v1546 = vpop.permute.xlu0 %1545
    %v1547 = vrot.slane %v1546, 2
    %1550 = vrot.lane.b32.xlu0 %v1543, 32
    %v1551 = vpop.permute.xlu0 %1550
    %v1553 = vadd.f32 %v1547, %v1551
    %v1554 = vtanh.pop %v1553
    %v1555 = vsub.f32 %v1432, %v1554
    %v1557 = vrot.slane %v1530, 2
    %v1559 = vmul.f32 %v1557, %v1555
    %v1560 = vadd.f32 %v1554, %v1559
    %v1561 = vld [vmem:[%s1177] sm:$0x3]
    %v1562 = vadd.f32 %v1561, %v1560
    %s1563 = scalar_lea.vmem [#allocation12], 12
    %1564 = vst.msk [vmem:[%s1563] sm:$0x3] %vm433, %v1562
    %v1565 = vld [vmem:[%s931] sm:$0xf]
    %v1567 = vsel %vm152, %v1560, 0
    %1569 = vmatprep.subr.mxu0 0.0
    %1570 = vmatpush1.msra.mxu0 0.0
    %1571 = vmatprep.subr.mxu0 0.0
    %1572 = vmatpush1.msra.mxu0 0.0
    %1573 = vmatprep.subr.mxu0 0.0
    %1574 = vmatpush1.msra.mxu0 0.0
    %1575 = vmatprep.subr.mxu0 0.0
    %1576 = vmatpush1.msra.mxu0 0.0
    %1577 = vmatprep.subr.mxu0 0.0
    %1578 = vmatpush1.msra.mxu0 0.0
    %1579 = vmatprep.subr.mxu0 0.0
    %1580 = vmatpush1.msra.mxu0 0.0
    %1581 = vmatprep.subr.mxu0 0.0
    %1582 = vmatpush1.msra.mxu0 0.0
    %1583 = vmatprep.subr.mxu0 0.0
    %1584 = vmatpush1.msra.mxu0 0.0
    %1585 = vmatprep.subr.mxu0 0.0
    %1586 = vmatpush1.msra.mxu0 0.0
    %1587 = vmatprep.subr.mxu0 0.0
    %1588 = vmatpush1.msra.mxu0 0.0
    %1589 = vmatprep.subr.mxu0 0.0
    %1590 = vmatpush1.msra.mxu0 0.0
    %1591 = vmatprep.subr.mxu0 0.0
    %1592 = vmatpush1.msra.mxu0 0.0
    %1593 = vmatprep.subr.mxu0 0.0
    %1594 = vmatpush1.msra.mxu0 %v301
    %1595 = vmatprep.subr.mxu0 0.0
    %1596 = vmatpush1.msra.mxu0 %v300
    %1597 = vmatprep.subr.mxu0 0.0
    %1598 = vmatpush1.msra.mxu0 %v299
    %1599 = vmatprep.subr.mxu0 0.0
    %1600 = vmatpush1.msra.mxu0 %v298
    %1601 = vmatprep.subr.mxu0 0.0
    %1602 = vmatpush2.msra.mxu0 0.0
    %1603 = vmatprep.subr.mxu0 0.0
    %1604 = vmatpush2.msra.mxu0 0.0
    %1605 = vmatprep.subr.mxu0 0.0
    %1606 = vmatpush2.msra.mxu0 0.0
    %1607 = vmatprep.subr.mxu0 0.0
    %1608 = vmatpush2.msra.mxu0 0.0
    %1609 = vmatprep.subr.mxu0 0.0
    %1610 = vmatpush2.msra.mxu0 0.0
    %1611 = vmatprep.subr.mxu0 0.0
    %1612 = vmatpush2.msra.mxu0 0.0
    %1613 = vmatprep.subr.mxu0 0.0
    %1614 = vmatpush2.msra.mxu0 0.0
    %1615 = vmatprep.subr.mxu0 0.0
    %1616 = vmatpush2.msra.mxu0 0.0
    %1617 = vmatprep.subr.mxu0 0.0
    %1618 = vmatpush2.msra.mxu0 0.0
    %1619 = vmatprep.subr.mxu0 0.0
    %1620 = vmatpush2.msra.mxu0 0.0
    %1621 = vmatprep.subr.mxu0 0.0
    %1622 = vmatpush2.msra.mxu0 0.0
    %1623 = vmatprep.subr.mxu0 0.0
    %1624 = vmatpush2.msra.mxu0 0.0
    %1625 = vmatprep.subr.mxu0 0.0
    %1626 = vmatpush2.msra.mxu0 0.0
    %1627 = vmatprep.subr.mxu0 0.0
    %1628 = vmatpush2.msra.mxu0 0.0
    %1629 = vmatprep.subr.mxu0 0.0
    %1630 = vmatpush2.msra.mxu0 0.0
    %1631 = vmatprep.subr.mxu0 0.0
    %1632 = vmatpush2.msra.mxu0 0.0
    %1633 = vmatprep.mubr.f32.mxu0 0.0
    %1634 = vmatmul.mubr.f32.gmra.mxu0 %v1567
    %v1635 = vpop.f32.mrf.mxu0
    %v1636 = vadd.f32 0.0, %v1635
    %v1637 = vpop.f32.mrf.mxu0
    %1638 = vdwg.mxu0
    %v1641 = vunpack.c.l.s4 1983009808
    %v1642 = vunpack.c.0.s8 %v1641
    %v1643 = vlaneseq
    %v1644 = vshrl.u32 %v1643, 7
    %v1645 = vsub.s32 %v1642, %v1644
    %v1646 = vrot.slane %v1636, %v1645
    %1647 = vrot.lane.b32.xlu0 %v1646, 96
    %v1648 = vpop.permute.xlu0 %1647
    %v1649 = vrot.slane %v1648, 6
    %v1650 = vsel %vm1385, %v1649, %v1648
    %v1652 = vadd.f32 %v1565, %v1650
    %v1653 = vxor.u32 %v1652, 2147483648
    %v1654 = vmul.f32 %v1653, 1.442695
    %v1655 = vpow.pop %v1654
    %v1656 = vadd.f32 %v1655, 1.0
    %v1657 = vrcp.pop %v1656
    %v1658 = vmul.f32 1.0, %v1657
    %v1659 = vadd.f32 %v1636, %v1401
    %v1662 = vunpack.c.l.s4 1983009808
    %v1663 = vunpack.c.0.s8 %v1662
    %v1664 = vlaneseq
    %v1665 = vshrl.u32 %v1664, 7
    %v1666 = vsub.s32 %v1663, %v1665
    %v1667 = vrot.slane %v1659, %v1666
    %1668 = vrot.lane.b32.xlu0 %v1667, 32
    %v1669 = vpop.permute.xlu0 %1668
    %v1671 = vmul.f32 %v1658, %v1669
    %1673 = vrot.lane.b32.xlu0 %v1565, 96
    %v1674 = vpop.permute.xlu0 %1673
    %v1675 = vrot.slane %v1674, 2
    %1678 = vrot.lane.b32.xlu0 %v1671, 32
    %v1679 = vpop.permute.xlu0 %1678
    %v1681 = vadd.f32 %v1675, %v1679
    %v1682 = vtanh.pop %v1681
    %v1683 = vsub.f32 %v1560, %v1682
    %v1685 = vrot.slane %v1658, 2
    %v1687 = vmul.f32 %v1685, %v1683
    %v1688 = vadd.f32 %v1682, %v1687
    %v1689 = vld [vmem:[%s1053] sm:$0x3]
    %v1690 = vadd.f32 %v1689, %v1688
    %s1691 = scalar_lea.vmem [#allocation12], 10
    %1692 = vst.msk [vmem:[%s1691] sm:$0x3] %vm433, %v1690
    %v1693 = vld [vmem:[%s807] sm:$0xf]
    %v1695 = vsel %vm152, %v1688, 0
    %1697 = vmatprep.subr.mxu0 0.0
    %1698 = vmatpush1.msra.mxu0 0.0
    %1699 = vmatprep.subr.mxu0 0.0
    %1700 = vmatpush1.msra.mxu0 0.0
    %1701 = vmatprep.subr.mxu0 0.0
    %1702 = vmatpush1.msra.mxu0 0.0
    %1703 = vmatprep.subr.mxu0 0.0
    %1704 = vmatpush1.msra.mxu0 0.0
    %1705 = vmatprep.subr.mxu0 0.0
    %1706 = vmatpush1.msra.mxu0 0.0
    %1707 = vmatprep.subr.mxu0 0.0
    %1708 = vmatpush1.msra.mxu0 0.0
    %1709 = vmatprep.subr.mxu0 0.0
    %1710 = vmatpush1.msra.mxu0 0.0
    %1711 = vmatprep.subr.mxu0 0.0
    %1712 = vmatpush1.msra.mxu0 0.0
    %1713 = vmatprep.subr.mxu0 0.0
    %1714 = vmatpush1.msra.mxu0 0.0
    %1715 = vmatprep.subr.mxu0 0.0
    %1716 = vmatpush1.msra.mxu0 0.0
    %1717 = vmatprep.subr.mxu0 0.0
    %1718 = vmatpush1.msra.mxu0 0.0
    %1719 = vmatprep.subr.mxu0 0.0
    %1720 = vmatpush1.msra.mxu0 0.0
    %1721 = vmatprep.subr.mxu0 0.0
    %1722 = vmatpush1.msra.mxu0 %v301
    %1723 = vmatprep.subr.mxu0 0.0
    %1724 = vmatpush1.msra.mxu0 %v300
    %1725 = vmatprep.subr.mxu0 0.0
    %1726 = vmatpush1.msra.mxu0 %v299
    %1727 = vmatprep.subr.mxu0 0.0
    %1728 = vmatpush1.msra.mxu0 %v298
    %1729 = vmatprep.subr.mxu0 0.0
    %1730 = vmatpush2.msra.mxu0 0.0
    %1731 = vmatprep.subr.mxu0 0.0
    %1732 = vmatpush2.msra.mxu0 0.0
    %1733 = vmatprep.subr.mxu0 0.0
    %1734 = vmatpush2.msra.mxu0 0.0
    %1735 = vmatprep.subr.mxu0 0.0
    %1736 = vmatpush2.msra.mxu0 0.0
    %1737 = vmatprep.subr.mxu0 0.0
    %1738 = vmatpush2.msra.mxu0 0.0
    %1739 = vmatprep.subr.mxu0 0.0
    %1740 = vmatpush2.msra.mxu0 0.0
    %1741 = vmatprep.subr.mxu0 0.0
    %1742 = vmatpush2.msra.mxu0 0.0
    %1743 = vmatprep.subr.mxu0 0.0
    %1744 = vmatpush2.msra.mxu0 0.0
    %1745 = vmatprep.subr.mxu0 0.0
    %1746 = vmatpush2.msra.mxu0 0.0
    %1747 = vmatprep.subr.mxu0 0.0
    %1748 = vmatpush2.msra.mxu0 0.0
    %1749 = vmatprep.subr.mxu0 0.0
    %1750 = vmatpush2.msra.mxu0 0.0
    %1751 = vmatprep.subr.mxu0 0.0
    %1752 = vmatpush2.msra.mxu0 0.0
    %1753 = vmatprep.subr.mxu0 0.0
    %1754 = vmatpush2.msra.mxu0 0.0
    %1755 = vmatprep.subr.mxu0 0.0
    %1756 = vmatpush2.msra.mxu0 0.0
    %1757 = vmatprep.subr.mxu0 0.0
    %1758 = vmatpush2.msra.mxu0 0.0
    %1759 = vmatprep.subr.mxu0 0.0
    %1760 = vmatpush2.msra.mxu0 0.0
    %1761 = vmatprep.mubr.f32.mxu0 0.0
    %1762 = vmatmul.mubr.f32.gmra.mxu0 %v1695
    %v1763 = vpop.f32.mrf.mxu0
    %v1764 = vadd.f32 0.0, %v1763
    %v1765 = vpop.f32.mrf.mxu0
    %1766 = vdwg.mxu0
    %v1769 = vunpack.c.l.s4 1983009808
    %v1770 = vunpack.c.0.s8 %v1769
    %v1771 = vlaneseq
    %v1772 = vshrl.u32 %v1771, 7
    %v1773 = vsub.s32 %v1770, %v1772
    %v1774 = vrot.slane %v1764, %v1773
    %1775 = vrot.lane.b32.xlu0 %v1774, 96
    %v1776 = vpop.permute.xlu0 %1775
    %v1777 = vrot.slane %v1776, 6
    %v1778 = vsel %vm1385, %v1777, %v1776
    %v1780 = vadd.f32 %v1693, %v1778
    %v1781 = vxor.u32 %v1780, 2147483648
    %v1782 = vmul.f32 %v1781, 1.442695
    %v1783 = vpow.pop %v1782
    %v1784 = vadd.f32 %v1783, 1.0
    %v1785 = vrcp.pop %v1784
    %v1786 = vmul.f32 1.0, %v1785
    %v1787 = vadd.f32 %v1764, %v1401
    %v1790 = vunpack.c.l.s4 1983009808
    %v1791 = vunpack.c.0.s8 %v1790
    %v1792 = vlaneseq
    %v1793 = vshrl.u32 %v1792, 7
    %v1794 = vsub.s32 %v1791, %v1793
    %v1795 = vrot.slane %v1787, %v1794
    %1796 = vrot.lane.b32.xlu0 %v1795, 32
    %v1797 = vpop.permute.xlu0 %1796
    %v1799 = vmul.f32 %v1786, %v1797
    %1801 = vrot.lane.b32.xlu0 %v1693, 96
    %v1802 = vpop.permute.xlu0 %1801
    %v1803 = vrot.slane %v1802, 2
    %1806 = vrot.lane.b32.xlu0 %v1799, 32
    %v1807 = vpop.permute.xlu0 %1806
    %v1809 = vadd.f32 %v1803, %v1807
    %v1810 = vtanh.pop %v1809
    %v1811 = vsub.f32 %v1688, %v1810
    %v1813 = vrot.slane %v1786, 2
    %v1815 = vmul.f32 %v1813, %v1811
    %v1816 = vadd.f32 %v1810, %v1815
    %v1817 = vld [vmem:[%s929] sm:$0x3]
    %v1818 = vadd.f32 %v1817, %v1816
    %s1819 = scalar_lea.vmem [#allocation12], 8
    %1820 = vst.msk [vmem:[%s1819] sm:$0x3] %vm433, %v1818
    %v1821 = vld [vmem:[%s683] sm:$0xf]
    %v1823 = vsel %vm152, %v1816, 0
    %1825 = vmatprep.subr.mxu0 0.0
    %1826 = vmatpush1.msra.mxu0 0.0
    %1827 = vmatprep.subr.mxu0 0.0
    %1828 = vmatpush1.msra.mxu0 0.0
    %1829 = vmatprep.subr.mxu0 0.0
    %1830 = vmatpush1.msra.mxu0 0.0
    %1831 = vmatprep.subr.mxu0 0.0
    %1832 = vmatpush1.msra.mxu0 0.0
    %1833 = vmatprep.subr.mxu0 0.0
    %1834 = vmatpush1.msra.mxu0 0.0
    %1835 = vmatprep.subr.mxu0 0.0
    %1836 = vmatpush1.msra.mxu0 0.0
    %1837 = vmatprep.subr.mxu0 0.0
    %1838 = vmatpush1.msra.mxu0 0.0
    %1839 = vmatprep.subr.mxu0 0.0
    %1840 = vmatpush1.msra.mxu0 0.0
    %1841 = vmatprep.subr.mxu0 0.0
    %1842 = vmatpush1.msra.mxu0 0.0
    %1843 = vmatprep.subr.mxu0 0.0
    %1844 = vmatpush1.msra.mxu0 0.0
    %1845 = vmatprep.subr.mxu0 0.0
    %1846 = vmatpush1.msra.mxu0 0.0
    %1847 = vmatprep.subr.mxu0 0.0
    %1848 = vmatpush1.msra.mxu0 0.0
    %1849 = vmatprep.subr.mxu0 0.0
    %1850 = vmatpush1.msra.mxu0 %v301
    %1851 = vmatprep.subr.mxu0 0.0
    %1852 = vmatpush1.msra.mxu0 %v300
    %1853 = vmatprep.subr.mxu0 0.0
    %1854 = vmatpush1.msra.mxu0 %v299
    %1855 = vmatprep.subr.mxu0 0.0
    %1856 = vmatpush1.msra.mxu0 %v298
    %1857 = vmatprep.subr.mxu0 0.0
    %1858 = vmatpush2.msra.mxu0 0.0
    %1859 = vmatprep.subr.mxu0 0.0
    %1860 = vmatpush2.msra.mxu0 0.0
    %1861 = vmatprep.subr.mxu0 0.0
    %1862 = vmatpush2.msra.mxu0 0.0
    %1863 = vmatprep.subr.mxu0 0.0
    %1864 = vmatpush2.msra.mxu0 0.0
    %1865 = vmatprep.subr.mxu0 0.0
    %1866 = vmatpush2.msra.mxu0 0.0
    %1867 = vmatprep.subr.mxu0 0.0
    %1868 = vmatpush2.msra.mxu0 0.0
    %1869 = vmatprep.subr.mxu0 0.0
    %1870 = vmatpush2.msra.mxu0 0.0
    %1871 = vmatprep.subr.mxu0 0.0
    %1872 = vmatpush2.msra.mxu0 0.0
    %1873 = vmatprep.subr.mxu0 0.0
    %1874 = vmatpush2.msra.mxu0 0.0
    %1875 = vmatprep.subr.mxu0 0.0
    %1876 = vmatpush2.msra.mxu0 0.0
    %1877 = vmatprep.subr.mxu0 0.0
    %1878 = vmatpush2.msra.mxu0 0.0
    %1879 = vmatprep.subr.mxu0 0.0
    %1880 = vmatpush2.msra.mxu0 0.0
    %1881 = vmatprep.subr.mxu0 0.0
    %1882 = vmatpush2.msra.mxu0 0.0
    %1883 = vmatprep.subr.mxu0 0.0
    %1884 = vmatpush2.msra.mxu0 0.0
    %1885 = vmatprep.subr.mxu0 0.0
    %1886 = vmatpush2.msra.mxu0 0.0
    %1887 = vmatprep.subr.mxu0 0.0
    %1888 = vmatpush2.msra.mxu0 0.0
    %1889 = vmatprep.mubr.f32.mxu0 0.0
    %1890 = vmatmul.mubr.f32.gmra.mxu0 %v1823
    %v1891 = vpop.f32.mrf.mxu0
    %v1892 = vadd.f32 0.0, %v1891
    %v1893 = vpop.f32.mrf.mxu0
    %1894 = vdwg.mxu0
    %v1897 = vunpack.c.l.s4 1983009808
    %v1898 = vunpack.c.0.s8 %v1897
    %v1899 = vlaneseq
    %v1900 = vshrl.u32 %v1899, 7
    %v1901 = vsub.s32 %v1898, %v1900
    %v1902 = vrot.slane %v1892, %v1901
    %1903 = vrot.lane.b32.xlu0 %v1902, 96
    %v1904 = vpop.permute.xlu0 %1903
    %v1905 = vrot.slane %v1904, 6
    %v1906 = vsel %vm1385, %v1905, %v1904
    %v1908 = vadd.f32 %v1821, %v1906
    %v1909 = vxor.u32 %v1908, 2147483648
    %v1910 = vmul.f32 %v1909, 1.442695
    %v1911 = vpow.pop %v1910
    %v1912 = vadd.f32 %v1911, 1.0
    %v1913 = vrcp.pop %v1912
    %v1914 = vmul.f32 1.0, %v1913
    %v1915 = vadd.f32 %v1892, %v1401
    %v1918 = vunpack.c.l.s4 1983009808
    %v1919 = vunpack.c.0.s8 %v1918
    %v1920 = vlaneseq
    %v1921 = vshrl.u32 %v1920, 7
    %v1922 = vsub.s32 %v1919, %v1921
    %v1923 = vrot.slane %v1915, %v1922
    %1924 = vrot.lane.b32.xlu0 %v1923, 32
    %v1925 = vpop.permute.xlu0 %1924
    %v1927 = vmul.f32 %v1914, %v1925
    %1929 = vrot.lane.b32.xlu0 %v1821, 96
    %v1930 = vpop.permute.xlu0 %1929
    %v1931 = vrot.slane %v1930, 2
    %1934 = vrot.lane.b32.xlu0 %v1927, 32
    %v1935 = vpop.permute.xlu0 %1934
    %v1937 = vadd.f32 %v1931, %v1935
    %v1938 = vtanh.pop %v1937
    %v1939 = vsub.f32 %v1816, %v1938
    %v1941 = vrot.slane %v1914, 2
    %v1943 = vmul.f32 %v1941, %v1939
    %v1944 = vadd.f32 %v1938, %v1943
    %v1945 = vld [vmem:[%s805] sm:$0x3]
    %v1946 = vadd.f32 %v1945, %v1944
    %s1947 = scalar_lea.vmem [#allocation12], 6
    %1948 = vst.msk [vmem:[%s1947] sm:$0x3] %vm433, %v1946
    %v1949 = vld [vmem:[%s559] sm:$0xf]
    %v1951 = vsel %vm152, %v1944, 0
    %1953 = vmatprep.subr.mxu0 0.0
    %1954 = vmatpush1.msra.mxu0 0.0
    %1955 = vmatprep.subr.mxu0 0.0
    %1956 = vmatpush1.msra.mxu0 0.0
    %1957 = vmatprep.subr.mxu0 0.0
    %1958 = vmatpush1.msra.mxu0 0.0
    %1959 = vmatprep.subr.mxu0 0.0
    %1960 = vmatpush1.msra.mxu0 0.0
    %1961 = vmatprep.subr.mxu0 0.0
    %1962 = vmatpush1.msra.mxu0 0.0
    %1963 = vmatprep.subr.mxu0 0.0
    %1964 = vmatpush1.msra.mxu0 0.0
    %1965 = vmatprep.subr.mxu0 0.0
    %1966 = vmatpush1.msra.mxu0 0.0
    %1967 = vmatprep.subr.mxu0 0.0
    %1968 = vmatpush1.msra.mxu0 0.0
    %1969 = vmatprep.subr.mxu0 0.0
    %1970 = vmatpush1.msra.mxu0 0.0
    %1971 = vmatprep.subr.mxu0 0.0
    %1972 = vmatpush1.msra.mxu0 0.0
    %1973 = vmatprep.subr.mxu0 0.0
    %1974 = vmatpush1.msra.mxu0 0.0
    %1975 = vmatprep.subr.mxu0 0.0
    %1976 = vmatpush1.msra.mxu0 0.0
    %1977 = vmatprep.subr.mxu0 0.0
    %1978 = vmatpush1.msra.mxu0 %v301
    %1979 = vmatprep.subr.mxu0 0.0
    %1980 = vmatpush1.msra.mxu0 %v300
    %1981 = vmatprep.subr.mxu0 0.0
    %1982 = vmatpush1.msra.mxu0 %v299
    %1983 = vmatprep.subr.mxu0 0.0
    %1984 = vmatpush1.msra.mxu0 %v298
    %1985 = vmatprep.subr.mxu0 0.0
    %1986 = vmatpush2.msra.mxu0 0.0
    %1987 = vmatprep.subr.mxu0 0.0
    %1988 = vmatpush2.msra.mxu0 0.0
    %1989 = vmatprep.subr.mxu0 0.0
    %1990 = vmatpush2.msra.mxu0 0.0
    %1991 = vmatprep.subr.mxu0 0.0
    %1992 = vmatpush2.msra.mxu0 0.0
    %1993 = vmatprep.subr.mxu0 0.0
    %1994 = vmatpush2.msra.mxu0 0.0
    %1995 = vmatprep.subr.mxu0 0.0
    %1996 = vmatpush2.msra.mxu0 0.0
    %1997 = vmatprep.subr.mxu0 0.0
    %1998 = vmatpush2.msra.mxu0 0.0
    %1999 = vmatprep.subr.mxu0 0.0
    %2000 = vmatpush2.msra.mxu0 0.0
    %2001 = vmatprep.subr.mxu0 0.0
    %2002 = vmatpush2.msra.mxu0 0.0
    %2003 = vmatprep.subr.mxu0 0.0
    %2004 = vmatpush2.msra.mxu0 0.0
    %2005 = vmatprep.subr.mxu0 0.0
    %2006 = vmatpush2.msra.mxu0 0.0
    %2007 = vmatprep.subr.mxu0 0.0
    %2008 = vmatpush2.msra.mxu0 0.0
    %2009 = vmatprep.subr.mxu0 0.0
    %2010 = vmatpush2.msra.mxu0 0.0
    %2011 = vmatprep.subr.mxu0 0.0
    %2012 = vmatpush2.msra.mxu0 0.0
    %2013 = vmatprep.subr.mxu0 0.0
    %2014 = vmatpush2.msra.mxu0 0.0
    %2015 = vmatprep.subr.mxu0 0.0
    %2016 = vmatpush2.msra.mxu0 0.0
    %2017 = vmatprep.mubr.f32.mxu0 0.0
    %2018 = vmatmul.mubr.f32.gmra.mxu0 %v1951
    %v2019 = vpop.f32.mrf.mxu0
    %v2020 = vadd.f32 0.0, %v2019
    %v2021 = vpop.f32.mrf.mxu0
    %2022 = vdwg.mxu0
    %v2025 = vunpack.c.l.s4 1983009808
    %v2026 = vunpack.c.0.s8 %v2025
    %v2027 = vlaneseq
    %v2028 = vshrl.u32 %v2027, 7
    %v2029 = vsub.s32 %v2026, %v2028
    %v2030 = vrot.slane %v2020, %v2029
    %2031 = vrot.lane.b32.xlu0 %v2030, 96
    %v2032 = vpop.permute.xlu0 %2031
    %v2033 = vrot.slane %v2032, 6
    %v2034 = vsel %vm1385, %v2033, %v2032
    %v2036 = vadd.f32 %v1949, %v2034
    %v2037 = vxor.u32 %v2036, 2147483648
    %v2038 = vmul.f32 %v2037, 1.442695
    %v2039 = vpow.pop %v2038
    %v2040 = vadd.f32 %v2039, 1.0
    %v2041 = vrcp.pop %v2040
    %v2042 = vmul.f32 1.0, %v2041
    %v2043 = vadd.f32 %v2020, %v1401
    %v2046 = vunpack.c.l.s4 1983009808
    %v2047 = vunpack.c.0.s8 %v2046
    %v2048 = vlaneseq
    %v2049 = vshrl.u32 %v2048, 7
    %v2050 = vsub.s32 %v2047, %v2049
    %v2051 = vrot.slane %v2043, %v2050
    %2052 = vrot.lane.b32.xlu0 %v2051, 32
    %v2053 = vpop.permute.xlu0 %2052
    %v2055 = vmul.f32 %v2042, %v2053
    %2057 = vrot.lane.b32.xlu0 %v1949, 96
    %v2058 = vpop.permute.xlu0 %2057
    %v2059 = vrot.slane %v2058, 2
    %2062 = vrot.lane.b32.xlu0 %v2055, 32
    %v2063 = vpop.permute.xlu0 %2062
    %v2065 = vadd.f32 %v2059, %v2063
    %v2066 = vtanh.pop %v2065
    %v2067 = vsub.f32 %v1944, %v2066
    %v2069 = vrot.slane %v2042, 2
    %v2071 = vmul.f32 %v2069, %v2067
    %v2072 = vadd.f32 %v2066, %v2071
    %v2073 = vld [vmem:[%s681] sm:$0x3]
    %v2074 = vadd.f32 %v2073, %v2072
    %s2075 = scalar_lea.vmem [#allocation12], 4
    %2076 = vst.msk [vmem:[%s2075] sm:$0x3] %vm433, %v2074
    %v2077 = vld [vmem:[%s435] sm:$0xf]
    %v2079 = vsel %vm152, %v2072, 0
    %2081 = vmatprep.subr.mxu0 0.0
    %2082 = vmatpush1.msra.mxu0 0.0
    %2083 = vmatprep.subr.mxu0 0.0
    %2084 = vmatpush1.msra.mxu0 0.0
    %2085 = vmatprep.subr.mxu0 0.0
    %2086 = vmatpush1.msra.mxu0 0.0
    %2087 = vmatprep.subr.mxu0 0.0
    %2088 = vmatpush1.msra.mxu0 0.0
    %2089 = vmatprep.subr.mxu0 0.0
    %2090 = vmatpush1.msra.mxu0 0.0
    %2091 = vmatprep.subr.mxu0 0.0
    %2092 = vmatpush1.msra.mxu0 0.0
    %2093 = vmatprep.subr.mxu0 0.0
    %2094 = vmatpush1.msra.mxu0 0.0
    %2095 = vmatprep.subr.mxu0 0.0
    %2096 = vmatpush1.msra.mxu0 0.0
    %2097 = vmatprep.subr.mxu0 0.0
    %2098 = vmatpush1.msra.mxu0 0.0
    %2099 = vmatprep.subr.mxu0 0.0
    %2100 = vmatpush1.msra.mxu0 0.0
    %2101 = vmatprep.subr.mxu0 0.0
    %2102 = vmatpush1.msra.mxu0 0.0
    %2103 = vmatprep.subr.mxu0 0.0
    %2104 = vmatpush1.msra.mxu0 0.0
    %2105 = vmatprep.subr.mxu0 0.0
    %2106 = vmatpush1.msra.mxu0 %v301
    %2107 = vmatprep.subr.mxu0 0.0
    %2108 = vmatpush1.msra.mxu0 %v300
    %2109 = vmatprep.subr.mxu0 0.0
    %2110 = vmatpush1.msra.mxu0 %v299
    %2111 = vmatprep.subr.mxu0 0.0
    %2112 = vmatpush1.msra.mxu0 %v298
    %2113 = vmatprep.subr.mxu0 0.0
    %2114 = vmatpush2.msra.mxu0 0.0
    %2115 = vmatprep.subr.mxu0 0.0
    %2116 = vmatpush2.msra.mxu0 0.0
    %2117 = vmatprep.subr.mxu0 0.0
    %2118 = vmatpush2.msra.mxu0 0.0
    %2119 = vmatprep.subr.mxu0 0.0
    %2120 = vmatpush2.msra.mxu0 0.0
    %2121 = vmatprep.subr.mxu0 0.0
    %2122 = vmatpush2.msra.mxu0 0.0
    %2123 = vmatprep.subr.mxu0 0.0
    %2124 = vmatpush2.msra.mxu0 0.0
    %2125 = vmatprep.subr.mxu0 0.0
    %2126 = vmatpush2.msra.mxu0 0.0
    %2127 = vmatprep.subr.mxu0 0.0
    %2128 = vmatpush2.msra.mxu0 0.0
    %2129 = vmatprep.subr.mxu0 0.0
    %2130 = vmatpush2.msra.mxu0 0.0
    %2131 = vmatprep.subr.mxu0 0.0
    %2132 = vmatpush2.msra.mxu0 0.0
    %2133 = vmatprep.subr.mxu0 0.0
    %2134 = vmatpush2.msra.mxu0 0.0
    %2135 = vmatprep.subr.mxu0 0.0
    %2136 = vmatpush2.msra.mxu0 0.0
    %2137 = vmatprep.subr.mxu0 0.0
    %2138 = vmatpush2.msra.mxu0 0.0
    %2139 = vmatprep.subr.mxu0 0.0
    %2140 = vmatpush2.msra.mxu0 0.0
    %2141 = vmatprep.subr.mxu0 0.0
    %2142 = vmatpush2.msra.mxu0 0.0
    %2143 = vmatprep.subr.mxu0 0.0
    %2144 = vmatpush2.msra.mxu0 0.0
    %2145 = vmatprep.mubr.f32.mxu0 0.0
    %2146 = vmatmul.mubr.f32.gmra.mxu0 %v2079
    %v2147 = vpop.f32.mrf.mxu0
    %v2148 = vadd.f32 0.0, %v2147
    %v2149 = vpop.f32.mrf.mxu0
    %2150 = vdwg.mxu0
    %v2153 = vunpack.c.l.s4 1983009808
    %v2154 = vunpack.c.0.s8 %v2153
    %v2155 = vlaneseq
    %v2156 = vshrl.u32 %v2155, 7
    %v2157 = vsub.s32 %v2154, %v2156
    %v2158 = vrot.slane %v2148, %v2157
    %2159 = vrot.lane.b32.xlu0 %v2158, 96
    %v2160 = vpop.permute.xlu0 %2159
    %v2161 = vrot.slane %v2160, 6
    %v2162 = vsel %vm1385, %v2161, %v2160
    %v2164 = vadd.f32 %v2077, %v2162
    %v2165 = vxor.u32 %v2164, 2147483648
    %v2166 = vmul.f32 %v2165, 1.442695
    %v2167 = vpow.pop %v2166
    %v2168 = vadd.f32 %v2167, 1.0
    %v2169 = vrcp.pop %v2168
    %v2170 = vmul.f32 1.0, %v2169
    %v2171 = vadd.f32 %v2148, %v1401
    %v2174 = vunpack.c.l.s4 1983009808
    %v2175 = vunpack.c.0.s8 %v2174
    %v2176 = vlaneseq
    %v2177 = vshrl.u32 %v2176, 7
    %v2178 = vsub.s32 %v2175, %v2177
    %v2179 = vrot.slane %v2171, %v2178
    %2180 = vrot.lane.b32.xlu0 %v2179, 32
    %v2181 = vpop.permute.xlu0 %2180
    %v2183 = vmul.f32 %v2170, %v2181
    %2185 = vrot.lane.b32.xlu0 %v2077, 96
    %v2186 = vpop.permute.xlu0 %2185
    %v2187 = vrot.slane %v2186, 2
    %2190 = vrot.lane.b32.xlu0 %v2183, 32
    %v2191 = vpop.permute.xlu0 %2190
    %v2193 = vadd.f32 %v2187, %v2191
    %v2194 = vtanh.pop %v2193
    %v2195 = vsub.f32 %v2072, %v2194
    %v2197 = vrot.slane %v2170, 2
    %v2199 = vmul.f32 %v2197, %v2195
    %v2200 = vadd.f32 %v2194, %v2199
    %v2201 = vld [vmem:[%s557] sm:$0x3]
    %v2202 = vadd.f32 %v2201, %v2200
    %s2203 = scalar_lea.vmem [#allocation12], 2
    %2204 = vst.msk [vmem:[%s2203] sm:$0x3] %vm433, %v2202
    %v2205 = vld [vmem:[#allocation2] sm:$0xf]
    %v2207 = vsel %vm152, %v2200, 0
    %2209 = vmatprep.subr.mxu0 0.0
    %2210 = vmatpush1.msra.mxu0 0.0
    %2211 = vmatprep.subr.mxu0 0.0
    %2212 = vmatpush1.msra.mxu0 0.0
    %2213 = vmatprep.subr.mxu0 0.0
    %2214 = vmatpush1.msra.mxu0 0.0
    %2215 = vmatprep.subr.mxu0 0.0
    %2216 = vmatpush1.msra.mxu0 0.0
    %2217 = vmatprep.subr.mxu0 0.0
    %2218 = vmatpush1.msra.mxu0 0.0
    %2219 = vmatprep.subr.mxu0 0.0
    %2220 = vmatpush1.msra.mxu0 0.0
    %2221 = vmatprep.subr.mxu0 0.0
    %2222 = vmatpush1.msra.mxu0 0.0
    %2223 = vmatprep.subr.mxu0 0.0
    %2224 = vmatpush1.msra.mxu0 0.0
    %2225 = vmatprep.subr.mxu0 0.0
    %2226 = vmatpush1.msra.mxu0 0.0
    %2227 = vmatprep.subr.mxu0 0.0
    %2228 = vmatpush1.msra.mxu0 0.0
    %2229 = vmatprep.subr.mxu0 0.0
    %2230 = vmatpush1.msra.mxu0 0.0
    %2231 = vmatprep.subr.mxu0 0.0
    %2232 = vmatpush1.msra.mxu0 0.0
    %2233 = vmatprep.subr.mxu0 0.0
    %2234 = vmatpush1.msra.mxu0 %v301
    %2235 = vmatprep.subr.mxu0 0.0
    %2236 = vmatpush1.msra.mxu0 %v300
    %2237 = vmatprep.subr.mxu0 0.0
    %2238 = vmatpush1.msra.mxu0 %v299
    %2239 = vmatprep.subr.mxu0 0.0
    %2240 = vmatpush1.msra.mxu0 %v298
    %2241 = vmatprep.subr.mxu0 0.0
    %2242 = vmatpush2.msra.mxu0 0.0
    %2243 = vmatprep.subr.mxu0 0.0
    %2244 = vmatpush2.msra.mxu0 0.0
    %2245 = vmatprep.subr.mxu0 0.0
    %2246 = vmatpush2.msra.mxu0 0.0
    %2247 = vmatprep.subr.mxu0 0.0
    %2248 = vmatpush2.msra.mxu0 0.0
    %2249 = vmatprep.subr.mxu0 0.0
    %2250 = vmatpush2.msra.mxu0 0.0
    %2251 = vmatprep.subr.mxu0 0.0
    %2252 = vmatpush2.msra.mxu0 0.0
    %2253 = vmatprep.subr.mxu0 0.0
    %2254 = vmatpush2.msra.mxu0 0.0
    %2255 = vmatprep.subr.mxu0 0.0
    %2256 = vmatpush2.msra.mxu0 0.0
    %2257 = vmatprep.subr.mxu0 0.0
    %2258 = vmatpush2.msra.mxu0 0.0
    %2259 = vmatprep.subr.mxu0 0.0
    %2260 = vmatpush2.msra.mxu0 0.0
    %2261 = vmatprep.subr.mxu0 0.0
    %2262 = vmatpush2.msra.mxu0 0.0
    %2263 = vmatprep.subr.mxu0 0.0
    %2264 = vmatpush2.msra.mxu0 0.0
    %2265 = vmatprep.subr.mxu0 0.0
    %2266 = vmatpush2.msra.mxu0 0.0
    %2267 = vmatprep.subr.mxu0 0.0
    %2268 = vmatpush2.msra.mxu0 0.0
    %2269 = vmatprep.subr.mxu0 0.0
    %2270 = vmatpush2.msra.mxu0 0.0
    %2271 = vmatprep.subr.mxu0 0.0
    %2272 = vmatpush2.msra.mxu0 0.0
    %2273 = vmatprep.mubr.f32.mxu0 0.0
    %2274 = vmatmul.mubr.f32.gmra.mxu0 %v2207
    %v2275 = vpop.f32.mrf.mxu0
    %v2276 = vadd.f32 0.0, %v2275
    %v2277 = vpop.f32.mrf.mxu0
    %2278 = vdwg.mxu0
    %v2281 = vunpack.c.l.s4 1983009808
    %v2282 = vunpack.c.0.s8 %v2281
    %v2283 = vlaneseq
    %v2284 = vshrl.u32 %v2283, 7
    %v2285 = vsub.s32 %v2282, %v2284
    %v2286 = vrot.slane %v2276, %v2285
    %2287 = vrot.lane.b32.xlu0 %v2286, 96
    %v2288 = vpop.permute.xlu0 %2287
    %v2289 = vrot.slane %v2288, 6
    %v2290 = vsel %vm1385, %v2289, %v2288
    %v2292 = vadd.f32 %v2205, %v2290
    %v2293 = vxor.u32 %v2292, 2147483648
    %v2294 = vmul.f32 %v2293, 1.442695
    %v2295 = vpow.pop %v2294
    %v2296 = vadd.f32 %v2295, 1.0
    %v2297 = vrcp.pop %v2296
    %v2298 = vmul.f32 1.0, %v2297
    %v2299 = vadd.f32 %v2276, %v1401
    %v2302 = vunpack.c.l.s4 1983009808
    %v2303 = vunpack.c.0.s8 %v2302
    %v2304 = vlaneseq
    %v2305 = vshrl.u32 %v2304, 7
    %v2306 = vsub.s32 %v2303, %v2305
    %v2307 = vrot.slane %v2299, %v2306
    %2308 = vrot.lane.b32.xlu0 %v2307, 32
    %v2309 = vpop.permute.xlu0 %2308
    %v2311 = vmul.f32 %v2298, %v2309
    %2313 = vrot.lane.b32.xlu0 %v2205, 96
    %v2314 = vpop.permute.xlu0 %2313
    %v2315 = vrot.slane %v2314, 2
    %2318 = vrot.lane.b32.xlu0 %v2311, 32
    %v2319 = vpop.permute.xlu0 %2318
    %v2321 = vadd.f32 %v2315, %v2319
    %v2322 = vtanh.pop %v2321
    %v2323 = vsub.f32 %v2200, %v2322
    %v2325 = vrot.slane %v2298, 2
    %v2327 = vmul.f32 %v2325, %v2323
    %v2328 = vadd.f32 %v2322, %v2327
    %v2329 = vld [vmem:[#allocation3] sm:$0x3]
    %v2330 = vadd.f32 %v2329, %v2328
    %2331 = vst.msk [vmem:[#allocation12] sm:$0x3] %vm433, %v2330
    // Predicated region
    $region46: #{tpu_custom_call.1} parent=1 // pred_check
      _
    $region47: #{tpu_custom_call.1} parent=1 // pred_check_branch
      %2333 = sbr.rel (0) target = $region49
    $region48: #{tpu_custom_call.1} parent=1 // pred_region
      %s2335 = ssub.s32 256, 256
      %2336 = vsyncadd [#allocation6], %s2335
      %s2337 = sshll.u32 [#allocation12], 4
      %s2338 = int_to_ptr.vmem [resolvable:$true] %s2337
      %2343 = dma.vmem_to_hbm [thread:$0]  %s2338, 256, %s7, [#allocation6], 32, 32, 2
    $region49: #{tpu_custom_call.1} parent=1 // pred_fallthru
      _
    // Predicated region
    $region50: #{tpu_custom_call.1} parent=1 // pred_check
      _
    $region51: #{tpu_custom_call.1} parent=1 // pred_check_branch
      %2345 = sbr.rel (0) target = $region53
    $region52: #{tpu_custom_call.1} parent=1 // pred_region
      %2346 = dma.done [#allocation6], 256
    $region53: #{tpu_custom_call.1} parent=1 // pred_fallthru
      _
    %2347 = vsyncpa [#allocation5], 1
    %2348 = vsyncpa [#allocation8], 1
    %2349 = vsyncpa [#allocation11], 1
    %2350 = vsyncpa [#allocation6], 1

</llo_original>
